<compile_context>
chip_gen: v6e
topology: v6e:2x2x1
jax: 0.10.0
libtpu: 0.0.40
codegen_flags: <defaults>
</compile_context>

<pallas_src>
import jax
import jax.numpy as jnp
from jax.experimental import pallas as pl
from jax.experimental.pallas import tpu as pltpu


# ----------------------------------------------------------------------------
# Fused kernel (all conv3x3+BN+ReLU blocks + final conv1x1), one batch / step
# ----------------------------------------------------------------------------
def _make_fused_kernel(H, W, n_blocks, compute_dtype=jnp.float32):
    """Build the fused kernel body for a fixed network structure.

    Kernel refs (in order):
      x_ref : (1, C_in, H*W)           lane-dense activation slab
      per hidden block i: w_ref (9*Cout_i, Cin_i), b_ref (Cout_i, 1)
      final: wf_ref (num_class, C_last), bf_ref (num_class, 1)
      o_ref : (1, num_class, H*W)
    """
    HW = H * W

    def kernel(*refs):
        x_ref = refs[0]
        o_ref = refs[-1]
        p_refs = refs[1:-1]

        x = x_ref[0].astype(jnp.float32)                      # (C_in, HW)

        # ---- Build the 9 shift matrices once; reused by every conv3x3 block.
        # S_t[p, q] = 1 iff source pixel p == q + (ddy*W + ddx) AND the dx
        # step stays inside the row (the dy / flat range condition is implied
        # because p is restricted to [0, HW)).  Y @ S_t therefore gathers the
        # 'same'-padded shifted activation with zeros at the borders.
        shift_mats = []
        if n_blocks > 0:
            p_row = jax.lax.broadcasted_iota(jnp.int32, (HW, HW), 0)
            q_col = jax.lax.broadcasted_iota(jnp.int32, (HW, HW), 1)
            w_q = jax.lax.broadcasted_iota(jnp.int32, (1, HW), 1) % W
            for ddy in (-1, 0, 1):
                for ddx in (-1, 0, 1):
                    off = ddy * W + ddx
                    sel = p_row == (q_col + off)
                    if ddx == 1:
                        sel = jnp.logical_and(sel, w_q < (W - 1))
                    elif ddx == -1:
                        sel = jnp.logical_and(sel, w_q >= 1)
                    shift_mats.append(sel.astype(compute_dtype))

        # ---- Hidden blocks: conv3x3 (BN folded) + ReLU, all VMEM-resident.
        for blk in range(n_blocks):
            w_ref = p_refs[2 * blk]                           # (9*Cout, Cin)
            b_ref = p_refs[2 * blk + 1]                       # (Cout, 1)
            cout = b_ref.shape[0]
            # One GEMM covering all 9 taps: (9*Cout, Cin) @ (Cin, HW).
            y_all = jnp.dot(w_ref[...].astype(compute_dtype),
                            x.astype(compute_dtype),
                            preferred_element_type=jnp.float32)  # (9*Cout, HW)
            acc = jnp.zeros((cout, HW), jnp.float32)
            for t in range(9):
                y_t = y_all[t * cout:(t + 1) * cout, :]          # (Cout, HW)
                acc = acc + jnp.dot(y_t.astype(compute_dtype), shift_mats[t],
                                    preferred_element_type=jnp.float32)
            # BN already folded into w/b: just bias + ReLU, in f32 (v5e-safe).
            x = jnp.maximum(acc + b_ref[...], 0.0)

        # ---- Final 1x1 conv: pointwise GEMM, logits stay lane-dense.
        wf_ref, bf_ref = p_refs[-2], p_refs[-1]
        logits = jnp.dot(wf_ref[...].astype(compute_dtype),
                         x.astype(compute_dtype),
                         preferred_element_type=jnp.float32) + bf_ref[...]
        o_ref[0] = logits.astype(o_ref.dtype)

    return kernel


# ----------------------------------------------------------------------------
# Wrapper: single fused pallas_call over the batch
# ----------------------------------------------------------------------------
def heatmap_layer_2d(folded_params, x_nchw, compute_dtype=jnp.float32):
    """Forward pass.  Input/output follow the PyTorch NCHW convention.

    `compute_dtype=jnp.bfloat16` enables bf16 MXU operands (recommended for
    v6e/v7x at large shapes; accumulation stays f32).  Default f32 keeps the
    numerics bit-tight and is the right choice for v5e elementwise paths.
    """
    B, C_in, H, W = x_nchw.shape
    HW = H * W
    num_class = folded_params["w_final"].shape[0]
    n_blocks = len(folded_params["blocks"])

    # Free-ish layout change: NCHW -> (B, C, H*W) keeps channel-major order,
    # no transpose, and puts H*W = 256 on the lane axis.
    x_flat = x_nchw.reshape(B, C_in, HW)

    flat_args = [x_flat]
    in_specs = [pl.BlockSpec((1, C_in, HW), lambda b: (b, 0, 0))]
    for blk in folded_params["blocks"]:
        w, bias = blk["w"], blk["b"]
        flat_args += [w, bias]
        in_specs += [pl.BlockSpec(w.shape, lambda b: (0, 0)),
                     pl.BlockSpec(bias.shape, lambda b: (0, 0))]
    wf, bf = folded_params["w_final"], folded_params["b_final"]
    flat_args += [wf, bf]
    in_specs += [pl.BlockSpec(wf.shape, lambda b: (0, 0)),
                 pl.BlockSpec(bf.shape, lambda b: (0, 0))]

    kernel = _make_fused_kernel(H, W, n_blocks, compute_dtype)
    out = pl.pallas_call(
        kernel,
        out_shape=jax.ShapeDtypeStruct((B, num_class, HW), jnp.float32),
        grid_spec=pltpu.PrefetchScalarGridSpec(
            num_scalar_prefetch=0,
            grid=(B,),
            in_specs=in_specs,
            out_specs=pl.BlockSpec((1, num_class, HW), lambda b: (b, 0, 0)),
        ),
        compiler_params=pltpu.CompilerParams(
            dimension_semantics=("parallel",)),   # shards batch over v7x's 2 TCs
    )(*flat_args)
    return out.reshape(B, num_class, H, W)        # back to NCHW (cheap reshape)


# ----------------------------------------------------------------------------
# Parameters: PyTorch-layout init + BN folding for the kernel
# ----------------------------------------------------------------------------
def init_params(key, c_in, hidden, num_class, eps=1e-5):
    """Deterministic synthetic parameters, PyTorch layouts (OIHW + BN stats)."""
    params = {"blocks": [], "eps": eps}
    channels = [c_in] + list(hidden)
    for prv, nxt in zip(channels[:-1], channels[1:]):
        key, k1, k2, k3, k4, k5, k6 = jax.random.split(key, 7)
        params["blocks"].append(dict(
            w=0.1 * jax.random.normal(k1, (nxt, prv, 3, 3), jnp.float32),
            b=0.1 * jax.random.normal(k2, (nxt,), jnp.float32),
            gamma=1.0 + 0.1 * jax.random.normal(k3, (nxt,), jnp.float32),
            beta=0.1 * jax.random.normal(k4, (nxt,), jnp.float32),
            mean=0.1 * jax.random.normal(k5, (nxt,), jnp.float32),
            var=jnp.abs(jax.random.normal(k6, (nxt,), jnp.float32)) + 0.5,
        ))
    key, k1, k2 = jax.random.split(key, 3)
    params["w_final"] = 0.1 * jax.random.normal(
        k1, (num_class, channels[-1], 1, 1), jnp.float32)       # (nc, C, 1, 1)
    params["b_final"] = 0.1 * jax.random.normal(k2, (num_class,), jnp.float32)
    return params


def fold_params(params):
    """Fold inference-mode BatchNorm into conv weights/bias (f32), and
    reshape weights into the kernel's (9*Cout, Cin) tap-stacked layout."""
    eps = params["eps"]
    folded = {"blocks": []}
    for blk in params["blocks"]:
        scale = blk["gamma"] / jnp.sqrt(blk["var"] + eps)       # (Cout,)
        shift = blk["beta"] - blk["mean"] * scale
        w = blk["w"] * scale[:, None, None, None]               # (Cout,Cin,3,3)
        cout, cin = w.shape[0], w.shape[1]
        # (Cout,Cin,kh,kw) -> (kh,kw,Cout,Cin) -> (9*Cout, Cin), t = kh*3+kw
        w_taps = jnp.transpose(w, (2, 3, 0, 1)).reshape(9 * cout, cin)
        b = (blk["b"] * scale + shift).reshape(cout, 1)
        folded["blocks"].append(dict(w=w_taps, b=b))
    folded["w_final"] = params["w_final"][:, :, 0, 0]           # (nc, C_last)
    folded["b_final"] = params["b_final"].reshape(-1, 1)        # (nc, 1)
    return folded


# ----------------------------------------------------------------------------
# Pure-JAX reference (unfolded BN), for the correctness check
# ----------------------------------------------------------------------------
def reference_forward(params, x_nchw):
    eps = params["eps"]
    x = x_nchw
    for blk in params["blocks"]:
        y = jax.lax.conv_general_dilated(
            x, blk["w"], window_strides=(1, 1), padding=((1, 1), (1, 1)),
            dimension_numbers=("NCHW", "OIHW", "NCHW"))
        y = y + blk["b"][None, :, None, None]
        scale = blk["gamma"] / jnp.sqrt(blk["var"] + eps)
        y = (y - blk["mean"][None, :, None, None]) * scale[None, :, None, None] \
            + blk["beta"][None, :, None, None]
        x = jnp.maximum(y, 0.0)
    y = jax.lax.conv_general_dilated(
        x, params["w_final"], window_strides=(1, 1), padding=((0, 0), (0, 0)),
        dimension_numbers=("NCHW", "OIHW", "NCHW"))
    return y + params["b_final"][None, :, None, None]


if __name__ == "__main__":
    # Small shapes: batch=2, c_in=4, 16x16 spatial, hidden=(8,), num_class=9.
    B, C_IN, H, W = 2, 4, 16, 16
    HIDDEN = (8,)
    NUM_CLASS = 9

    key = jax.random.PRNGKey(0)
    kx, kp = jax.random.split(key)
    x = jax.random.normal(kx, (B, C_IN, H, W), jnp.float32)     # NCHW input
    params = init_params(kp, C_IN, HIDDEN, NUM_CLASS)
    folded = fold_params(params)

    fwd = jax.jit(heatmap_layer_2d)
    out = jax.block_until_ready(fwd(folded, x))
    assert out.shape == (B, NUM_CLASS, H, W), out.shape

    ref = jax.block_until_ready(reference_forward(params, x))
    max_err = float(jnp.max(jnp.abs(out - ref)))
    assert jnp.allclose(out, ref, atol=1e-4, rtol=1e-4), max_err

    print("KERNEL_OK")
</pallas_src>

<mosaic_0001>
module attributes {stable_mosaic.version = 11 : i64} {
  func.func @kernel(%arg0: i32, %arg1: memref<1x4x256xf32, #tpu.memory_space<vmem>>, %arg2: memref<72x4xf32, #tpu.memory_space<vmem>>, %arg3: memref<8x1xf32, #tpu.memory_space<vmem>>, %arg4: memref<9x8xf32, #tpu.memory_space<vmem>>, %arg5: memref<9x1xf32, #tpu.memory_space<vmem>>, %arg6: memref<1x9x256xf32, #tpu.memory_space<vmem>>) attributes {dimension_semantics = [#tpu.dimension_semantics<parallel>], iteration_bounds = array<i64: 2>, scalar_prefetch = 0 : i64, scratch_operands = 0 : i64, tpu.core_type = #tpu.core_type<tc>, window_params = [{transform_indices = @transform_0, window_bounds = array<i64: 1, 4, 256>}, {pipeline_mode = #tpu.pipeline_mode<synchronous>, transform_indices = @transform_1, window_bounds = array<i64: 72, 4>}, {pipeline_mode = #tpu.pipeline_mode<synchronous>, transform_indices = @transform_2, window_bounds = array<i64: 8, 1>}, {pipeline_mode = #tpu.pipeline_mode<synchronous>, transform_indices = @transform_3, window_bounds = array<i64: 9, 8>}, {pipeline_mode = #tpu.pipeline_mode<synchronous>, transform_indices = @transform_4, window_bounds = array<i64: 9, 1>}, {transform_indices = @transform_5, window_bounds = array<i64: 1, 9, 256>}]} {
    %c0 = arith.constant 0 : index
    %c0_0 = arith.constant 0 : index
    %c0_1 = arith.constant 0 : index
    %0 = vector.load %arg1[%c0, %c0_0, %c0_1] : memref<1x4x256xf32, #tpu.memory_space<vmem>>, vector<1x4x256xf32>
    %1 = vector.shape_cast %0 : vector<1x4x256xf32> to vector<4x256xf32>
    %2 = tpu.iota {dimensions = array<i32: 0>} : vector<256x256xi32>
    %3 = tpu.iota {dimensions = array<i32: 1>} : vector<256x256xi32>
    %4 = tpu.iota {dimensions = array<i32: 1>} : vector<1x256xi32>
    %c16_i32 = arith.constant 16 : i32
    %c0_i32 = arith.constant 0 : i32
    %5 = arith.cmpi eq, %c16_i32, %c0_i32 : i32
    %c1_i32 = arith.constant 1 : i32
    %6 = arith.select %5, %c1_i32, %c16_i32 : i32
    %7 = vector.broadcast %6 : i32 to vector<1x256xi32>
    %8 = arith.remsi %4, %7 : vector<1x256xi32>
    %c0_i32_2 = arith.constant 0 : i32
    %9 = vector.broadcast %c0_i32_2 : i32 to vector<1x256xi32>
    %10 = arith.cmpi ne, %8, %9 : vector<1x256xi32>
    %c0_i32_3 = arith.constant 0 : i32
    %11 = vector.broadcast %c0_i32_3 : i32 to vector<1x256xi32>
    %12 = arith.cmpi slt, %8, %11 : vector<1x256xi32>
    %c0_i32_4 = arith.constant 0 : i32
    %13 = arith.cmpi slt, %6, %c0_i32_4 : i32
    %14 = vector.broadcast %13 : i1 to vector<1x256xi1>
    %15 = vector.broadcast %14 : vector<1x256xi1> to vector<1x256xi1>
    %16 = arith.xori %12, %15 : vector<1x256xi1>
    %17 = arith.andi %16, %10 : vector<1x256xi1>
    %18 = vector.broadcast %6 : i32 to vector<1x256xi32>
    %19 = arith.addi %8, %18 : vector<1x256xi32>
    %20 = arith.select %17, %19, %8 : vector<1x256xi1>, vector<1x256xi32>
    %c-17_i32 = arith.constant -17 : i32
    %21 = vector.broadcast %c-17_i32 : i32 to vector<256x256xi32>
    %22 = arith.addi %3, %21 : vector<256x256xi32>
    %23 = arith.cmpi eq, %2, %22 : vector<256x256xi32>
    %c1_i32_5 = arith.constant 1 : i32
    %24 = vector.broadcast %c1_i32_5 : i32 to vector<1x256xi32>
    %25 = arith.cmpi sge, %20, %24 : vector<1x256xi32>
    %26 = vector.broadcast %25 : vector<1x256xi1> to vector<256x256xi1>
    %27 = arith.andi %23, %26 : vector<256x256xi1>
    %28 = arith.extui %27 : vector<256x256xi1> to vector<256x256xi32>
    %29 = arith.sitofp %28 : vector<256x256xi32> to vector<256x256xf32>
    %c-16_i32 = arith.constant -16 : i32
    %30 = vector.broadcast %c-16_i32 : i32 to vector<256x256xi32>
    %31 = arith.addi %3, %30 : vector<256x256xi32>
    %32 = arith.cmpi eq, %2, %31 : vector<256x256xi32>
    %33 = arith.extui %32 : vector<256x256xi1> to vector<256x256xi32>
    %34 = arith.sitofp %33 : vector<256x256xi32> to vector<256x256xf32>
    %c-15_i32 = arith.constant -15 : i32
    %35 = vector.broadcast %c-15_i32 : i32 to vector<256x256xi32>
    %36 = arith.addi %3, %35 : vector<256x256xi32>
    %37 = arith.cmpi eq, %2, %36 : vector<256x256xi32>
    %c15_i32 = arith.constant 15 : i32
    %38 = vector.broadcast %c15_i32 : i32 to vector<1x256xi32>
    %39 = arith.cmpi slt, %20, %38 : vector<1x256xi32>
    %40 = vector.broadcast %39 : vector<1x256xi1> to vector<256x256xi1>
    %41 = arith.andi %37, %40 : vector<256x256xi1>
    %42 = arith.extui %41 : vector<256x256xi1> to vector<256x256xi32>
    %43 = arith.sitofp %42 : vector<256x256xi32> to vector<256x256xf32>
    %c-1_i32 = arith.constant -1 : i32
    %44 = vector.broadcast %c-1_i32 : i32 to vector<256x256xi32>
    %45 = arith.addi %3, %44 : vector<256x256xi32>
    %46 = arith.cmpi eq, %2, %45 : vector<256x256xi32>
    %c1_i32_6 = arith.constant 1 : i32
    %47 = vector.broadcast %c1_i32_6 : i32 to vector<1x256xi32>
    %48 = arith.cmpi sge, %20, %47 : vector<1x256xi32>
    %49 = vector.broadcast %48 : vector<1x256xi1> to vector<256x256xi1>
    %50 = arith.andi %46, %49 : vector<256x256xi1>
    %51 = arith.extui %50 : vector<256x256xi1> to vector<256x256xi32>
    %52 = arith.sitofp %51 : vector<256x256xi32> to vector<256x256xf32>
    %c0_i32_7 = arith.constant 0 : i32
    %53 = vector.broadcast %c0_i32_7 : i32 to vector<256x256xi32>
    %54 = arith.addi %3, %53 : vector<256x256xi32>
    %55 = arith.cmpi eq, %2, %54 : vector<256x256xi32>
    %56 = arith.extui %55 : vector<256x256xi1> to vector<256x256xi32>
    %57 = arith.sitofp %56 : vector<256x256xi32> to vector<256x256xf32>
    %c1_i32_8 = arith.constant 1 : i32
    %58 = vector.broadcast %c1_i32_8 : i32 to vector<256x256xi32>
    %59 = arith.addi %3, %58 : vector<256x256xi32>
    %60 = arith.cmpi eq, %2, %59 : vector<256x256xi32>
    %c15_i32_9 = arith.constant 15 : i32
    %61 = vector.broadcast %c15_i32_9 : i32 to vector<1x256xi32>
    %62 = arith.cmpi slt, %20, %61 : vector<1x256xi32>
    %63 = vector.broadcast %62 : vector<1x256xi1> to vector<256x256xi1>
    %64 = arith.andi %60, %63 : vector<256x256xi1>
    %65 = arith.extui %64 : vector<256x256xi1> to vector<256x256xi32>
    %66 = arith.sitofp %65 : vector<256x256xi32> to vector<256x256xf32>
    %c15_i32_10 = arith.constant 15 : i32
    %67 = vector.broadcast %c15_i32_10 : i32 to vector<256x256xi32>
    %68 = arith.addi %3, %67 : vector<256x256xi32>
    %69 = arith.cmpi eq, %2, %68 : vector<256x256xi32>
    %c1_i32_11 = arith.constant 1 : i32
    %70 = vector.broadcast %c1_i32_11 : i32 to vector<1x256xi32>
    %71 = arith.cmpi sge, %20, %70 : vector<1x256xi32>
    %72 = vector.broadcast %71 : vector<1x256xi1> to vector<256x256xi1>
    %73 = arith.andi %69, %72 : vector<256x256xi1>
    %74 = arith.extui %73 : vector<256x256xi1> to vector<256x256xi32>
    %75 = arith.sitofp %74 : vector<256x256xi32> to vector<256x256xf32>
    %c16_i32_12 = arith.constant 16 : i32
    %76 = vector.broadcast %c16_i32_12 : i32 to vector<256x256xi32>
    %77 = arith.addi %3, %76 : vector<256x256xi32>
    %78 = arith.cmpi eq, %2, %77 : vector<256x256xi32>
    %79 = arith.extui %78 : vector<256x256xi1> to vector<256x256xi32>
    %80 = arith.sitofp %79 : vector<256x256xi32> to vector<256x256xf32>
    %c17_i32 = arith.constant 17 : i32
    %81 = vector.broadcast %c17_i32 : i32 to vector<256x256xi32>
    %82 = arith.addi %3, %81 : vector<256x256xi32>
    %83 = arith.cmpi eq, %2, %82 : vector<256x256xi32>
    %c15_i32_13 = arith.constant 15 : i32
    %84 = vector.broadcast %c15_i32_13 : i32 to vector<1x256xi32>
    %85 = arith.cmpi slt, %20, %84 : vector<1x256xi32>
    %86 = vector.broadcast %85 : vector<1x256xi1> to vector<256x256xi1>
    %87 = arith.andi %83, %86 : vector<256x256xi1>
    %88 = arith.extui %87 : vector<256x256xi1> to vector<256x256xi32>
    %89 = arith.sitofp %88 : vector<256x256xi32> to vector<256x256xf32>
    %c0_14 = arith.constant 0 : index
    %c0_15 = arith.constant 0 : index
    %90 = vector.load %arg2[%c0_14, %c0_15] : memref<72x4xf32, #tpu.memory_space<vmem>>, vector<72x4xf32>
    %cst = arith.constant dense<0.000000e+00> : vector<72x256xf32>
    %91 = tpu.matmul %90, %1, %cst {dimension_numbers = #tpu.dot_dimension_numbers<[1], [0], [0], [1], [0, 0, 1, 1], [], []>} : vector<72x4xf32>, vector<4x256xf32>, vector<72x256xf32> -> vector<72x256xf32>
    %cst_16 = arith.constant 0.000000e+00 : f32
    %92 = vector.broadcast %cst_16 : f32 to vector<8x256xf32>
    %93 = vector.extract_strided_slice %91 {offsets = [0, 0], sizes = [8, 256], strides = [1, 1]} : vector<72x256xf32> to vector<8x256xf32>
    %cst_17 = arith.constant dense<0.000000e+00> : vector<8x256xf32>
    %94 = tpu.matmul %93, %29, %cst_17 {dimension_numbers = #tpu.dot_dimension_numbers<[1], [0], [0], [1], [0, 0, 1, 1], [], []>} : vector<8x256xf32>, vector<256x256xf32>, vector<8x256xf32> -> vector<8x256xf32>
    %95 = arith.addf %92, %94 : vector<8x256xf32>
    %96 = vector.extract_strided_slice %91 {offsets = [8, 0], sizes = [8, 256], strides = [1, 1]} : vector<72x256xf32> to vector<8x256xf32>
    %cst_18 = arith.constant dense<0.000000e+00> : vector<8x256xf32>
    %97 = tpu.matmul %96, %34, %cst_18 {dimension_numbers = #tpu.dot_dimension_numbers<[1], [0], [0], [1], [0, 0, 1, 1], [], []>} : vector<8x256xf32>, vector<256x256xf32>, vector<8x256xf32> -> vector<8x256xf32>
    %98 = arith.addf %95, %97 : vector<8x256xf32>
    %99 = vector.extract_strided_slice %91 {offsets = [16, 0], sizes = [8, 256], strides = [1, 1]} : vector<72x256xf32> to vector<8x256xf32>
    %cst_19 = arith.constant dense<0.000000e+00> : vector<8x256xf32>
    %100 = tpu.matmul %99, %43, %cst_19 {dimension_numbers = #tpu.dot_dimension_numbers<[1], [0], [0], [1], [0, 0, 1, 1], [], []>} : vector<8x256xf32>, vector<256x256xf32>, vector<8x256xf32> -> vector<8x256xf32>
    %101 = arith.addf %98, %100 : vector<8x256xf32>
    %102 = vector.extract_strided_slice %91 {offsets = [24, 0], sizes = [8, 256], strides = [1, 1]} : vector<72x256xf32> to vector<8x256xf32>
    %cst_20 = arith.constant dense<0.000000e+00> : vector<8x256xf32>
    %103 = tpu.matmul %102, %52, %cst_20 {dimension_numbers = #tpu.dot_dimension_numbers<[1], [0], [0], [1], [0, 0, 1, 1], [], []>} : vector<8x256xf32>, vector<256x256xf32>, vector<8x256xf32> -> vector<8x256xf32>
    %104 = arith.addf %101, %103 : vector<8x256xf32>
    %105 = vector.extract_strided_slice %91 {offsets = [32, 0], sizes = [8, 256], strides = [1, 1]} : vector<72x256xf32> to vector<8x256xf32>
    %cst_21 = arith.constant dense<0.000000e+00> : vector<8x256xf32>
    %106 = tpu.matmul %105, %57, %cst_21 {dimension_numbers = #tpu.dot_dimension_numbers<[1], [0], [0], [1], [0, 0, 1, 1], [], []>} : vector<8x256xf32>, vector<256x256xf32>, vector<8x256xf32> -> vector<8x256xf32>
    %107 = arith.addf %104, %106 : vector<8x256xf32>
    %108 = vector.extract_strided_slice %91 {offsets = [40, 0], sizes = [8, 256], strides = [1, 1]} : vector<72x256xf32> to vector<8x256xf32>
    %cst_22 = arith.constant dense<0.000000e+00> : vector<8x256xf32>
    %109 = tpu.matmul %108, %66, %cst_22 {dimension_numbers = #tpu.dot_dimension_numbers<[1], [0], [0], [1], [0, 0, 1, 1], [], []>} : vector<8x256xf32>, vector<256x256xf32>, vector<8x256xf32> -> vector<8x256xf32>
    %110 = arith.addf %107, %109 : vector<8x256xf32>
    %111 = vector.extract_strided_slice %91 {offsets = [48, 0], sizes = [8, 256], strides = [1, 1]} : vector<72x256xf32> to vector<8x256xf32>
    %cst_23 = arith.constant dense<0.000000e+00> : vector<8x256xf32>
    %112 = tpu.matmul %111, %75, %cst_23 {dimension_numbers = #tpu.dot_dimension_numbers<[1], [0], [0], [1], [0, 0, 1, 1], [], []>} : vector<8x256xf32>, vector<256x256xf32>, vector<8x256xf32> -> vector<8x256xf32>
    %113 = arith.addf %110, %112 : vector<8x256xf32>
    %114 = vector.extract_strided_slice %91 {offsets = [56, 0], sizes = [8, 256], strides = [1, 1]} : vector<72x256xf32> to vector<8x256xf32>
    %cst_24 = arith.constant dense<0.000000e+00> : vector<8x256xf32>
    %115 = tpu.matmul %114, %80, %cst_24 {dimension_numbers = #tpu.dot_dimension_numbers<[1], [0], [0], [1], [0, 0, 1, 1], [], []>} : vector<8x256xf32>, vector<256x256xf32>, vector<8x256xf32> -> vector<8x256xf32>
    %116 = arith.addf %113, %115 : vector<8x256xf32>
    %117 = vector.extract_strided_slice %91 {offsets = [64, 0], sizes = [8, 256], strides = [1, 1]} : vector<72x256xf32> to vector<8x256xf32>
    %cst_25 = arith.constant dense<0.000000e+00> : vector<8x256xf32>
    %118 = tpu.matmul %117, %89, %cst_25 {dimension_numbers = #tpu.dot_dimension_numbers<[1], [0], [0], [1], [0, 0, 1, 1], [], []>} : vector<8x256xf32>, vector<256x256xf32>, vector<8x256xf32> -> vector<8x256xf32>
    %119 = arith.addf %116, %118 : vector<8x256xf32>
    %c0_26 = arith.constant 0 : index
    %c0_27 = arith.constant 0 : index
    %120 = vector.load %arg3[%c0_26, %c0_27] : memref<8x1xf32, #tpu.memory_space<vmem>>, vector<8x1xf32>
    %121 = vector.broadcast %120 : vector<8x1xf32> to vector<8x256xf32>
    %122 = arith.addf %119, %121 : vector<8x256xf32>
    %cst_28 = arith.constant 0.000000e+00 : f32
    %123 = vector.broadcast %cst_28 : f32 to vector<8x256xf32>
    %124 = arith.maximumf %122, %123 : vector<8x256xf32>
    %c0_29 = arith.constant 0 : index
    %c0_30 = arith.constant 0 : index
    %125 = vector.load %arg4[%c0_29, %c0_30] : memref<9x8xf32, #tpu.memory_space<vmem>>, vector<9x8xf32>
    %cst_31 = arith.constant dense<0.000000e+00> : vector<9x256xf32>
    %126 = tpu.matmul %125, %124, %cst_31 {dimension_numbers = #tpu.dot_dimension_numbers<[1], [0], [0], [1], [0, 0, 1, 1], [], []>} : vector<9x8xf32>, vector<8x256xf32>, vector<9x256xf32> -> vector<9x256xf32>
    %c0_32 = arith.constant 0 : index
    %c0_33 = arith.constant 0 : index
    %127 = vector.load %arg5[%c0_32, %c0_33] : memref<9x1xf32, #tpu.memory_space<vmem>>, vector<9x1xf32>
    %128 = vector.broadcast %127 : vector<9x1xf32> to vector<9x256xf32>
    %129 = arith.addf %126, %128 : vector<9x256xf32>
    %c0_34 = arith.constant 0 : index
    %c0_35 = arith.constant 0 : index
    %c0_36 = arith.constant 0 : index
    %130 = vector.load %arg6[%c0_34, %c0_35, %c0_36] : memref<1x9x256xf32, #tpu.memory_space<vmem>>, vector<1x9x256xf32>
    %131 = vector.shape_cast %130 : vector<1x9x256xf32> to vector<9x256xf32>
    %132 = vector.shape_cast %129 : vector<9x256xf32> to vector<1x9x256xf32>
    tpu.vector_store %arg6[%c0_34, %c0_35, %c0_36], %132 {strides = array<i32>} : memref<1x9x256xf32, #tpu.memory_space<vmem>>, vector<1x9x256xf32>,
    return
  }
  func.func @transform_0(%arg0: i32) -> (i32, i32, i32) {
    %c0_i32 = arith.constant 0 : i32
    %c0_i32_0 = arith.constant 0 : i32
    %c0_i32_1 = arith.constant 0 : i32
    return %arg0, %c0_i32, %c0_i32_0 : i32, i32, i32
  }
  func.func @transform_1(%arg0: i32) -> (i32, i32) {
    %c0_i32 = arith.constant 0 : i32
    %c0_i32_0 = arith.constant 0 : i32
    %c0_i32_1 = arith.constant 0 : i32
    return %c0_i32, %c0_i32_0 : i32, i32
  }
  func.func @transform_2(%arg0: i32) -> (i32, i32) {
    %c0_i32 = arith.constant 0 : i32
    %c0_i32_0 = arith.constant 0 : i32
    %c0_i32_1 = arith.constant 0 : i32
    return %c0_i32, %c0_i32_0 : i32, i32
  }
  func.func @transform_3(%arg0: i32) -> (i32, i32) {
    %c0_i32 = arith.constant 0 : i32
    %c0_i32_0 = arith.constant 0 : i32
    %c0_i32_1 = arith.constant 0 : i32
    return %c0_i32, %c0_i32_0 : i32, i32
  }
  func.func @transform_4(%arg0: i32) -> (i32, i32) {
    %c0_i32 = arith.constant 0 : i32
    %c0_i32_0 = arith.constant 0 : i32
    %c0_i32_1 = arith.constant 0 : i32
    return %c0_i32, %c0_i32_0 : i32, i32
  }
  func.func @transform_5(%arg0: i32) -> (i32, i32, i32) {
    %c0_i32 = arith.constant 0 : i32
    %c0_i32_0 = arith.constant 0 : i32
    %c0_i32_1 = arith.constant 0 : i32
    return %arg0, %c0_i32, %c0_i32_0 : i32, i32, i32
  }
}

</mosaic_0001>

<llo_original>
// kernel: heatmap_layer_2d.1
$region0: #{heatmap_layer_2d.1}
  #allocation0 [shape = 'u32[]', space=smem, size = 0x4, offset = 0x4, fixed_abs, tag = 'smem constant byte address 0x4 - core index']
  #allocation1 [shape = 'u32[144,128]{1,0:T(1,128)}', space=vmem, size = 0x12000, scoped, tag = 'internal scratch']
  %s0 = inlined_call_operand.vmem [shape: f32[2,4,256], index: 0, kind: input, shape index: {}]
  %s1 = inlined_call_operand.vmem [shape: f32[72,4], index: 1, kind: input, shape index: {}]
  %s2 = inlined_call_operand.vmem [shape: f32[8,1], index: 2, kind: input, shape index: {}]
  %s3 = inlined_call_operand.vmem [shape: f32[9,8], index: 3, kind: input, shape index: {}]
  %s4 = inlined_call_operand.vmem [shape: f32[9,1], index: 4, kind: input, shape index: {}]
  %s5 = inlined_call_operand.vmem [shape: f32[2,9,256], index: 5, kind: output, shape index: {}]
  %s6 = sld [smem:[#allocation0]]
  $region53: #{heatmap_layer_2d.1} parent=0
    _
  %s8 = ssub.s32 1, %s6
  %s9 = scalar_select 0, %s8, %s6
  loop: start=0, step=1, limit=4
  $region2: #{heatmap_layer_2d.1} parent=0 // loop_pre_header
    _
  $region3: #{heatmap_layer_2d.1} parent=0 // loop_header
    %s11 = sphi 0, %s15
    %p12 = scmp.ge.s32.totalorder %s11, 4
    %s21 = sphi 0, %s23
    %s24 = sphi 0, %s21
    %s25 = sphi 0, %s24
    %s41 = sphi 0, %s25
    %s45 = sphi 0, %s45
    %s47 = sphi 0, %s45
    %s48 = sphi 0, %s47
    %s62 = sphi 0, %s48
    %s66 = sphi 0, %s66
    %s68 = sphi 0, %s66
    %s69 = sphi 0, %s68
    %s83 = sphi 0, %s69
    %s87 = sphi 0, %s87
    %s89 = sphi 0, %s87
    %s90 = sphi 0, %s89
    %s104 = sphi 0, %s90
    %s108 = sphi 0, %s108
    %s110 = sphi 0, %s108
    %s111 = sphi 0, %s110
    %s125 = sphi 0, %s111
    %s131 = sphi 0, %s133
    %s134 = sphi 0, %s131
    %s135 = sphi 0, %s134
    %s151 = sphi 0, %s135
  $region4: #{heatmap_layer_2d.1} parent=0 // loop_header_branch
    %14 = sbr.rel (%p12) target = $region8
  $region5: #{heatmap_layer_2d.1} parent=0 // loop_body
    %s16 = ssub.s32 %s11, 1
    %s17 = ssub.s32 %s11, 2
    %s18 = sadd.s32 %s11, 1
    %s19 = ssub.s32 %s11, %s18
    %p20 = scmp.eq.s32.totalorder %s19, 0
    %s22 = sadd.s32 %s21, 1
    %s23 = scalar_select %p20, %s21, %s22
    %p26 = pneg %p20
    %p27 = scmp.eq.s32.totalorder %s11, 1
    %p28 = por %p26, %p27
    %p29 = scmp.ne.s32.totalorder %s21, %s24
    %p30 = scmp.eq.s32.totalorder %s11, 0
    %p31 = por %p29, %p30
    %p32 = scmp.ne.s32.totalorder %s21, %s24
    %p33 = scmp.eq.s32.totalorder %s16, 1
    %p34 = por %p32, %p33
    %p35 = scmp.ne.s32.totalorder %s24, %s25
    %p36 = scmp.eq.s32.totalorder %s16, 0
    %p37 = por %p35, %p36
    %p38 = scmp.ne.s32.totalorder %s24, %s25
    %p39 = scmp.eq.s32.totalorder %s17, 1
    %p40 = por %p38, %p39
    %p42 = scmp.ne.s32.totalorder %s25, %s41
    %p43 = scmp.eq.s32.totalorder %s17, 0
    %p44 = por %p42, %p43
    %s46 = sadd.s32 %s45, 1
    %p49 = scmp.eq.s32.totalorder %s11, 1
    %p50 = scmp.ne.s32.totalorder %s45, %s47
    %p51 = scmp.eq.s32.totalorder %s11, 0
    %p52 = por %p50, %p51
    %p53 = scmp.ne.s32.totalorder %s45, %s47
    %p54 = scmp.eq.s32.totalorder %s16, 1
    %p55 = por %p53, %p54
    %p56 = scmp.ne.s32.totalorder %s47, %s48
    %p57 = scmp.eq.s32.totalorder %s16, 0
    %p58 = por %p56, %p57
    %p59 = scmp.ne.s32.totalorder %s47, %s48
    %p60 = scmp.eq.s32.totalorder %s17, 1
    %p61 = por %p59, %p60
    %p63 = scmp.ne.s32.totalorder %s48, %s62
    %p64 = scmp.eq.s32.totalorder %s17, 0
    %p65 = por %p63, %p64
    %s67 = sadd.s32 %s66, 1
    %p70 = scmp.eq.s32.totalorder %s11, 1
    %p71 = scmp.ne.s32.totalorder %s66, %s68
    %p72 = scmp.eq.s32.totalorder %s11, 0
    %p73 = por %p71, %p72
    %p74 = scmp.ne.s32.totalorder %s66, %s68
    %p75 = scmp.eq.s32.totalorder %s16, 1
    %p76 = por %p74, %p75
    %p77 = scmp.ne.s32.totalorder %s68, %s69
    %p78 = scmp.eq.s32.totalorder %s16, 0
    %p79 = por %p77, %p78
    %p80 = scmp.ne.s32.totalorder %s68, %s69
    %p81 = scmp.eq.s32.totalorder %s17, 1
    %p82 = por %p80, %p81
    %p84 = scmp.ne.s32.totalorder %s69, %s83
    %p85 = scmp.eq.s32.totalorder %s17, 0
    %p86 = por %p84, %p85
    %s88 = sadd.s32 %s87, 1
    %p91 = scmp.eq.s32.totalorder %s11, 1
    %p92 = scmp.ne.s32.totalorder %s87, %s89
    %p93 = scmp.eq.s32.totalorder %s11, 0
    %p94 = por %p92, %p93
    %p95 = scmp.ne.s32.totalorder %s87, %s89
    %p96 = scmp.eq.s32.totalorder %s16, 1
    %p97 = por %p95, %p96
    %p98 = scmp.ne.s32.totalorder %s89, %s90
    %p99 = scmp.eq.s32.totalorder %s16, 0
    %p100 = por %p98, %p99
    %p101 = scmp.ne.s32.totalorder %s89, %s90
    %p102 = scmp.eq.s32.totalorder %s17, 1
    %p103 = por %p101, %p102
    %p105 = scmp.ne.s32.totalorder %s90, %s104
    %p106 = scmp.eq.s32.totalorder %s17, 0
    %p107 = por %p105, %p106
    %s109 = sadd.s32 %s108, 1
    %p112 = scmp.eq.s32.totalorder %s11, 1
    %p113 = scmp.ne.s32.totalorder %s108, %s110
    %p114 = scmp.eq.s32.totalorder %s11, 0
    %p115 = por %p113, %p114
    %p116 = scmp.ne.s32.totalorder %s108, %s110
    %p117 = scmp.eq.s32.totalorder %s16, 1
    %p118 = por %p116, %p117
    %p119 = scmp.ne.s32.totalorder %s110, %s111
    %p120 = scmp.eq.s32.totalorder %s16, 0
    %p121 = por %p119, %p120
    %p122 = scmp.ne.s32.totalorder %s110, %s111
    %p123 = scmp.eq.s32.totalorder %s17, 1
    %p124 = por %p122, %p123
    %p126 = scmp.ne.s32.totalorder %s111, %s125
    %p127 = scmp.eq.s32.totalorder %s17, 0
    %p128 = por %p126, %p127
    %s129 = ssub.s32 %s11, %s18
    %p130 = scmp.eq.s32.totalorder %s129, 0
    %s132 = sadd.s32 %s131, 1
    %s133 = scalar_select %p130, %s131, %s132
    %p136 = pneg %p130
    %p137 = scmp.eq.s32.totalorder %s11, 1
    %p138 = por %p136, %p137
    %p139 = scmp.ne.s32.totalorder %s131, %s134
    %p140 = scmp.eq.s32.totalorder %s11, 0
    %p141 = por %p139, %p140
    %p142 = scmp.ne.s32.totalorder %s131, %s134
    %p143 = scmp.eq.s32.totalorder %s16, 1
    %p144 = por %p142, %p143
    %p145 = scmp.ne.s32.totalorder %s134, %s135
    %p146 = scmp.eq.s32.totalorder %s16, 0
    %p147 = por %p145, %p146
    %p148 = scmp.ne.s32.totalorder %s134, %s135
    %p149 = scmp.eq.s32.totalorder %s17, 1
    %p150 = por %p148, %p149
    %p152 = scmp.ne.s32.totalorder %s135, %s151
    %p153 = scmp.eq.s32.totalorder %s17, 0
    %p154 = por %p152, %p153
    %p155 = scmp.le.s32.totalorder 1, %s11
    %p156 = scmp.lt.s32.totalorder %s11, 3
    %p157 = pnand %p155, %p156
    %p158 = pneg %p157
    // Predicated region
    $region9: #{heatmap_layer_2d.1} parent=5 // pred_check
      _
    $region10: #{heatmap_layer_2d.1} parent=5 // pred_check_branch
      %160 = sbr.rel (%p157) target = $region12
    $region11: #{heatmap_layer_2d.1} parent=5 // pred_region
      %s161 = ssub.s32 %s11, 1
      // Predicated region
      $region13: #{heatmap_layer_2d.1} parent=11 // pred_check
        %p162 = pneg %p58
      $region14: #{heatmap_layer_2d.1} parent=11 // pred_check_branch
        %164 = sbr.rel (%p162) target = $region16
      $region15: #{heatmap_layer_2d.1} parent=11 // pred_region
        _
      $region16: #{heatmap_layer_2d.1} parent=11 // pred_fallthru
        _
      // Predicated region
      $region17: #{heatmap_layer_2d.1} parent=11 // pred_check
        %p165 = pneg %p79
      $region18: #{heatmap_layer_2d.1} parent=11 // pred_check_branch
        %167 = sbr.rel (%p165) target = $region20
      $region19: #{heatmap_layer_2d.1} parent=11 // pred_region
        _
      $region20: #{heatmap_layer_2d.1} parent=11 // pred_fallthru
        _
      // Predicated region
      $region21: #{heatmap_layer_2d.1} parent=11 // pred_check
        %p168 = pneg %p100
      $region22: #{heatmap_layer_2d.1} parent=11 // pred_check_branch
        %170 = sbr.rel (%p168) target = $region24
      $region23: #{heatmap_layer_2d.1} parent=11 // pred_region
        _
      $region24: #{heatmap_layer_2d.1} parent=11 // pred_fallthru
        _
      // Predicated region
      $region25: #{heatmap_layer_2d.1} parent=11 // pred_check
        %p171 = pneg %p121
      $region26: #{heatmap_layer_2d.1} parent=11 // pred_check_branch
        %173 = sbr.rel (%p171) target = $region28
      $region27: #{heatmap_layer_2d.1} parent=11 // pred_region
        _
      $region28: #{heatmap_layer_2d.1} parent=11 // pred_fallthru
        _
    $region12: #{heatmap_layer_2d.1} parent=5 // pred_fallthru
      _
    %p174 = scmp.lt.s32.totalorder %s11, 2
    // Predicated region
    $region29: #{heatmap_layer_2d.1} parent=5 // pred_check
      %p175 = pneg %p174
    $region30: #{heatmap_layer_2d.1} parent=5 // pred_check_branch
      %177 = sbr.rel (%p175) target = $region32
    $region31: #{heatmap_layer_2d.1} parent=5 // pred_region
      // Predicated region
      $region33: #{heatmap_layer_2d.1} parent=31 // pred_check
        %p178 = pneg %p31
      $region34: #{heatmap_layer_2d.1} parent=31 // pred_check_branch
        %180 = sbr.rel (%p178) target = $region36
      $region35: #{heatmap_layer_2d.1} parent=31 // pred_region
        %p181 = scmp.lt.s32.totalorder %s11, 1
        %s182 = scalar_select %p181, %s11, 1
        %s183 = smul.addr %s182, 2
        %s184 = smul.addr %s183, 4
        %s185 = scalar_lea.vmem %s0, %s184
      $region36: #{heatmap_layer_2d.1} parent=31 // pred_fallthru
        _
    $region32: #{heatmap_layer_2d.1} parent=5 // pred_fallthru
      _
    %p186 = scmp.le.s32.totalorder 1, %s11
    %p187 = scmp.lt.s32.totalorder %s11, 3
    %p188 = pnand %p186, %p187
    %p189 = pneg %p188
    // Predicated region
    $region37: #{heatmap_layer_2d.1} parent=5 // pred_check
      _
    $region38: #{heatmap_layer_2d.1} parent=5 // pred_check_branch
      %191 = sbr.rel (%p188) target = $region40
    $region39: #{heatmap_layer_2d.1} parent=5 // pred_region
      %s192 = ssub.s32 %s11, 1
      %p193 = scmp.lt.s32.totalorder %s16, 1
      %s194 = scalar_select %p193, %s16, 1
      %s195 = smul.addr %s194, 2
      %s196 = smul.addr %s195, 4
      %s197 = scalar_lea.vmem %s0, %s196
      %p198 = pneg %p37
      %p199 = pneg %p34
      %p200 = pneg %p58
      %p201 = pneg %p55
      %p202 = pneg %p79
      %p203 = pneg %p76
      %p204 = pneg %p100
      %p205 = pneg %p97
      %p206 = pneg %p121
      %p207 = pneg %p118
      %p208 = pneg %p147
      %p209 = pneg %p144
      %p210 = scmp.lt.s32.totalorder %s16, 1
      %s211 = scalar_select %p210, %s16, 1
      %s212 = smul.addr %s211, 4
      %s213 = smul.addr %s212, 8
      %s214 = scalar_lea.vmem %s5, %s213
      %p215 = scmp.lt.s32.totalorder %s16, 1
      %s216 = scalar_select %p215, %s16, 1
      %s217 = smul.addr %s216, 2
      %s218 = smul.addr %s217, 4
      %s219 = scalar_lea.vmem %s0, %s218
      %p220 = scmp.lt.s32.totalorder %s16, 1
      %s221 = scalar_select %p220, %s16, 1
      %s222 = smul.addr %s221, 4
      %s223 = smul.addr %s222, 8
      %s224 = scalar_lea.vmem %s5, %s223
      %v225 = vld [vmem:[%s219] sm:$0xff]
      %v226 = vlaneseq
      %v227 = vshrl.u32 %v226, 7
      %v228 = vadd.s32 %v227, 8
      %v229 = vadd.s32 %v227, 16
      %v230 = vadd.s32 %v227, 24
      %v231 = vadd.s32 %v227, 32
      %v232 = vadd.s32 %v227, 40
      %v233 = vadd.s32 %v227, 48
      %v234 = vadd.s32 %v227, 56
      %v235 = vadd.s32 %v227, 64
      %v236 = vadd.s32 %v227, 72
      %v237 = vadd.s32 %v227, 80
      %v238 = vadd.s32 %v227, 88
      %v239 = vadd.s32 %v227, 96
      %v240 = vadd.s32 %v227, 104
      %v241 = vadd.s32 %v227, 112
      %v242 = vadd.s32 %v227, 120
      %v243 = vadd.s32 %v227, 128
      %v244 = vadd.s32 %v227, 136
      %v245 = vadd.s32 %v227, 144
      %v246 = vadd.s32 %v227, 152
      %v247 = vadd.s32 %v227, 160
      %v248 = vadd.s32 %v227, 168
      %v249 = vadd.s32 %v227, 176
      %v250 = vadd.s32 %v227, 184
      %v251 = vadd.s32 %v227, 192
      %v252 = vadd.s32 %v227, 200
      %v253 = vadd.s32 %v227, 208
      %v254 = vadd.s32 %v227, 216
      %v255 = vadd.s32 %v227, 224
      %v256 = vadd.s32 %v227, 232
      %v257 = vadd.s32 %v227, 240
      %v258 = vadd.s32 %v227, 248
      %v259 = vlaneseq
      %v260 = vand.u32 %v259, 127
      %v261 = vadd.s32 %v260, 128
      %vm262 = vcmp.lt.s32.totalorder %v260, 0
      %v263 = vsub.s32 0, %v260
      %v264 = vsel %vm262, %v263, %v260
      %v265 = vshrl.u32 %v264, 4
      %v266 = vand.u32 %v264, 15
      %v267 = vsub.s32 0, %v266
      %v268 = vsel %vm262, %v267, %v266
      %vm269 = vcmp.lt.s32.totalorder %v261, 0
      %v270 = vsub.s32 0, %v261
      %v271 = vsel %vm269, %v270, %v261
      %v272 = vshrl.u32 %v271, 4
      %v273 = vand.u32 %v271, 15
      %v274 = vsub.s32 0, %v273
      %v275 = vsel %vm269, %v274, %v273
      %vm276 = vcmp.ne.s32.totalorder %v268, 0
      %vm277 = vcmp.ne.s32.totalorder %v275, 0
      %vm278 = vcmp.lt.s32.totalorder %v268, 0
      %vm279 = vcmp.lt.s32.totalorder %v275, 0
      %vm280 = vmand %vm278, %vm276
      %vm281 = vmand %vm279, %vm277
      %v282 = vadd.s32 %v268, 16
      %v283 = vadd.s32 %v275, 16
      %v284 = vsel %vm280, %v282, %v268
      %v285 = vsel %vm281, %v283, %v275
      %v286 = vadd.s32 %v260, 4294967279
      %v287 = vadd.s32 %v261, 4294967279
      %vm288 = vcmp.eq.s32.totalorder %v227, %v286
      %vm289 = vcmp.eq.s32.totalorder %v227, %v287
      %vm290 = vcmp.eq.s32.totalorder %v228, %v286
      %vm291 = vcmp.eq.s32.totalorder %v228, %v287
      %vm292 = vcmp.eq.s32.totalorder %v229, %v286
      %vm293 = vcmp.eq.s32.totalorder %v229, %v287
      %vm294 = vcmp.eq.s32.totalorder %v230, %v286
      %vm295 = vcmp.eq.s32.totalorder %v230, %v287
      %vm296 = vcmp.eq.s32.totalorder %v231, %v286
      %vm297 = vcmp.eq.s32.totalorder %v231, %v287
      %vm298 = vcmp.eq.s32.totalorder %v232, %v286
      %vm299 = vcmp.eq.s32.totalorder %v232, %v287
      %vm300 = vcmp.eq.s32.totalorder %v233, %v286
      %vm301 = vcmp.eq.s32.totalorder %v233, %v287
      %vm302 = vcmp.eq.s32.totalorder %v234, %v286
      %vm303 = vcmp.eq.s32.totalorder %v234, %v287
      %vm304 = vcmp.eq.s32.totalorder %v235, %v286
      %vm305 = vcmp.eq.s32.totalorder %v235, %v287
      %vm306 = vcmp.eq.s32.totalorder %v236, %v286
      %vm307 = vcmp.eq.s32.totalorder %v236, %v287
      %vm308 = vcmp.eq.s32.totalorder %v237, %v286
      %vm309 = vcmp.eq.s32.totalorder %v237, %v287
      %vm310 = vcmp.eq.s32.totalorder %v238, %v286
      %vm311 = vcmp.eq.s32.totalorder %v238, %v287
      %vm312 = vcmp.eq.s32.totalorder %v239, %v286
      %vm313 = vcmp.eq.s32.totalorder %v239, %v287
      %vm314 = vcmp.eq.s32.totalorder %v240, %v286
      %vm315 = vcmp.eq.s32.totalorder %v240, %v287
      %vm316 = vcmp.eq.s32.totalorder %v241, %v286
      %vm317 = vcmp.eq.s32.totalorder %v241, %v287
      %vm318 = vcmp.eq.s32.totalorder %v242, %v286
      %vm319 = vcmp.eq.s32.totalorder %v242, %v287
      %vm320 = vcmp.eq.s32.totalorder %v243, %v286
      %vm321 = vcmp.eq.s32.totalorder %v243, %v287
      %vm322 = vcmp.eq.s32.totalorder %v244, %v286
      %vm323 = vcmp.eq.s32.totalorder %v244, %v287
      %vm324 = vcmp.eq.s32.totalorder %v245, %v286
      %vm325 = vcmp.eq.s32.totalorder %v245, %v287
      %vm326 = vcmp.eq.s32.totalorder %v246, %v286
      %vm327 = vcmp.eq.s32.totalorder %v246, %v287
      %vm328 = vcmp.eq.s32.totalorder %v247, %v286
      %vm329 = vcmp.eq.s32.totalorder %v247, %v287
      %vm330 = vcmp.eq.s32.totalorder %v248, %v286
      %vm331 = vcmp.eq.s32.totalorder %v248, %v287
      %vm332 = vcmp.eq.s32.totalorder %v249, %v286
      %vm333 = vcmp.eq.s32.totalorder %v249, %v287
      %vm334 = vcmp.eq.s32.totalorder %v250, %v286
      %vm335 = vcmp.eq.s32.totalorder %v250, %v287
      %vm336 = vcmp.eq.s32.totalorder %v251, %v286
      %vm337 = vcmp.eq.s32.totalorder %v251, %v287
      %vm338 = vcmp.eq.s32.totalorder %v252, %v286
      %vm339 = vcmp.eq.s32.totalorder %v252, %v287
      %vm340 = vcmp.eq.s32.totalorder %v253, %v286
      %vm341 = vcmp.eq.s32.totalorder %v253, %v287
      %vm342 = vcmp.eq.s32.totalorder %v254, %v286
      %vm343 = vcmp.eq.s32.totalorder %v254, %v287
      %vm344 = vcmp.eq.s32.totalorder %v255, %v286
      %vm345 = vcmp.eq.s32.totalorder %v255, %v287
      %vm346 = vcmp.eq.s32.totalorder %v256, %v286
      %vm347 = vcmp.eq.s32.totalorder %v256, %v287
      %vm348 = vcmp.eq.s32.totalorder %v257, %v286
      %vm349 = vcmp.eq.s32.totalorder %v257, %v287
      %vm350 = vcmp.eq.s32.totalorder %v258, %v286
      %vm351 = vcmp.eq.s32.totalorder %v258, %v287
      %vm352 = vcmp.ge.s32.totalorder %v284, 1
      %vm353 = vcmp.ge.s32.totalorder %v285, 1
      %v354 = vsel %vm352, 1, 0
      %v355 = vsel %vm353, 1, 0
      %vm356 = vcmp.eq.s32.totalorder %v354, 1
      %vm357 = vcmp.eq.s32.totalorder %v355, 1
      %vm358 = vmand %vm288, %vm356
      %vm359 = vmand %vm289, %vm357
      %vm360 = vmand %vm290, %vm356
      %vm361 = vmand %vm291, %vm357
      %vm362 = vmand %vm292, %vm356
      %vm363 = vmand %vm293, %vm357
      %vm364 = vmand %vm294, %vm356
      %vm365 = vmand %vm295, %vm357
      %vm366 = vmand %vm296, %vm356
      %vm367 = vmand %vm297, %vm357
      %vm368 = vmand %vm298, %vm356
      %vm369 = vmand %vm299, %vm357
      %vm370 = vmand %vm300, %vm356
      %vm371 = vmand %vm301, %vm357
      %vm372 = vmand %vm302, %vm356
      %vm373 = vmand %vm303, %vm357
      %vm374 = vmand %vm304, %vm356
      %vm375 = vmand %vm305, %vm357
      %vm376 = vmand %vm306, %vm356
      %vm377 = vmand %vm307, %vm357
      %vm378 = vmand %vm308, %vm356
      %vm379 = vmand %vm309, %vm357
      %vm380 = vmand %vm310, %vm356
      %vm381 = vmand %vm311, %vm357
      %vm382 = vmand %vm312, %vm356
      %vm383 = vmand %vm313, %vm357
      %vm384 = vmand %vm314, %vm356
      %vm385 = vmand %vm315, %vm357
      %vm386 = vmand %vm316, %vm356
      %vm387 = vmand %vm317, %vm357
      %vm388 = vmand %vm318, %vm356
      %vm389 = vmand %vm319, %vm357
      %vm390 = vmand %vm320, %vm356
      %vm391 = vmand %vm321, %vm357
      %vm392 = vmand %vm322, %vm356
      %vm393 = vmand %vm323, %vm357
      %vm394 = vmand %vm324, %vm356
      %vm395 = vmand %vm325, %vm357
      %vm396 = vmand %vm326, %vm356
      %vm397 = vmand %vm327, %vm357
      %vm398 = vmand %vm328, %vm356
      %vm399 = vmand %vm329, %vm357
      %vm400 = vmand %vm330, %vm356
      %vm401 = vmand %vm331, %vm357
      %vm402 = vmand %vm332, %vm356
      %vm403 = vmand %vm333, %vm357
      %vm404 = vmand %vm334, %vm356
      %vm405 = vmand %vm335, %vm357
      %vm406 = vmand %vm336, %vm356
      %vm407 = vmand %vm337, %vm357
      %vm408 = vmand %vm338, %vm356
      %vm409 = vmand %vm339, %vm357
      %vm410 = vmand %vm340, %vm356
      %vm411 = vmand %vm341, %vm357
      %vm412 = vmand %vm342, %vm356
      %vm413 = vmand %vm343, %vm357
      %vm414 = vmand %vm344, %vm356
      %vm415 = vmand %vm345, %vm357
      %vm416 = vmand %vm346, %vm356
      %vm417 = vmand %vm347, %vm357
      %vm418 = vmand %vm348, %vm356
      %vm419 = vmand %vm349, %vm357
      %vm420 = vmand %vm350, %vm356
      %vm421 = vmand %vm351, %vm357
      %v422 = vsel %vm358, 1, 0
      %v423 = vsel %vm359, 1, 0
      %v424 = vsel %vm360, 1, 0
      %v425 = vsel %vm361, 1, 0
      %v426 = vsel %vm362, 1, 0
      %v427 = vsel %vm363, 1, 0
      %v428 = vsel %vm364, 1, 0
      %v429 = vsel %vm365, 1, 0
      %v430 = vsel %vm366, 1, 0
      %v431 = vsel %vm367, 1, 0
      %v432 = vsel %vm368, 1, 0
      %v433 = vsel %vm369, 1, 0
      %v434 = vsel %vm370, 1, 0
      %v435 = vsel %vm371, 1, 0
      %v436 = vsel %vm372, 1, 0
      %v437 = vsel %vm373, 1, 0
      %v438 = vsel %vm374, 1, 0
      %v439 = vsel %vm375, 1, 0
      %v440 = vsel %vm376, 1, 0
      %v441 = vsel %vm377, 1, 0
      %v442 = vsel %vm378, 1, 0
      %v443 = vsel %vm379, 1, 0
      %v444 = vsel %vm380, 1, 0
      %v445 = vsel %vm381, 1, 0
      %v446 = vsel %vm382, 1, 0
      %v447 = vsel %vm383, 1, 0
      %v448 = vsel %vm384, 1, 0
      %v449 = vsel %vm385, 1, 0
      %v450 = vsel %vm386, 1, 0
      %v451 = vsel %vm387, 1, 0
      %v452 = vsel %vm388, 1, 0
      %v453 = vsel %vm389, 1, 0
      %v454 = vsel %vm390, 1, 0
      %v455 = vsel %vm391, 1, 0
      %v456 = vsel %vm392, 1, 0
      %v457 = vsel %vm393, 1, 0
      %v458 = vsel %vm394, 1, 0
      %v459 = vsel %vm395, 1, 0
      %v460 = vsel %vm396, 1, 0
      %v461 = vsel %vm397, 1, 0
      %v462 = vsel %vm398, 1, 0
      %v463 = vsel %vm399, 1, 0
      %v464 = vsel %vm400, 1, 0
      %v465 = vsel %vm401, 1, 0
      %v466 = vsel %vm402, 1, 0
      %v467 = vsel %vm403, 1, 0
      %v468 = vsel %vm404, 1, 0
      %v469 = vsel %vm405, 1, 0
      %v470 = vsel %vm406, 1, 0
      %v471 = vsel %vm407, 1, 0
      %v472 = vsel %vm408, 1, 0
      %v473 = vsel %vm409, 1, 0
      %v474 = vsel %vm410, 1, 0
      %v475 = vsel %vm411, 1, 0
      %v476 = vsel %vm412, 1, 0
      %v477 = vsel %vm413, 1, 0
      %v478 = vsel %vm414, 1, 0
      %v479 = vsel %vm415, 1, 0
      %v480 = vsel %vm416, 1, 0
      %v481 = vsel %vm417, 1, 0
      %v482 = vsel %vm418, 1, 0
      %v483 = vsel %vm419, 1, 0
      %v484 = vsel %vm420, 1, 0
      %v485 = vsel %vm421, 1, 0
      %v486 = vcvt.s32.f32 %v422
      %v487 = vcvt.s32.f32 %v423
      %v488 = vcvt.s32.f32 %v424
      %v489 = vcvt.s32.f32 %v425
      %v490 = vcvt.s32.f32 %v426
      %v491 = vcvt.s32.f32 %v427
      %v492 = vcvt.s32.f32 %v428
      %v493 = vcvt.s32.f32 %v429
      %v494 = vcvt.s32.f32 %v430
      %v495 = vcvt.s32.f32 %v431
      %v496 = vcvt.s32.f32 %v432
      %v497 = vcvt.s32.f32 %v433
      %v498 = vcvt.s32.f32 %v434
      %v499 = vcvt.s32.f32 %v435
      %v500 = vcvt.s32.f32 %v436
      %v501 = vcvt.s32.f32 %v437
      %v502 = vcvt.s32.f32 %v438
      %v503 = vcvt.s32.f32 %v439
      %v504 = vcvt.s32.f32 %v440
      %v505 = vcvt.s32.f32 %v441
      %v506 = vcvt.s32.f32 %v442
      %v507 = vcvt.s32.f32 %v443
      %v508 = vcvt.s32.f32 %v444
      %v509 = vcvt.s32.f32 %v445
      %v510 = vcvt.s32.f32 %v446
      %v511 = vcvt.s32.f32 %v447
      %v512 = vcvt.s32.f32 %v448
      %v513 = vcvt.s32.f32 %v449
      %v514 = vcvt.s32.f32 %v450
      %v515 = vcvt.s32.f32 %v451
      %v516 = vcvt.s32.f32 %v452
      %v517 = vcvt.s32.f32 %v453
      %v518 = vcvt.s32.f32 %v454
      %v519 = vcvt.s32.f32 %v455
      %v520 = vcvt.s32.f32 %v456
      %v521 = vcvt.s32.f32 %v457
      %v522 = vcvt.s32.f32 %v458
      %v523 = vcvt.s32.f32 %v459
      %v524 = vcvt.s32.f32 %v460
      %v525 = vcvt.s32.f32 %v461
      %v526 = vcvt.s32.f32 %v462
      %v527 = vcvt.s32.f32 %v463
      %v528 = vcvt.s32.f32 %v464
      %v529 = vcvt.s32.f32 %v465
      %v530 = vcvt.s32.f32 %v466
      %v531 = vcvt.s32.f32 %v467
      %v532 = vcvt.s32.f32 %v468
      %v533 = vcvt.s32.f32 %v469
      %v534 = vcvt.s32.f32 %v470
      %v535 = vcvt.s32.f32 %v471
      %v536 = vcvt.s32.f32 %v472
      %v537 = vcvt.s32.f32 %v473
      %v538 = vcvt.s32.f32 %v474
      %v539 = vcvt.s32.f32 %v475
      %v540 = vcvt.s32.f32 %v476
      %v541 = vcvt.s32.f32 %v477
      %v542 = vcvt.s32.f32 %v478
      %v543 = vcvt.s32.f32 %v479
      %v544 = vcvt.s32.f32 %v480
      %v545 = vcvt.s32.f32 %v481
      %v546 = vcvt.s32.f32 %v482
      %v547 = vcvt.s32.f32 %v483
      %v548 = vcvt.s32.f32 %v484
      %v549 = vcvt.s32.f32 %v485
      %v550 = vadd.s32 %v260, 4294967280
      %v551 = vadd.s32 %v261, 4294967280
      %vm552 = vcmp.eq.s32.totalorder %v227, %v550
      %vm553 = vcmp.eq.s32.totalorder %v227, %v551
      %vm554 = vcmp.eq.s32.totalorder %v228, %v550
      %vm555 = vcmp.eq.s32.totalorder %v228, %v551
      %vm556 = vcmp.eq.s32.totalorder %v229, %v550
      %vm557 = vcmp.eq.s32.totalorder %v229, %v551
      %vm558 = vcmp.eq.s32.totalorder %v230, %v550
      %vm559 = vcmp.eq.s32.totalorder %v230, %v551
      %vm560 = vcmp.eq.s32.totalorder %v231, %v550
      %vm561 = vcmp.eq.s32.totalorder %v231, %v551
      %vm562 = vcmp.eq.s32.totalorder %v232, %v550
      %vm563 = vcmp.eq.s32.totalorder %v232, %v551
      %vm564 = vcmp.eq.s32.totalorder %v233, %v550
      %vm565 = vcmp.eq.s32.totalorder %v233, %v551
      %vm566 = vcmp.eq.s32.totalorder %v234, %v550
      %vm567 = vcmp.eq.s32.totalorder %v234, %v551
      %vm568 = vcmp.eq.s32.totalorder %v235, %v550
      %vm569 = vcmp.eq.s32.totalorder %v235, %v551
      %vm570 = vcmp.eq.s32.totalorder %v236, %v550
      %vm571 = vcmp.eq.s32.totalorder %v236, %v551
      %vm572 = vcmp.eq.s32.totalorder %v237, %v550
      %vm573 = vcmp.eq.s32.totalorder %v237, %v551
      %vm574 = vcmp.eq.s32.totalorder %v238, %v550
      %vm575 = vcmp.eq.s32.totalorder %v238, %v551
      %vm576 = vcmp.eq.s32.totalorder %v239, %v550
      %vm577 = vcmp.eq.s32.totalorder %v239, %v551
      %vm578 = vcmp.eq.s32.totalorder %v240, %v550
      %vm579 = vcmp.eq.s32.totalorder %v240, %v551
      %vm580 = vcmp.eq.s32.totalorder %v241, %v550
      %vm581 = vcmp.eq.s32.totalorder %v241, %v551
      %vm582 = vcmp.eq.s32.totalorder %v242, %v550
      %vm583 = vcmp.eq.s32.totalorder %v242, %v551
      %vm584 = vcmp.eq.s32.totalorder %v243, %v550
      %vm585 = vcmp.eq.s32.totalorder %v243, %v551
      %vm586 = vcmp.eq.s32.totalorder %v244, %v550
      %vm587 = vcmp.eq.s32.totalorder %v244, %v551
      %vm588 = vcmp.eq.s32.totalorder %v245, %v550
      %vm589 = vcmp.eq.s32.totalorder %v245, %v551
      %vm590 = vcmp.eq.s32.totalorder %v246, %v550
      %vm591 = vcmp.eq.s32.totalorder %v246, %v551
      %vm592 = vcmp.eq.s32.totalorder %v247, %v550
      %vm593 = vcmp.eq.s32.totalorder %v247, %v551
      %vm594 = vcmp.eq.s32.totalorder %v248, %v550
      %vm595 = vcmp.eq.s32.totalorder %v248, %v551
      %vm596 = vcmp.eq.s32.totalorder %v249, %v550
      %vm597 = vcmp.eq.s32.totalorder %v249, %v551
      %vm598 = vcmp.eq.s32.totalorder %v250, %v550
      %vm599 = vcmp.eq.s32.totalorder %v250, %v551
      %vm600 = vcmp.eq.s32.totalorder %v251, %v550
      %vm601 = vcmp.eq.s32.totalorder %v251, %v551
      %vm602 = vcmp.eq.s32.totalorder %v252, %v550
      %vm603 = vcmp.eq.s32.totalorder %v252, %v551
      %vm604 = vcmp.eq.s32.totalorder %v253, %v550
      %vm605 = vcmp.eq.s32.totalorder %v253, %v551
      %vm606 = vcmp.eq.s32.totalorder %v254, %v550
      %vm607 = vcmp.eq.s32.totalorder %v254, %v551
      %vm608 = vcmp.eq.s32.totalorder %v255, %v550
      %vm609 = vcmp.eq.s32.totalorder %v255, %v551
      %vm610 = vcmp.eq.s32.totalorder %v256, %v550
      %vm611 = vcmp.eq.s32.totalorder %v256, %v551
      %vm612 = vcmp.eq.s32.totalorder %v257, %v550
      %vm613 = vcmp.eq.s32.totalorder %v257, %v551
      %vm614 = vcmp.eq.s32.totalorder %v258, %v550
      %vm615 = vcmp.eq.s32.totalorder %v258, %v551
      %v616 = vsel %vm552, 1, 0
      %v617 = vsel %vm553, 1, 0
      %v618 = vsel %vm554, 1, 0
      %v619 = vsel %vm555, 1, 0
      %v620 = vsel %vm556, 1, 0
      %v621 = vsel %vm557, 1, 0
      %v622 = vsel %vm558, 1, 0
      %v623 = vsel %vm559, 1, 0
      %v624 = vsel %vm560, 1, 0
      %v625 = vsel %vm561, 1, 0
      %v626 = vsel %vm562, 1, 0
      %v627 = vsel %vm563, 1, 0
      %v628 = vsel %vm564, 1, 0
      %v629 = vsel %vm565, 1, 0
      %v630 = vsel %vm566, 1, 0
      %v631 = vsel %vm567, 1, 0
      %v632 = vsel %vm568, 1, 0
      %v633 = vsel %vm569, 1, 0
      %v634 = vsel %vm570, 1, 0
      %v635 = vsel %vm571, 1, 0
      %v636 = vsel %vm572, 1, 0
      %v637 = vsel %vm573, 1, 0
      %v638 = vsel %vm574, 1, 0
      %v639 = vsel %vm575, 1, 0
      %v640 = vsel %vm576, 1, 0
      %v641 = vsel %vm577, 1, 0
      %v642 = vsel %vm578, 1, 0
      %v643 = vsel %vm579, 1, 0
      %v644 = vsel %vm580, 1, 0
      %v645 = vsel %vm581, 1, 0
      %v646 = vsel %vm582, 1, 0
      %v647 = vsel %vm583, 1, 0
      %v648 = vsel %vm584, 1, 0
      %v649 = vsel %vm585, 1, 0
      %v650 = vsel %vm586, 1, 0
      %v651 = vsel %vm587, 1, 0
      %v652 = vsel %vm588, 1, 0
      %v653 = vsel %vm589, 1, 0
      %v654 = vsel %vm590, 1, 0
      %v655 = vsel %vm591, 1, 0
      %v656 = vsel %vm592, 1, 0
      %v657 = vsel %vm593, 1, 0
      %v658 = vsel %vm594, 1, 0
      %v659 = vsel %vm595, 1, 0
      %v660 = vsel %vm596, 1, 0
      %v661 = vsel %vm597, 1, 0
      %v662 = vsel %vm598, 1, 0
      %v663 = vsel %vm599, 1, 0
      %v664 = vsel %vm600, 1, 0
      %v665 = vsel %vm601, 1, 0
      %v666 = vsel %vm602, 1, 0
      %v667 = vsel %vm603, 1, 0
      %v668 = vsel %vm604, 1, 0
      %v669 = vsel %vm605, 1, 0
      %v670 = vsel %vm606, 1, 0
      %v671 = vsel %vm607, 1, 0
      %v672 = vsel %vm608, 1, 0
      %v673 = vsel %vm609, 1, 0
      %v674 = vsel %vm610, 1, 0
      %v675 = vsel %vm611, 1, 0
      %v676 = vsel %vm612, 1, 0
      %v677 = vsel %vm613, 1, 0
      %v678 = vsel %vm614, 1, 0
      %v679 = vsel %vm615, 1, 0
      %v680 = vcvt.s32.f32 %v616
      %v681 = vcvt.s32.f32 %v617
      %v682 = vcvt.s32.f32 %v618
      %v683 = vcvt.s32.f32 %v619
      %v684 = vcvt.s32.f32 %v620
      %v685 = vcvt.s32.f32 %v621
      %v686 = vcvt.s32.f32 %v622
      %v687 = vcvt.s32.f32 %v623
      %v688 = vcvt.s32.f32 %v624
      %v689 = vcvt.s32.f32 %v625
      %v690 = vcvt.s32.f32 %v626
      %v691 = vcvt.s32.f32 %v627
      %v692 = vcvt.s32.f32 %v628
      %v693 = vcvt.s32.f32 %v629
      %v694 = vcvt.s32.f32 %v630
      %v695 = vcvt.s32.f32 %v631
      %v696 = vcvt.s32.f32 %v632
      %v697 = vcvt.s32.f32 %v633
      %v698 = vcvt.s32.f32 %v634
      %v699 = vcvt.s32.f32 %v635
      %v700 = vcvt.s32.f32 %v636
      %v701 = vcvt.s32.f32 %v637
      %v702 = vcvt.s32.f32 %v638
      %v703 = vcvt.s32.f32 %v639
      %v704 = vcvt.s32.f32 %v640
      %v705 = vcvt.s32.f32 %v641
      %v706 = vcvt.s32.f32 %v642
      %v707 = vcvt.s32.f32 %v643
      %v708 = vcvt.s32.f32 %v644
      %v709 = vcvt.s32.f32 %v645
      %v710 = vcvt.s32.f32 %v646
      %v711 = vcvt.s32.f32 %v647
      %v712 = vcvt.s32.f32 %v648
      %v713 = vcvt.s32.f32 %v649
      %v714 = vcvt.s32.f32 %v650
      %v715 = vcvt.s32.f32 %v651
      %v716 = vcvt.s32.f32 %v652
      %v717 = vcvt.s32.f32 %v653
      %v718 = vcvt.s32.f32 %v654
      %v719 = vcvt.s32.f32 %v655
      %v720 = vcvt.s32.f32 %v656
      %v721 = vcvt.s32.f32 %v657
      %v722 = vcvt.s32.f32 %v658
      %v723 = vcvt.s32.f32 %v659
      %v724 = vcvt.s32.f32 %v660
      %v725 = vcvt.s32.f32 %v661
      %v726 = vcvt.s32.f32 %v662
      %v727 = vcvt.s32.f32 %v663
      %v728 = vcvt.s32.f32 %v664
      %v729 = vcvt.s32.f32 %v665
      %v730 = vcvt.s32.f32 %v666
      %v731 = vcvt.s32.f32 %v667
      %v732 = vcvt.s32.f32 %v668
      %v733 = vcvt.s32.f32 %v669
      %v734 = vcvt.s32.f32 %v670
      %v735 = vcvt.s32.f32 %v671
      %v736 = vcvt.s32.f32 %v672
      %v737 = vcvt.s32.f32 %v673
      %v738 = vcvt.s32.f32 %v674
      %v739 = vcvt.s32.f32 %v675
      %v740 = vcvt.s32.f32 %v676
      %v741 = vcvt.s32.f32 %v677
      %v742 = vcvt.s32.f32 %v678
      %v743 = vcvt.s32.f32 %v679
      %v744 = vadd.s32 %v260, 4294967281
      %v745 = vadd.s32 %v261, 4294967281
      %vm746 = vcmp.eq.s32.totalorder %v227, %v744
      %vm747 = vcmp.eq.s32.totalorder %v227, %v745
      %vm748 = vcmp.eq.s32.totalorder %v228, %v744
      %vm749 = vcmp.eq.s32.totalorder %v228, %v745
      %vm750 = vcmp.eq.s32.totalorder %v229, %v744
      %vm751 = vcmp.eq.s32.totalorder %v229, %v745
      %vm752 = vcmp.eq.s32.totalorder %v230, %v744
      %vm753 = vcmp.eq.s32.totalorder %v230, %v745
      %vm754 = vcmp.eq.s32.totalorder %v231, %v744
      %vm755 = vcmp.eq.s32.totalorder %v231, %v745
      %vm756 = vcmp.eq.s32.totalorder %v232, %v744
      %vm757 = vcmp.eq.s32.totalorder %v232, %v745
      %vm758 = vcmp.eq.s32.totalorder %v233, %v744
      %vm759 = vcmp.eq.s32.totalorder %v233, %v745
      %vm760 = vcmp.eq.s32.totalorder %v234, %v744
      %vm761 = vcmp.eq.s32.totalorder %v234, %v745
      %vm762 = vcmp.eq.s32.totalorder %v235, %v744
      %vm763 = vcmp.eq.s32.totalorder %v235, %v745
      %vm764 = vcmp.eq.s32.totalorder %v236, %v744
      %vm765 = vcmp.eq.s32.totalorder %v236, %v745
      %vm766 = vcmp.eq.s32.totalorder %v237, %v744
      %vm767 = vcmp.eq.s32.totalorder %v237, %v745
      %vm768 = vcmp.eq.s32.totalorder %v238, %v744
      %vm769 = vcmp.eq.s32.totalorder %v238, %v745
      %vm770 = vcmp.eq.s32.totalorder %v239, %v744
      %vm771 = vcmp.eq.s32.totalorder %v239, %v745
      %vm772 = vcmp.eq.s32.totalorder %v240, %v744
      %vm773 = vcmp.eq.s32.totalorder %v240, %v745
      %vm774 = vcmp.eq.s32.totalorder %v241, %v744
      %vm775 = vcmp.eq.s32.totalorder %v241, %v745
      %vm776 = vcmp.eq.s32.totalorder %v242, %v744
      %vm777 = vcmp.eq.s32.totalorder %v242, %v745
      %vm778 = vcmp.eq.s32.totalorder %v243, %v744
      %vm779 = vcmp.eq.s32.totalorder %v243, %v745
      %vm780 = vcmp.eq.s32.totalorder %v244, %v744
      %vm781 = vcmp.eq.s32.totalorder %v244, %v745
      %vm782 = vcmp.eq.s32.totalorder %v245, %v744
      %vm783 = vcmp.eq.s32.totalorder %v245, %v745
      %vm784 = vcmp.eq.s32.totalorder %v246, %v744
      %vm785 = vcmp.eq.s32.totalorder %v246, %v745
      %vm786 = vcmp.eq.s32.totalorder %v247, %v744
      %vm787 = vcmp.eq.s32.totalorder %v247, %v745
      %vm788 = vcmp.eq.s32.totalorder %v248, %v744
      %vm789 = vcmp.eq.s32.totalorder %v248, %v745
      %vm790 = vcmp.eq.s32.totalorder %v249, %v744
      %vm791 = vcmp.eq.s32.totalorder %v249, %v745
      %vm792 = vcmp.eq.s32.totalorder %v250, %v744
      %vm793 = vcmp.eq.s32.totalorder %v250, %v745
      %vm794 = vcmp.eq.s32.totalorder %v251, %v744
      %vm795 = vcmp.eq.s32.totalorder %v251, %v745
      %vm796 = vcmp.eq.s32.totalorder %v252, %v744
      %vm797 = vcmp.eq.s32.totalorder %v252, %v745
      %vm798 = vcmp.eq.s32.totalorder %v253, %v744
      %vm799 = vcmp.eq.s32.totalorder %v253, %v745
      %vm800 = vcmp.eq.s32.totalorder %v254, %v744
      %vm801 = vcmp.eq.s32.totalorder %v254, %v745
      %vm802 = vcmp.eq.s32.totalorder %v255, %v744
      %vm803 = vcmp.eq.s32.totalorder %v255, %v745
      %vm804 = vcmp.eq.s32.totalorder %v256, %v744
      %vm805 = vcmp.eq.s32.totalorder %v256, %v745
      %vm806 = vcmp.eq.s32.totalorder %v257, %v744
      %vm807 = vcmp.eq.s32.totalorder %v257, %v745
      %vm808 = vcmp.eq.s32.totalorder %v258, %v744
      %vm809 = vcmp.eq.s32.totalorder %v258, %v745
      %vm810 = vcmp.lt.s32.totalorder %v284, 15
      %vm811 = vcmp.lt.s32.totalorder %v285, 15
      %v812 = vsel %vm810, 1, 0
      %v813 = vsel %vm811, 1, 0
      %vm814 = vcmp.eq.s32.totalorder %v812, 1
      %vm815 = vcmp.eq.s32.totalorder %v813, 1
      %vm816 = vmand %vm746, %vm814
      %vm817 = vmand %vm747, %vm815
      %vm818 = vmand %vm748, %vm814
      %vm819 = vmand %vm749, %vm815
      %vm820 = vmand %vm750, %vm814
      %vm821 = vmand %vm751, %vm815
      %vm822 = vmand %vm752, %vm814
      %vm823 = vmand %vm753, %vm815
      %vm824 = vmand %vm754, %vm814
      %vm825 = vmand %vm755, %vm815
      %vm826 = vmand %vm756, %vm814
      %vm827 = vmand %vm757, %vm815
      %vm828 = vmand %vm758, %vm814
      %vm829 = vmand %vm759, %vm815
      %vm830 = vmand %vm760, %vm814
      %vm831 = vmand %vm761, %vm815
      %vm832 = vmand %vm762, %vm814
      %vm833 = vmand %vm763, %vm815
      %vm834 = vmand %vm764, %vm814
      %vm835 = vmand %vm765, %vm815
      %vm836 = vmand %vm766, %vm814
      %vm837 = vmand %vm767, %vm815
      %vm838 = vmand %vm768, %vm814
      %vm839 = vmand %vm769, %vm815
      %vm840 = vmand %vm770, %vm814
      %vm841 = vmand %vm771, %vm815
      %vm842 = vmand %vm772, %vm814
      %vm843 = vmand %vm773, %vm815
      %vm844 = vmand %vm774, %vm814
      %vm845 = vmand %vm775, %vm815
      %vm846 = vmand %vm776, %vm814
      %vm847 = vmand %vm777, %vm815
      %vm848 = vmand %vm778, %vm814
      %vm849 = vmand %vm779, %vm815
      %vm850 = vmand %vm780, %vm814
      %vm851 = vmand %vm781, %vm815
      %vm852 = vmand %vm782, %vm814
      %vm853 = vmand %vm783, %vm815
      %vm854 = vmand %vm784, %vm814
      %vm855 = vmand %vm785, %vm815
      %vm856 = vmand %vm786, %vm814
      %vm857 = vmand %vm787, %vm815
      %vm858 = vmand %vm788, %vm814
      %vm859 = vmand %vm789, %vm815
      %vm860 = vmand %vm790, %vm814
      %vm861 = vmand %vm791, %vm815
      %vm862 = vmand %vm792, %vm814
      %vm863 = vmand %vm793, %vm815
      %vm864 = vmand %vm794, %vm814
      %vm865 = vmand %vm795, %vm815
      %vm866 = vmand %vm796, %vm814
      %vm867 = vmand %vm797, %vm815
      %vm868 = vmand %vm798, %vm814
      %vm869 = vmand %vm799, %vm815
      %vm870 = vmand %vm800, %vm814
      %vm871 = vmand %vm801, %vm815
      %vm872 = vmand %vm802, %vm814
      %vm873 = vmand %vm803, %vm815
      %vm874 = vmand %vm804, %vm814
      %vm875 = vmand %vm805, %vm815
      %vm876 = vmand %vm806, %vm814
      %vm877 = vmand %vm807, %vm815
      %vm878 = vmand %vm808, %vm814
      %vm879 = vmand %vm809, %vm815
      %v880 = vsel %vm816, 1, 0
      %v881 = vsel %vm817, 1, 0
      %v882 = vsel %vm818, 1, 0
      %v883 = vsel %vm819, 1, 0
      %v884 = vsel %vm820, 1, 0
      %v885 = vsel %vm821, 1, 0
      %v886 = vsel %vm822, 1, 0
      %v887 = vsel %vm823, 1, 0
      %v888 = vsel %vm824, 1, 0
      %v889 = vsel %vm825, 1, 0
      %v890 = vsel %vm826, 1, 0
      %v891 = vsel %vm827, 1, 0
      %v892 = vsel %vm828, 1, 0
      %v893 = vsel %vm829, 1, 0
      %v894 = vsel %vm830, 1, 0
      %v895 = vsel %vm831, 1, 0
      %v896 = vsel %vm832, 1, 0
      %v897 = vsel %vm833, 1, 0
      %v898 = vsel %vm834, 1, 0
      %v899 = vsel %vm835, 1, 0
      %v900 = vsel %vm836, 1, 0
      %v901 = vsel %vm837, 1, 0
      %v902 = vsel %vm838, 1, 0
      %v903 = vsel %vm839, 1, 0
      %v904 = vsel %vm840, 1, 0
      %v905 = vsel %vm841, 1, 0
      %v906 = vsel %vm842, 1, 0
      %v907 = vsel %vm843, 1, 0
      %v908 = vsel %vm844, 1, 0
      %v909 = vsel %vm845, 1, 0
      %v910 = vsel %vm846, 1, 0
      %v911 = vsel %vm847, 1, 0
      %v912 = vsel %vm848, 1, 0
      %v913 = vsel %vm849, 1, 0
      %v914 = vsel %vm850, 1, 0
      %v915 = vsel %vm851, 1, 0
      %v916 = vsel %vm852, 1, 0
      %v917 = vsel %vm853, 1, 0
      %v918 = vsel %vm854, 1, 0
      %v919 = vsel %vm855, 1, 0
      %v920 = vsel %vm856, 1, 0
      %v921 = vsel %vm857, 1, 0
      %v922 = vsel %vm858, 1, 0
      %v923 = vsel %vm859, 1, 0
      %v924 = vsel %vm860, 1, 0
      %v925 = vsel %vm861, 1, 0
      %v926 = vsel %vm862, 1, 0
      %v927 = vsel %vm863, 1, 0
      %v928 = vsel %vm864, 1, 0
      %v929 = vsel %vm865, 1, 0
      %v930 = vsel %vm866, 1, 0
      %v931 = vsel %vm867, 1, 0
      %v932 = vsel %vm868, 1, 0
      %v933 = vsel %vm869, 1, 0
      %v934 = vsel %vm870, 1, 0
      %v935 = vsel %vm871, 1, 0
      %v936 = vsel %vm872, 1, 0
      %v937 = vsel %vm873, 1, 0
      %v938 = vsel %vm874, 1, 0
      %v939 = vsel %vm875, 1, 0
      %v940 = vsel %vm876, 1, 0
      %v941 = vsel %vm877, 1, 0
      %v942 = vsel %vm878, 1, 0
      %v943 = vsel %vm879, 1, 0
      %v944 = vcvt.s32.f32 %v880
      %v945 = vcvt.s32.f32 %v881
      %v946 = vcvt.s32.f32 %v882
      %v947 = vcvt.s32.f32 %v883
      %v948 = vcvt.s32.f32 %v884
      %v949 = vcvt.s32.f32 %v885
      %v950 = vcvt.s32.f32 %v886
      %v951 = vcvt.s32.f32 %v887
      %v952 = vcvt.s32.f32 %v888
      %v953 = vcvt.s32.f32 %v889
      %v954 = vcvt.s32.f32 %v890
      %v955 = vcvt.s32.f32 %v891
      %v956 = vcvt.s32.f32 %v892
      %v957 = vcvt.s32.f32 %v893
      %v958 = vcvt.s32.f32 %v894
      %v959 = vcvt.s32.f32 %v895
      %v960 = vcvt.s32.f32 %v896
      %v961 = vcvt.s32.f32 %v897
      %v962 = vcvt.s32.f32 %v898
      %v963 = vcvt.s32.f32 %v899
      %v964 = vcvt.s32.f32 %v900
      %v965 = vcvt.s32.f32 %v901
      %v966 = vcvt.s32.f32 %v902
      %v967 = vcvt.s32.f32 %v903
      %v968 = vcvt.s32.f32 %v904
      %v969 = vcvt.s32.f32 %v905
      %v970 = vcvt.s32.f32 %v906
      %v971 = vcvt.s32.f32 %v907
      %v972 = vcvt.s32.f32 %v908
      %v973 = vcvt.s32.f32 %v909
      %v974 = vcvt.s32.f32 %v910
      %v975 = vcvt.s32.f32 %v911
      %v976 = vcvt.s32.f32 %v912
      %v977 = vcvt.s32.f32 %v913
      %v978 = vcvt.s32.f32 %v914
      %v979 = vcvt.s32.f32 %v915
      %v980 = vcvt.s32.f32 %v916
      %v981 = vcvt.s32.f32 %v917
      %v982 = vcvt.s32.f32 %v918
      %v983 = vcvt.s32.f32 %v919
      %v984 = vcvt.s32.f32 %v920
      %v985 = vcvt.s32.f32 %v921
      %v986 = vcvt.s32.f32 %v922
      %v987 = vcvt.s32.f32 %v923
      %v988 = vcvt.s32.f32 %v924
      %v989 = vcvt.s32.f32 %v925
      %v990 = vcvt.s32.f32 %v926
      %v991 = vcvt.s32.f32 %v927
      %v992 = vcvt.s32.f32 %v928
      %v993 = vcvt.s32.f32 %v929
      %v994 = vcvt.s32.f32 %v930
      %v995 = vcvt.s32.f32 %v931
      %v996 = vcvt.s32.f32 %v932
      %v997 = vcvt.s32.f32 %v933
      %v998 = vcvt.s32.f32 %v934
      %v999 = vcvt.s32.f32 %v935
      %v1000 = vcvt.s32.f32 %v936
      %v1001 = vcvt.s32.f32 %v937
      %v1002 = vcvt.s32.f32 %v938
      %v1003 = vcvt.s32.f32 %v939
      %v1004 = vcvt.s32.f32 %v940
      %v1005 = vcvt.s32.f32 %v941
      %v1006 = vcvt.s32.f32 %v942
      %v1007 = vcvt.s32.f32 %v943
      %v1008 = vadd.s32 %v260, 4294967295
      %v1009 = vadd.s32 %v261, 4294967295
      %vm1010 = vcmp.eq.s32.totalorder %v227, %v1008
      %vm1011 = vcmp.eq.s32.totalorder %v227, %v1009
      %vm1012 = vcmp.eq.s32.totalorder %v228, %v1008
      %vm1013 = vcmp.eq.s32.totalorder %v228, %v1009
      %vm1014 = vcmp.eq.s32.totalorder %v229, %v1008
      %vm1015 = vcmp.eq.s32.totalorder %v229, %v1009
      %vm1016 = vcmp.eq.s32.totalorder %v230, %v1008
      %vm1017 = vcmp.eq.s32.totalorder %v230, %v1009
      %vm1018 = vcmp.eq.s32.totalorder %v231, %v1008
      %vm1019 = vcmp.eq.s32.totalorder %v231, %v1009
      %vm1020 = vcmp.eq.s32.totalorder %v232, %v1008
      %vm1021 = vcmp.eq.s32.totalorder %v232, %v1009
      %vm1022 = vcmp.eq.s32.totalorder %v233, %v1008
      %vm1023 = vcmp.eq.s32.totalorder %v233, %v1009
      %vm1024 = vcmp.eq.s32.totalorder %v234, %v1008
      %vm1025 = vcmp.eq.s32.totalorder %v234, %v1009
      %vm1026 = vcmp.eq.s32.totalorder %v235, %v1008
      %vm1027 = vcmp.eq.s32.totalorder %v235, %v1009
      %vm1028 = vcmp.eq.s32.totalorder %v236, %v1008
      %vm1029 = vcmp.eq.s32.totalorder %v236, %v1009
      %vm1030 = vcmp.eq.s32.totalorder %v237, %v1008
      %vm1031 = vcmp.eq.s32.totalorder %v237, %v1009
      %vm1032 = vcmp.eq.s32.totalorder %v238, %v1008
      %vm1033 = vcmp.eq.s32.totalorder %v238, %v1009
      %vm1034 = vcmp.eq.s32.totalorder %v239, %v1008
      %vm1035 = vcmp.eq.s32.totalorder %v239, %v1009
      %vm1036 = vcmp.eq.s32.totalorder %v240, %v1008
      %vm1037 = vcmp.eq.s32.totalorder %v240, %v1009
      %vm1038 = vcmp.eq.s32.totalorder %v241, %v1008
      %vm1039 = vcmp.eq.s32.totalorder %v241, %v1009
      %vm1040 = vcmp.eq.s32.totalorder %v242, %v1008
      %vm1041 = vcmp.eq.s32.totalorder %v242, %v1009
      %vm1042 = vcmp.eq.s32.totalorder %v243, %v1008
      %vm1043 = vcmp.eq.s32.totalorder %v243, %v1009
      %vm1044 = vcmp.eq.s32.totalorder %v244, %v1008
      %vm1045 = vcmp.eq.s32.totalorder %v244, %v1009
      %vm1046 = vcmp.eq.s32.totalorder %v245, %v1008
      %vm1047 = vcmp.eq.s32.totalorder %v245, %v1009
      %vm1048 = vcmp.eq.s32.totalorder %v246, %v1008
      %vm1049 = vcmp.eq.s32.totalorder %v246, %v1009
      %vm1050 = vcmp.eq.s32.totalorder %v247, %v1008
      %vm1051 = vcmp.eq.s32.totalorder %v247, %v1009
      %vm1052 = vcmp.eq.s32.totalorder %v248, %v1008
      %vm1053 = vcmp.eq.s32.totalorder %v248, %v1009
      %vm1054 = vcmp.eq.s32.totalorder %v249, %v1008
      %vm1055 = vcmp.eq.s32.totalorder %v249, %v1009
      %vm1056 = vcmp.eq.s32.totalorder %v250, %v1008
      %vm1057 = vcmp.eq.s32.totalorder %v250, %v1009
      %vm1058 = vcmp.eq.s32.totalorder %v251, %v1008
      %vm1059 = vcmp.eq.s32.totalorder %v251, %v1009
      %vm1060 = vcmp.eq.s32.totalorder %v252, %v1008
      %vm1061 = vcmp.eq.s32.totalorder %v252, %v1009
      %vm1062 = vcmp.eq.s32.totalorder %v253, %v1008
      %vm1063 = vcmp.eq.s32.totalorder %v253, %v1009
      %vm1064 = vcmp.eq.s32.totalorder %v254, %v1008
      %vm1065 = vcmp.eq.s32.totalorder %v254, %v1009
      %vm1066 = vcmp.eq.s32.totalorder %v255, %v1008
      %vm1067 = vcmp.eq.s32.totalorder %v255, %v1009
      %vm1068 = vcmp.eq.s32.totalorder %v256, %v1008
      %vm1069 = vcmp.eq.s32.totalorder %v256, %v1009
      %vm1070 = vcmp.eq.s32.totalorder %v257, %v1008
      %vm1071 = vcmp.eq.s32.totalorder %v257, %v1009
      %vm1072 = vcmp.eq.s32.totalorder %v258, %v1008
      %vm1073 = vcmp.eq.s32.totalorder %v258, %v1009
      %vm1074 = vmand %vm1010, %vm356
      %vm1075 = vmand %vm1011, %vm357
      %vm1076 = vmand %vm1012, %vm356
      %vm1077 = vmand %vm1013, %vm357
      %vm1078 = vmand %vm1014, %vm356
      %vm1079 = vmand %vm1015, %vm357
      %vm1080 = vmand %vm1016, %vm356
      %vm1081 = vmand %vm1017, %vm357
      %vm1082 = vmand %vm1018, %vm356
      %vm1083 = vmand %vm1019, %vm357
      %vm1084 = vmand %vm1020, %vm356
      %vm1085 = vmand %vm1021, %vm357
      %vm1086 = vmand %vm1022, %vm356
      %vm1087 = vmand %vm1023, %vm357
      %vm1088 = vmand %vm1024, %vm356
      %vm1089 = vmand %vm1025, %vm357
      %vm1090 = vmand %vm1026, %vm356
      %vm1091 = vmand %vm1027, %vm357
      %vm1092 = vmand %vm1028, %vm356
      %vm1093 = vmand %vm1029, %vm357
      %vm1094 = vmand %vm1030, %vm356
      %vm1095 = vmand %vm1031, %vm357
      %vm1096 = vmand %vm1032, %vm356
      %vm1097 = vmand %vm1033, %vm357
      %vm1098 = vmand %vm1034, %vm356
      %vm1099 = vmand %vm1035, %vm357
      %vm1100 = vmand %vm1036, %vm356
      %vm1101 = vmand %vm1037, %vm357
      %vm1102 = vmand %vm1038, %vm356
      %vm1103 = vmand %vm1039, %vm357
      %vm1104 = vmand %vm1040, %vm356
      %vm1105 = vmand %vm1041, %vm357
      %vm1106 = vmand %vm1042, %vm356
      %vm1107 = vmand %vm1043, %vm357
      %vm1108 = vmand %vm1044, %vm356
      %vm1109 = vmand %vm1045, %vm357
      %vm1110 = vmand %vm1046, %vm356
      %vm1111 = vmand %vm1047, %vm357
      %vm1112 = vmand %vm1048, %vm356
      %vm1113 = vmand %vm1049, %vm357
      %vm1114 = vmand %vm1050, %vm356
      %vm1115 = vmand %vm1051, %vm357
      %vm1116 = vmand %vm1052, %vm356
      %vm1117 = vmand %vm1053, %vm357
      %vm1118 = vmand %vm1054, %vm356
      %vm1119 = vmand %vm1055, %vm357
      %vm1120 = vmand %vm1056, %vm356
      %vm1121 = vmand %vm1057, %vm357
      %vm1122 = vmand %vm1058, %vm356
      %vm1123 = vmand %vm1059, %vm357
      %vm1124 = vmand %vm1060, %vm356
      %vm1125 = vmand %vm1061, %vm357
      %vm1126 = vmand %vm1062, %vm356
      %vm1127 = vmand %vm1063, %vm357
      %vm1128 = vmand %vm1064, %vm356
      %vm1129 = vmand %vm1065, %vm357
      %vm1130 = vmand %vm1066, %vm356
      %vm1131 = vmand %vm1067, %vm357
      %vm1132 = vmand %vm1068, %vm356
      %vm1133 = vmand %vm1069, %vm357
      %vm1134 = vmand %vm1070, %vm356
      %vm1135 = vmand %vm1071, %vm357
      %vm1136 = vmand %vm1072, %vm356
      %vm1137 = vmand %vm1073, %vm357
      %v1138 = vsel %vm1074, 1, 0
      %v1139 = vsel %vm1075, 1, 0
      %v1140 = vsel %vm1076, 1, 0
      %v1141 = vsel %vm1077, 1, 0
      %v1142 = vsel %vm1078, 1, 0
      %v1143 = vsel %vm1079, 1, 0
      %v1144 = vsel %vm1080, 1, 0
      %v1145 = vsel %vm1081, 1, 0
      %v1146 = vsel %vm1082, 1, 0
      %v1147 = vsel %vm1083, 1, 0
      %v1148 = vsel %vm1084, 1, 0
      %v1149 = vsel %vm1085, 1, 0
      %v1150 = vsel %vm1086, 1, 0
      %v1151 = vsel %vm1087, 1, 0
      %v1152 = vsel %vm1088, 1, 0
      %v1153 = vsel %vm1089, 1, 0
      %v1154 = vsel %vm1090, 1, 0
      %v1155 = vsel %vm1091, 1, 0
      %v1156 = vsel %vm1092, 1, 0
      %v1157 = vsel %vm1093, 1, 0
      %v1158 = vsel %vm1094, 1, 0
      %v1159 = vsel %vm1095, 1, 0
      %v1160 = vsel %vm1096, 1, 0
      %v1161 = vsel %vm1097, 1, 0
      %v1162 = vsel %vm1098, 1, 0
      %v1163 = vsel %vm1099, 1, 0
      %v1164 = vsel %vm1100, 1, 0
      %v1165 = vsel %vm1101, 1, 0
      %v1166 = vsel %vm1102, 1, 0
      %v1167 = vsel %vm1103, 1, 0
      %v1168 = vsel %vm1104, 1, 0
      %v1169 = vsel %vm1105, 1, 0
      %v1170 = vsel %vm1106, 1, 0
      %v1171 = vsel %vm1107, 1, 0
      %v1172 = vsel %vm1108, 1, 0
      %v1173 = vsel %vm1109, 1, 0
      %v1174 = vsel %vm1110, 1, 0
      %v1175 = vsel %vm1111, 1, 0
      %v1176 = vsel %vm1112, 1, 0
      %v1177 = vsel %vm1113, 1, 0
      %v1178 = vsel %vm1114, 1, 0
      %v1179 = vsel %vm1115, 1, 0
      %v1180 = vsel %vm1116, 1, 0
      %v1181 = vsel %vm1117, 1, 0
      %v1182 = vsel %vm1118, 1, 0
      %v1183 = vsel %vm1119, 1, 0
      %v1184 = vsel %vm1120, 1, 0
      %v1185 = vsel %vm1121, 1, 0
      %v1186 = vsel %vm1122, 1, 0
      %v1187 = vsel %vm1123, 1, 0
      %v1188 = vsel %vm1124, 1, 0
      %v1189 = vsel %vm1125, 1, 0
      %v1190 = vsel %vm1126, 1, 0
      %v1191 = vsel %vm1127, 1, 0
      %v1192 = vsel %vm1128, 1, 0
      %v1193 = vsel %vm1129, 1, 0
      %v1194 = vsel %vm1130, 1, 0
      %v1195 = vsel %vm1131, 1, 0
      %v1196 = vsel %vm1132, 1, 0
      %v1197 = vsel %vm1133, 1, 0
      %v1198 = vsel %vm1134, 1, 0
      %v1199 = vsel %vm1135, 1, 0
      %v1200 = vsel %vm1136, 1, 0
      %v1201 = vsel %vm1137, 1, 0
      %v1202 = vcvt.s32.f32 %v1138
      %v1203 = vcvt.s32.f32 %v1139
      %v1204 = vcvt.s32.f32 %v1140
      %v1205 = vcvt.s32.f32 %v1141
      %v1206 = vcvt.s32.f32 %v1142
      %v1207 = vcvt.s32.f32 %v1143
      %v1208 = vcvt.s32.f32 %v1144
      %v1209 = vcvt.s32.f32 %v1145
      %v1210 = vcvt.s32.f32 %v1146
      %v1211 = vcvt.s32.f32 %v1147
      %v1212 = vcvt.s32.f32 %v1148
      %v1213 = vcvt.s32.f32 %v1149
      %v1214 = vcvt.s32.f32 %v1150
      %v1215 = vcvt.s32.f32 %v1151
      %v1216 = vcvt.s32.f32 %v1152
      %v1217 = vcvt.s32.f32 %v1153
      %v1218 = vcvt.s32.f32 %v1154
      %v1219 = vcvt.s32.f32 %v1155
      %v1220 = vcvt.s32.f32 %v1156
      %v1221 = vcvt.s32.f32 %v1157
      %v1222 = vcvt.s32.f32 %v1158
      %v1223 = vcvt.s32.f32 %v1159
      %v1224 = vcvt.s32.f32 %v1160
      %v1225 = vcvt.s32.f32 %v1161
      %v1226 = vcvt.s32.f32 %v1162
      %v1227 = vcvt.s32.f32 %v1163
      %v1228 = vcvt.s32.f32 %v1164
      %v1229 = vcvt.s32.f32 %v1165
      %v1230 = vcvt.s32.f32 %v1166
      %v1231 = vcvt.s32.f32 %v1167
      %v1232 = vcvt.s32.f32 %v1168
      %v1233 = vcvt.s32.f32 %v1169
      %v1234 = vcvt.s32.f32 %v1170
      %v1235 = vcvt.s32.f32 %v1171
      %v1236 = vcvt.s32.f32 %v1172
      %v1237 = vcvt.s32.f32 %v1173
      %v1238 = vcvt.s32.f32 %v1174
      %v1239 = vcvt.s32.f32 %v1175
      %v1240 = vcvt.s32.f32 %v1176
      %v1241 = vcvt.s32.f32 %v1177
      %v1242 = vcvt.s32.f32 %v1178
      %v1243 = vcvt.s32.f32 %v1179
      %v1244 = vcvt.s32.f32 %v1180
      %v1245 = vcvt.s32.f32 %v1181
      %v1246 = vcvt.s32.f32 %v1182
      %v1247 = vcvt.s32.f32 %v1183
      %v1248 = vcvt.s32.f32 %v1184
      %v1249 = vcvt.s32.f32 %v1185
      %v1250 = vcvt.s32.f32 %v1186
      %v1251 = vcvt.s32.f32 %v1187
      %v1252 = vcvt.s32.f32 %v1188
      %v1253 = vcvt.s32.f32 %v1189
      %v1254 = vcvt.s32.f32 %v1190
      %v1255 = vcvt.s32.f32 %v1191
      %v1256 = vcvt.s32.f32 %v1192
      %v1257 = vcvt.s32.f32 %v1193
      %v1258 = vcvt.s32.f32 %v1194
      %v1259 = vcvt.s32.f32 %v1195
      %v1260 = vcvt.s32.f32 %v1196
      %v1261 = vcvt.s32.f32 %v1197
      %v1262 = vcvt.s32.f32 %v1198
      %v1263 = vcvt.s32.f32 %v1199
      %v1264 = vcvt.s32.f32 %v1200
      %v1265 = vcvt.s32.f32 %v1201
      %vm1266 = vcmp.eq.s32.totalorder %v227, %v260
      %vm1267 = vcmp.eq.s32.totalorder %v227, %v261
      %vm1268 = vcmp.eq.s32.totalorder %v228, %v260
      %vm1269 = vcmp.eq.s32.totalorder %v228, %v261
      %vm1270 = vcmp.eq.s32.totalorder %v229, %v260
      %vm1271 = vcmp.eq.s32.totalorder %v229, %v261
      %vm1272 = vcmp.eq.s32.totalorder %v230, %v260
      %vm1273 = vcmp.eq.s32.totalorder %v230, %v261
      %vm1274 = vcmp.eq.s32.totalorder %v231, %v260
      %vm1275 = vcmp.eq.s32.totalorder %v231, %v261
      %vm1276 = vcmp.eq.s32.totalorder %v232, %v260
      %vm1277 = vcmp.eq.s32.totalorder %v232, %v261
      %vm1278 = vcmp.eq.s32.totalorder %v233, %v260
      %vm1279 = vcmp.eq.s32.totalorder %v233, %v261
      %vm1280 = vcmp.eq.s32.totalorder %v234, %v260
      %vm1281 = vcmp.eq.s32.totalorder %v234, %v261
      %vm1282 = vcmp.eq.s32.totalorder %v235, %v260
      %vm1283 = vcmp.eq.s32.totalorder %v235, %v261
      %vm1284 = vcmp.eq.s32.totalorder %v236, %v260
      %vm1285 = vcmp.eq.s32.totalorder %v236, %v261
      %vm1286 = vcmp.eq.s32.totalorder %v237, %v260
      %vm1287 = vcmp.eq.s32.totalorder %v237, %v261
      %vm1288 = vcmp.eq.s32.totalorder %v238, %v260
      %vm1289 = vcmp.eq.s32.totalorder %v238, %v261
      %vm1290 = vcmp.eq.s32.totalorder %v239, %v260
      %vm1291 = vcmp.eq.s32.totalorder %v239, %v261
      %vm1292 = vcmp.eq.s32.totalorder %v240, %v260
      %vm1293 = vcmp.eq.s32.totalorder %v240, %v261
      %vm1294 = vcmp.eq.s32.totalorder %v241, %v260
      %vm1295 = vcmp.eq.s32.totalorder %v241, %v261
      %vm1296 = vcmp.eq.s32.totalorder %v242, %v260
      %vm1297 = vcmp.eq.s32.totalorder %v242, %v261
      %vm1298 = vcmp.eq.s32.totalorder %v243, %v260
      %vm1299 = vcmp.eq.s32.totalorder %v243, %v261
      %vm1300 = vcmp.eq.s32.totalorder %v244, %v260
      %vm1301 = vcmp.eq.s32.totalorder %v244, %v261
      %vm1302 = vcmp.eq.s32.totalorder %v245, %v260
      %vm1303 = vcmp.eq.s32.totalorder %v245, %v261
      %vm1304 = vcmp.eq.s32.totalorder %v246, %v260
      %vm1305 = vcmp.eq.s32.totalorder %v246, %v261
      %vm1306 = vcmp.eq.s32.totalorder %v247, %v260
      %vm1307 = vcmp.eq.s32.totalorder %v247, %v261
      %vm1308 = vcmp.eq.s32.totalorder %v248, %v260
      %vm1309 = vcmp.eq.s32.totalorder %v248, %v261
      %vm1310 = vcmp.eq.s32.totalorder %v249, %v260
      %vm1311 = vcmp.eq.s32.totalorder %v249, %v261
      %vm1312 = vcmp.eq.s32.totalorder %v250, %v260
      %vm1313 = vcmp.eq.s32.totalorder %v250, %v261
      %vm1314 = vcmp.eq.s32.totalorder %v251, %v260
      %vm1315 = vcmp.eq.s32.totalorder %v251, %v261
      %vm1316 = vcmp.eq.s32.totalorder %v252, %v260
      %vm1317 = vcmp.eq.s32.totalorder %v252, %v261
      %vm1318 = vcmp.eq.s32.totalorder %v253, %v260
      %vm1319 = vcmp.eq.s32.totalorder %v253, %v261
      %vm1320 = vcmp.eq.s32.totalorder %v254, %v260
      %vm1321 = vcmp.eq.s32.totalorder %v254, %v261
      %vm1322 = vcmp.eq.s32.totalorder %v255, %v260
      %vm1323 = vcmp.eq.s32.totalorder %v255, %v261
      %vm1324 = vcmp.eq.s32.totalorder %v256, %v260
      %vm1325 = vcmp.eq.s32.totalorder %v256, %v261
      %vm1326 = vcmp.eq.s32.totalorder %v257, %v260
      %vm1327 = vcmp.eq.s32.totalorder %v257, %v261
      %vm1328 = vcmp.eq.s32.totalorder %v258, %v260
      %vm1329 = vcmp.eq.s32.totalorder %v258, %v261
      %v1330 = vsel %vm1266, 1, 0
      %v1331 = vsel %vm1267, 1, 0
      %v1332 = vsel %vm1268, 1, 0
      %v1333 = vsel %vm1269, 1, 0
      %v1334 = vsel %vm1270, 1, 0
      %v1335 = vsel %vm1271, 1, 0
      %v1336 = vsel %vm1272, 1, 0
      %v1337 = vsel %vm1273, 1, 0
      %v1338 = vsel %vm1274, 1, 0
      %v1339 = vsel %vm1275, 1, 0
      %v1340 = vsel %vm1276, 1, 0
      %v1341 = vsel %vm1277, 1, 0
      %v1342 = vsel %vm1278, 1, 0
      %v1343 = vsel %vm1279, 1, 0
      %v1344 = vsel %vm1280, 1, 0
      %v1345 = vsel %vm1281, 1, 0
      %v1346 = vsel %vm1282, 1, 0
      %v1347 = vsel %vm1283, 1, 0
      %v1348 = vsel %vm1284, 1, 0
      %v1349 = vsel %vm1285, 1, 0
      %v1350 = vsel %vm1286, 1, 0
      %v1351 = vsel %vm1287, 1, 0
      %v1352 = vsel %vm1288, 1, 0
      %v1353 = vsel %vm1289, 1, 0
      %v1354 = vsel %vm1290, 1, 0
      %v1355 = vsel %vm1291, 1, 0
      %v1356 = vsel %vm1292, 1, 0
      %v1357 = vsel %vm1293, 1, 0
      %v1358 = vsel %vm1294, 1, 0
      %v1359 = vsel %vm1295, 1, 0
      %v1360 = vsel %vm1296, 1, 0
      %v1361 = vsel %vm1297, 1, 0
      %v1362 = vsel %vm1298, 1, 0
      %v1363 = vsel %vm1299, 1, 0
      %v1364 = vsel %vm1300, 1, 0
      %v1365 = vsel %vm1301, 1, 0
      %v1366 = vsel %vm1302, 1, 0
      %v1367 = vsel %vm1303, 1, 0
      %v1368 = vsel %vm1304, 1, 0
      %v1369 = vsel %vm1305, 1, 0
      %v1370 = vsel %vm1306, 1, 0
      %v1371 = vsel %vm1307, 1, 0
      %v1372 = vsel %vm1308, 1, 0
      %v1373 = vsel %vm1309, 1, 0
      %v1374 = vsel %vm1310, 1, 0
      %v1375 = vsel %vm1311, 1, 0
      %v1376 = vsel %vm1312, 1, 0
      %v1377 = vsel %vm1313, 1, 0
      %v1378 = vsel %vm1314, 1, 0
      %v1379 = vsel %vm1315, 1, 0
      %v1380 = vsel %vm1316, 1, 0
      %v1381 = vsel %vm1317, 1, 0
      %v1382 = vsel %vm1318, 1, 0
      %v1383 = vsel %vm1319, 1, 0
      %v1384 = vsel %vm1320, 1, 0
      %v1385 = vsel %vm1321, 1, 0
      %v1386 = vsel %vm1322, 1, 0
      %v1387 = vsel %vm1323, 1, 0
      %v1388 = vsel %vm1324, 1, 0
      %v1389 = vsel %vm1325, 1, 0
      %v1390 = vsel %vm1326, 1, 0
      %v1391 = vsel %vm1327, 1, 0
      %v1392 = vsel %vm1328, 1, 0
      %v1393 = vsel %vm1329, 1, 0
      %v1394 = vcvt.s32.f32 %v1330
      %v1395 = vcvt.s32.f32 %v1331
      %v1396 = vcvt.s32.f32 %v1332
      %v1397 = vcvt.s32.f32 %v1333
      %v1398 = vcvt.s32.f32 %v1334
      %v1399 = vcvt.s32.f32 %v1335
      %v1400 = vcvt.s32.f32 %v1336
      %v1401 = vcvt.s32.f32 %v1337
      %v1402 = vcvt.s32.f32 %v1338
      %v1403 = vcvt.s32.f32 %v1339
      %v1404 = vcvt.s32.f32 %v1340
      %v1405 = vcvt.s32.f32 %v1341
      %v1406 = vcvt.s32.f32 %v1342
      %v1407 = vcvt.s32.f32 %v1343
      %v1408 = vcvt.s32.f32 %v1344
      %v1409 = vcvt.s32.f32 %v1345
      %v1410 = vcvt.s32.f32 %v1346
      %v1411 = vcvt.s32.f32 %v1347
      %v1412 = vcvt.s32.f32 %v1348
      %v1413 = vcvt.s32.f32 %v1349
      %v1414 = vcvt.s32.f32 %v1350
      %v1415 = vcvt.s32.f32 %v1351
      %v1416 = vcvt.s32.f32 %v1352
      %v1417 = vcvt.s32.f32 %v1353
      %v1418 = vcvt.s32.f32 %v1354
      %v1419 = vcvt.s32.f32 %v1355
      %v1420 = vcvt.s32.f32 %v1356
      %v1421 = vcvt.s32.f32 %v1357
      %v1422 = vcvt.s32.f32 %v1358
      %v1423 = vcvt.s32.f32 %v1359
      %v1424 = vcvt.s32.f32 %v1360
      %v1425 = vcvt.s32.f32 %v1361
      %v1426 = vcvt.s32.f32 %v1362
      %v1427 = vcvt.s32.f32 %v1363
      %v1428 = vcvt.s32.f32 %v1364
      %v1429 = vcvt.s32.f32 %v1365
      %v1430 = vcvt.s32.f32 %v1366
      %v1431 = vcvt.s32.f32 %v1367
      %v1432 = vcvt.s32.f32 %v1368
      %v1433 = vcvt.s32.f32 %v1369
      %v1434 = vcvt.s32.f32 %v1370
      %v1435 = vcvt.s32.f32 %v1371
      %v1436 = vcvt.s32.f32 %v1372
      %v1437 = vcvt.s32.f32 %v1373
      %v1438 = vcvt.s32.f32 %v1374
      %v1439 = vcvt.s32.f32 %v1375
      %v1440 = vcvt.s32.f32 %v1376
      %v1441 = vcvt.s32.f32 %v1377
      %v1442 = vcvt.s32.f32 %v1378
      %v1443 = vcvt.s32.f32 %v1379
      %v1444 = vcvt.s32.f32 %v1380
      %v1445 = vcvt.s32.f32 %v1381
      %v1446 = vcvt.s32.f32 %v1382
      %v1447 = vcvt.s32.f32 %v1383
      %v1448 = vcvt.s32.f32 %v1384
      %v1449 = vcvt.s32.f32 %v1385
      %v1450 = vcvt.s32.f32 %v1386
      %v1451 = vcvt.s32.f32 %v1387
      %v1452 = vcvt.s32.f32 %v1388
      %v1453 = vcvt.s32.f32 %v1389
      %v1454 = vcvt.s32.f32 %v1390
      %v1455 = vcvt.s32.f32 %v1391
      %v1456 = vcvt.s32.f32 %v1392
      %v1457 = vcvt.s32.f32 %v1393
      %v1458 = vadd.s32 %v260, 1
      %v1459 = vadd.s32 %v261, 1
      %vm1460 = vcmp.eq.s32.totalorder %v227, %v1458
      %vm1461 = vcmp.eq.s32.totalorder %v227, %v1459
      %vm1462 = vcmp.eq.s32.totalorder %v228, %v1458
      %vm1463 = vcmp.eq.s32.totalorder %v228, %v1459
      %vm1464 = vcmp.eq.s32.totalorder %v229, %v1458
      %vm1465 = vcmp.eq.s32.totalorder %v229, %v1459
      %vm1466 = vcmp.eq.s32.totalorder %v230, %v1458
      %vm1467 = vcmp.eq.s32.totalorder %v230, %v1459
      %vm1468 = vcmp.eq.s32.totalorder %v231, %v1458
      %vm1469 = vcmp.eq.s32.totalorder %v231, %v1459
      %vm1470 = vcmp.eq.s32.totalorder %v232, %v1458
      %vm1471 = vcmp.eq.s32.totalorder %v232, %v1459
      %vm1472 = vcmp.eq.s32.totalorder %v233, %v1458
      %vm1473 = vcmp.eq.s32.totalorder %v233, %v1459
      %vm1474 = vcmp.eq.s32.totalorder %v234, %v1458
      %vm1475 = vcmp.eq.s32.totalorder %v234, %v1459
      %vm1476 = vcmp.eq.s32.totalorder %v235, %v1458
      %vm1477 = vcmp.eq.s32.totalorder %v235, %v1459
      %vm1478 = vcmp.eq.s32.totalorder %v236, %v1458
      %vm1479 = vcmp.eq.s32.totalorder %v236, %v1459
      %vm1480 = vcmp.eq.s32.totalorder %v237, %v1458
      %vm1481 = vcmp.eq.s32.totalorder %v237, %v1459
      %vm1482 = vcmp.eq.s32.totalorder %v238, %v1458
      %vm1483 = vcmp.eq.s32.totalorder %v238, %v1459
      %vm1484 = vcmp.eq.s32.totalorder %v239, %v1458
      %vm1485 = vcmp.eq.s32.totalorder %v239, %v1459
      %vm1486 = vcmp.eq.s32.totalorder %v240, %v1458
      %vm1487 = vcmp.eq.s32.totalorder %v240, %v1459
      %vm1488 = vcmp.eq.s32.totalorder %v241, %v1458
      %vm1489 = vcmp.eq.s32.totalorder %v241, %v1459
      %vm1490 = vcmp.eq.s32.totalorder %v242, %v1458
      %vm1491 = vcmp.eq.s32.totalorder %v242, %v1459
      %vm1492 = vcmp.eq.s32.totalorder %v243, %v1458
      %vm1493 = vcmp.eq.s32.totalorder %v243, %v1459
      %vm1494 = vcmp.eq.s32.totalorder %v244, %v1458
      %vm1495 = vcmp.eq.s32.totalorder %v244, %v1459
      %vm1496 = vcmp.eq.s32.totalorder %v245, %v1458
      %vm1497 = vcmp.eq.s32.totalorder %v245, %v1459
      %vm1498 = vcmp.eq.s32.totalorder %v246, %v1458
      %vm1499 = vcmp.eq.s32.totalorder %v246, %v1459
      %vm1500 = vcmp.eq.s32.totalorder %v247, %v1458
      %vm1501 = vcmp.eq.s32.totalorder %v247, %v1459
      %vm1502 = vcmp.eq.s32.totalorder %v248, %v1458
      %vm1503 = vcmp.eq.s32.totalorder %v248, %v1459
      %vm1504 = vcmp.eq.s32.totalorder %v249, %v1458
      %vm1505 = vcmp.eq.s32.totalorder %v249, %v1459
      %vm1506 = vcmp.eq.s32.totalorder %v250, %v1458
      %vm1507 = vcmp.eq.s32.totalorder %v250, %v1459
      %vm1508 = vcmp.eq.s32.totalorder %v251, %v1458
      %vm1509 = vcmp.eq.s32.totalorder %v251, %v1459
      %vm1510 = vcmp.eq.s32.totalorder %v252, %v1458
      %vm1511 = vcmp.eq.s32.totalorder %v252, %v1459
      %vm1512 = vcmp.eq.s32.totalorder %v253, %v1458
      %vm1513 = vcmp.eq.s32.totalorder %v253, %v1459
      %vm1514 = vcmp.eq.s32.totalorder %v254, %v1458
      %vm1515 = vcmp.eq.s32.totalorder %v254, %v1459
      %vm1516 = vcmp.eq.s32.totalorder %v255, %v1458
      %vm1517 = vcmp.eq.s32.totalorder %v255, %v1459
      %vm1518 = vcmp.eq.s32.totalorder %v256, %v1458
      %vm1519 = vcmp.eq.s32.totalorder %v256, %v1459
      %vm1520 = vcmp.eq.s32.totalorder %v257, %v1458
      %vm1521 = vcmp.eq.s32.totalorder %v257, %v1459
      %vm1522 = vcmp.eq.s32.totalorder %v258, %v1458
      %vm1523 = vcmp.eq.s32.totalorder %v258, %v1459
      %vm1524 = vmand %vm1460, %vm814
      %vm1525 = vmand %vm1461, %vm815
      %vm1526 = vmand %vm1462, %vm814
      %vm1527 = vmand %vm1463, %vm815
      %vm1528 = vmand %vm1464, %vm814
      %vm1529 = vmand %vm1465, %vm815
      %vm1530 = vmand %vm1466, %vm814
      %vm1531 = vmand %vm1467, %vm815
      %vm1532 = vmand %vm1468, %vm814
      %vm1533 = vmand %vm1469, %vm815
      %vm1534 = vmand %vm1470, %vm814
      %vm1535 = vmand %vm1471, %vm815
      %vm1536 = vmand %vm1472, %vm814
      %vm1537 = vmand %vm1473, %vm815
      %vm1538 = vmand %vm1474, %vm814
      %vm1539 = vmand %vm1475, %vm815
      %vm1540 = vmand %vm1476, %vm814
      %vm1541 = vmand %vm1477, %vm815
      %vm1542 = vmand %vm1478, %vm814
      %vm1543 = vmand %vm1479, %vm815
      %vm1544 = vmand %vm1480, %vm814
      %vm1545 = vmand %vm1481, %vm815
      %vm1546 = vmand %vm1482, %vm814
      %vm1547 = vmand %vm1483, %vm815
      %vm1548 = vmand %vm1484, %vm814
      %vm1549 = vmand %vm1485, %vm815
      %vm1550 = vmand %vm1486, %vm814
      %vm1551 = vmand %vm1487, %vm815
      %vm1552 = vmand %vm1488, %vm814
      %vm1553 = vmand %vm1489, %vm815
      %vm1554 = vmand %vm1490, %vm814
      %vm1555 = vmand %vm1491, %vm815
      %vm1556 = vmand %vm1492, %vm814
      %vm1557 = vmand %vm1493, %vm815
      %vm1558 = vmand %vm1494, %vm814
      %vm1559 = vmand %vm1495, %vm815
      %vm1560 = vmand %vm1496, %vm814
      %vm1561 = vmand %vm1497, %vm815
      %vm1562 = vmand %vm1498, %vm814
      %vm1563 = vmand %vm1499, %vm815
      %vm1564 = vmand %vm1500, %vm814
      %vm1565 = vmand %vm1501, %vm815
      %vm1566 = vmand %vm1502, %vm814
      %vm1567 = vmand %vm1503, %vm815
      %vm1568 = vmand %vm1504, %vm814
      %vm1569 = vmand %vm1505, %vm815
      %vm1570 = vmand %vm1506, %vm814
      %vm1571 = vmand %vm1507, %vm815
      %vm1572 = vmand %vm1508, %vm814
      %vm1573 = vmand %vm1509, %vm815
      %vm1574 = vmand %vm1510, %vm814
      %vm1575 = vmand %vm1511, %vm815
      %vm1576 = vmand %vm1512, %vm814
      %vm1577 = vmand %vm1513, %vm815
      %vm1578 = vmand %vm1514, %vm814
      %vm1579 = vmand %vm1515, %vm815
      %vm1580 = vmand %vm1516, %vm814
      %vm1581 = vmand %vm1517, %vm815
      %vm1582 = vmand %vm1518, %vm814
      %vm1583 = vmand %vm1519, %vm815
      %vm1584 = vmand %vm1520, %vm814
      %vm1585 = vmand %vm1521, %vm815
      %vm1586 = vmand %vm1522, %vm814
      %vm1587 = vmand %vm1523, %vm815
      %v1588 = vsel %vm1524, 1, 0
      %v1589 = vsel %vm1525, 1, 0
      %v1590 = vsel %vm1526, 1, 0
      %v1591 = vsel %vm1527, 1, 0
      %v1592 = vsel %vm1528, 1, 0
      %v1593 = vsel %vm1529, 1, 0
      %v1594 = vsel %vm1530, 1, 0
      %v1595 = vsel %vm1531, 1, 0
      %v1596 = vsel %vm1532, 1, 0
      %v1597 = vsel %vm1533, 1, 0
      %v1598 = vsel %vm1534, 1, 0
      %v1599 = vsel %vm1535, 1, 0
      %v1600 = vsel %vm1536, 1, 0
      %v1601 = vsel %vm1537, 1, 0
      %v1602 = vsel %vm1538, 1, 0
      %v1603 = vsel %vm1539, 1, 0
      %v1604 = vsel %vm1540, 1, 0
      %v1605 = vsel %vm1541, 1, 0
      %v1606 = vsel %vm1542, 1, 0
      %v1607 = vsel %vm1543, 1, 0
      %v1608 = vsel %vm1544, 1, 0
      %v1609 = vsel %vm1545, 1, 0
      %v1610 = vsel %vm1546, 1, 0
      %v1611 = vsel %vm1547, 1, 0
      %v1612 = vsel %vm1548, 1, 0
      %v1613 = vsel %vm1549, 1, 0
      %v1614 = vsel %vm1550, 1, 0
      %v1615 = vsel %vm1551, 1, 0
      %v1616 = vsel %vm1552, 1, 0
      %v1617 = vsel %vm1553, 1, 0
      %v1618 = vsel %vm1554, 1, 0
      %v1619 = vsel %vm1555, 1, 0
      %v1620 = vsel %vm1556, 1, 0
      %v1621 = vsel %vm1557, 1, 0
      %v1622 = vsel %vm1558, 1, 0
      %v1623 = vsel %vm1559, 1, 0
      %v1624 = vsel %vm1560, 1, 0
      %v1625 = vsel %vm1561, 1, 0
      %v1626 = vsel %vm1562, 1, 0
      %v1627 = vsel %vm1563, 1, 0
      %v1628 = vsel %vm1564, 1, 0
      %v1629 = vsel %vm1565, 1, 0
      %v1630 = vsel %vm1566, 1, 0
      %v1631 = vsel %vm1567, 1, 0
      %v1632 = vsel %vm1568, 1, 0
      %v1633 = vsel %vm1569, 1, 0
      %v1634 = vsel %vm1570, 1, 0
      %v1635 = vsel %vm1571, 1, 0
      %v1636 = vsel %vm1572, 1, 0
      %v1637 = vsel %vm1573, 1, 0
      %v1638 = vsel %vm1574, 1, 0
      %v1639 = vsel %vm1575, 1, 0
      %v1640 = vsel %vm1576, 1, 0
      %v1641 = vsel %vm1577, 1, 0
      %v1642 = vsel %vm1578, 1, 0
      %v1643 = vsel %vm1579, 1, 0
      %v1644 = vsel %vm1580, 1, 0
      %v1645 = vsel %vm1581, 1, 0
      %v1646 = vsel %vm1582, 1, 0
      %v1647 = vsel %vm1583, 1, 0
      %v1648 = vsel %vm1584, 1, 0
      %v1649 = vsel %vm1585, 1, 0
      %v1650 = vsel %vm1586, 1, 0
      %v1651 = vsel %vm1587, 1, 0
      %v1652 = vcvt.s32.f32 %v1588
      %v1653 = vcvt.s32.f32 %v1589
      %v1654 = vcvt.s32.f32 %v1590
      %v1655 = vcvt.s32.f32 %v1591
      %v1656 = vcvt.s32.f32 %v1592
      %v1657 = vcvt.s32.f32 %v1593
      %v1658 = vcvt.s32.f32 %v1594
      %v1659 = vcvt.s32.f32 %v1595
      %v1660 = vcvt.s32.f32 %v1596
      %v1661 = vcvt.s32.f32 %v1597
      %v1662 = vcvt.s32.f32 %v1598
      %v1663 = vcvt.s32.f32 %v1599
      %v1664 = vcvt.s32.f32 %v1600
      %v1665 = vcvt.s32.f32 %v1601
      %v1666 = vcvt.s32.f32 %v1602
      %v1667 = vcvt.s32.f32 %v1603
      %v1668 = vcvt.s32.f32 %v1604
      %v1669 = vcvt.s32.f32 %v1605
      %v1670 = vcvt.s32.f32 %v1606
      %v1671 = vcvt.s32.f32 %v1607
      %v1672 = vcvt.s32.f32 %v1608
      %v1673 = vcvt.s32.f32 %v1609
      %v1674 = vcvt.s32.f32 %v1610
      %v1675 = vcvt.s32.f32 %v1611
      %v1676 = vcvt.s32.f32 %v1612
      %v1677 = vcvt.s32.f32 %v1613
      %v1678 = vcvt.s32.f32 %v1614
      %v1679 = vcvt.s32.f32 %v1615
      %v1680 = vcvt.s32.f32 %v1616
      %v1681 = vcvt.s32.f32 %v1617
      %v1682 = vcvt.s32.f32 %v1618
      %v1683 = vcvt.s32.f32 %v1619
      %v1684 = vcvt.s32.f32 %v1620
      %v1685 = vcvt.s32.f32 %v1621
      %v1686 = vcvt.s32.f32 %v1622
      %v1687 = vcvt.s32.f32 %v1623
      %v1688 = vcvt.s32.f32 %v1624
      %v1689 = vcvt.s32.f32 %v1625
      %v1690 = vcvt.s32.f32 %v1626
      %v1691 = vcvt.s32.f32 %v1627
      %v1692 = vcvt.s32.f32 %v1628
      %v1693 = vcvt.s32.f32 %v1629
      %v1694 = vcvt.s32.f32 %v1630
      %v1695 = vcvt.s32.f32 %v1631
      %v1696 = vcvt.s32.f32 %v1632
      %v1697 = vcvt.s32.f32 %v1633
      %v1698 = vcvt.s32.f32 %v1634
      %v1699 = vcvt.s32.f32 %v1635
      %v1700 = vcvt.s32.f32 %v1636
      %v1701 = vcvt.s32.f32 %v1637
      %v1702 = vcvt.s32.f32 %v1638
      %v1703 = vcvt.s32.f32 %v1639
      %v1704 = vcvt.s32.f32 %v1640
      %v1705 = vcvt.s32.f32 %v1641
      %v1706 = vcvt.s32.f32 %v1642
      %v1707 = vcvt.s32.f32 %v1643
      %v1708 = vcvt.s32.f32 %v1644
      %v1709 = vcvt.s32.f32 %v1645
      %v1710 = vcvt.s32.f32 %v1646
      %v1711 = vcvt.s32.f32 %v1647
      %v1712 = vcvt.s32.f32 %v1648
      %v1713 = vcvt.s32.f32 %v1649
      %v1714 = vcvt.s32.f32 %v1650
      %v1715 = vcvt.s32.f32 %v1651
      %v1716 = vadd.s32 %v260, 15
      %v1717 = vadd.s32 %v261, 15
      %vm1718 = vcmp.eq.s32.totalorder %v227, %v1716
      %vm1719 = vcmp.eq.s32.totalorder %v227, %v1717
      %vm1720 = vcmp.eq.s32.totalorder %v228, %v1716
      %vm1721 = vcmp.eq.s32.totalorder %v228, %v1717
      %vm1722 = vcmp.eq.s32.totalorder %v229, %v1716
      %vm1723 = vcmp.eq.s32.totalorder %v229, %v1717
      %vm1724 = vcmp.eq.s32.totalorder %v230, %v1716
      %vm1725 = vcmp.eq.s32.totalorder %v230, %v1717
      %vm1726 = vcmp.eq.s32.totalorder %v231, %v1716
      %vm1727 = vcmp.eq.s32.totalorder %v231, %v1717
      %vm1728 = vcmp.eq.s32.totalorder %v232, %v1716
      %vm1729 = vcmp.eq.s32.totalorder %v232, %v1717
      %vm1730 = vcmp.eq.s32.totalorder %v233, %v1716
      %vm1731 = vcmp.eq.s32.totalorder %v233, %v1717
      %vm1732 = vcmp.eq.s32.totalorder %v234, %v1716
      %vm1733 = vcmp.eq.s32.totalorder %v234, %v1717
      %vm1734 = vcmp.eq.s32.totalorder %v235, %v1716
      %vm1735 = vcmp.eq.s32.totalorder %v235, %v1717
      %vm1736 = vcmp.eq.s32.totalorder %v236, %v1716
      %vm1737 = vcmp.eq.s32.totalorder %v236, %v1717
      %vm1738 = vcmp.eq.s32.totalorder %v237, %v1716
      %vm1739 = vcmp.eq.s32.totalorder %v237, %v1717
      %vm1740 = vcmp.eq.s32.totalorder %v238, %v1716
      %vm1741 = vcmp.eq.s32.totalorder %v238, %v1717
      %vm1742 = vcmp.eq.s32.totalorder %v239, %v1716
      %vm1743 = vcmp.eq.s32.totalorder %v239, %v1717
      %vm1744 = vcmp.eq.s32.totalorder %v240, %v1716
      %vm1745 = vcmp.eq.s32.totalorder %v240, %v1717
      %vm1746 = vcmp.eq.s32.totalorder %v241, %v1716
      %vm1747 = vcmp.eq.s32.totalorder %v241, %v1717
      %vm1748 = vcmp.eq.s32.totalorder %v242, %v1716
      %vm1749 = vcmp.eq.s32.totalorder %v242, %v1717
      %vm1750 = vcmp.eq.s32.totalorder %v243, %v1716
      %vm1751 = vcmp.eq.s32.totalorder %v243, %v1717
      %vm1752 = vcmp.eq.s32.totalorder %v244, %v1716
      %vm1753 = vcmp.eq.s32.totalorder %v244, %v1717
      %vm1754 = vcmp.eq.s32.totalorder %v245, %v1716
      %vm1755 = vcmp.eq.s32.totalorder %v245, %v1717
      %vm1756 = vcmp.eq.s32.totalorder %v246, %v1716
      %vm1757 = vcmp.eq.s32.totalorder %v246, %v1717
      %vm1758 = vcmp.eq.s32.totalorder %v247, %v1716
      %vm1759 = vcmp.eq.s32.totalorder %v247, %v1717
      %vm1760 = vcmp.eq.s32.totalorder %v248, %v1716
      %vm1761 = vcmp.eq.s32.totalorder %v248, %v1717
      %vm1762 = vcmp.eq.s32.totalorder %v249, %v1716
      %vm1763 = vcmp.eq.s32.totalorder %v249, %v1717
      %vm1764 = vcmp.eq.s32.totalorder %v250, %v1716
      %vm1765 = vcmp.eq.s32.totalorder %v250, %v1717
      %vm1766 = vcmp.eq.s32.totalorder %v251, %v1716
      %vm1767 = vcmp.eq.s32.totalorder %v251, %v1717
      %vm1768 = vcmp.eq.s32.totalorder %v252, %v1716
      %vm1769 = vcmp.eq.s32.totalorder %v252, %v1717
      %vm1770 = vcmp.eq.s32.totalorder %v253, %v1716
      %vm1771 = vcmp.eq.s32.totalorder %v253, %v1717
      %vm1772 = vcmp.eq.s32.totalorder %v254, %v1716
      %vm1773 = vcmp.eq.s32.totalorder %v254, %v1717
      %vm1774 = vcmp.eq.s32.totalorder %v255, %v1716
      %vm1775 = vcmp.eq.s32.totalorder %v255, %v1717
      %vm1776 = vcmp.eq.s32.totalorder %v256, %v1716
      %vm1777 = vcmp.eq.s32.totalorder %v256, %v1717
      %vm1778 = vcmp.eq.s32.totalorder %v257, %v1716
      %vm1779 = vcmp.eq.s32.totalorder %v257, %v1717
      %vm1780 = vcmp.eq.s32.totalorder %v258, %v1716
      %vm1781 = vcmp.eq.s32.totalorder %v258, %v1717
      %vm1782 = vmand %vm1718, %vm356
      %vm1783 = vmand %vm1719, %vm357
      %vm1784 = vmand %vm1720, %vm356
      %vm1785 = vmand %vm1721, %vm357
      %vm1786 = vmand %vm1722, %vm356
      %vm1787 = vmand %vm1723, %vm357
      %vm1788 = vmand %vm1724, %vm356
      %vm1789 = vmand %vm1725, %vm357
      %vm1790 = vmand %vm1726, %vm356
      %vm1791 = vmand %vm1727, %vm357
      %vm1792 = vmand %vm1728, %vm356
      %vm1793 = vmand %vm1729, %vm357
      %vm1794 = vmand %vm1730, %vm356
      %vm1795 = vmand %vm1731, %vm357
      %vm1796 = vmand %vm1732, %vm356
      %vm1797 = vmand %vm1733, %vm357
      %vm1798 = vmand %vm1734, %vm356
      %vm1799 = vmand %vm1735, %vm357
      %vm1800 = vmand %vm1736, %vm356
      %vm1801 = vmand %vm1737, %vm357
      %vm1802 = vmand %vm1738, %vm356
      %vm1803 = vmand %vm1739, %vm357
      %vm1804 = vmand %vm1740, %vm356
      %vm1805 = vmand %vm1741, %vm357
      %vm1806 = vmand %vm1742, %vm356
      %vm1807 = vmand %vm1743, %vm357
      %vm1808 = vmand %vm1744, %vm356
      %vm1809 = vmand %vm1745, %vm357
      %vm1810 = vmand %vm1746, %vm356
      %vm1811 = vmand %vm1747, %vm357
      %vm1812 = vmand %vm1748, %vm356
      %vm1813 = vmand %vm1749, %vm357
      %vm1814 = vmand %vm1750, %vm356
      %vm1815 = vmand %vm1751, %vm357
      %vm1816 = vmand %vm1752, %vm356
      %vm1817 = vmand %vm1753, %vm357
      %vm1818 = vmand %vm1754, %vm356
      %vm1819 = vmand %vm1755, %vm357
      %vm1820 = vmand %vm1756, %vm356
      %vm1821 = vmand %vm1757, %vm357
      %vm1822 = vmand %vm1758, %vm356
      %vm1823 = vmand %vm1759, %vm357
      %vm1824 = vmand %vm1760, %vm356
      %vm1825 = vmand %vm1761, %vm357
      %vm1826 = vmand %vm1762, %vm356
      %vm1827 = vmand %vm1763, %vm357
      %vm1828 = vmand %vm1764, %vm356
      %vm1829 = vmand %vm1765, %vm357
      %vm1830 = vmand %vm1766, %vm356
      %vm1831 = vmand %vm1767, %vm357
      %vm1832 = vmand %vm1768, %vm356
      %vm1833 = vmand %vm1769, %vm357
      %vm1834 = vmand %vm1770, %vm356
      %vm1835 = vmand %vm1771, %vm357
      %vm1836 = vmand %vm1772, %vm356
      %vm1837 = vmand %vm1773, %vm357
      %vm1838 = vmand %vm1774, %vm356
      %vm1839 = vmand %vm1775, %vm357
      %vm1840 = vmand %vm1776, %vm356
      %vm1841 = vmand %vm1777, %vm357
      %vm1842 = vmand %vm1778, %vm356
      %vm1843 = vmand %vm1779, %vm357
      %vm1844 = vmand %vm1780, %vm356
      %vm1845 = vmand %vm1781, %vm357
      %v1846 = vsel %vm1782, 1, 0
      %v1847 = vsel %vm1783, 1, 0
      %v1848 = vsel %vm1784, 1, 0
      %v1849 = vsel %vm1785, 1, 0
      %v1850 = vsel %vm1786, 1, 0
      %v1851 = vsel %vm1787, 1, 0
      %v1852 = vsel %vm1788, 1, 0
      %v1853 = vsel %vm1789, 1, 0
      %v1854 = vsel %vm1790, 1, 0
      %v1855 = vsel %vm1791, 1, 0
      %v1856 = vsel %vm1792, 1, 0
      %v1857 = vsel %vm1793, 1, 0
      %v1858 = vsel %vm1794, 1, 0
      %v1859 = vsel %vm1795, 1, 0
      %v1860 = vsel %vm1796, 1, 0
      %v1861 = vsel %vm1797, 1, 0
      %v1862 = vsel %vm1798, 1, 0
      %v1863 = vsel %vm1799, 1, 0
      %v1864 = vsel %vm1800, 1, 0
      %v1865 = vsel %vm1801, 1, 0
      %v1866 = vsel %vm1802, 1, 0
      %v1867 = vsel %vm1803, 1, 0
      %v1868 = vsel %vm1804, 1, 0
      %v1869 = vsel %vm1805, 1, 0
      %v1870 = vsel %vm1806, 1, 0
      %v1871 = vsel %vm1807, 1, 0
      %v1872 = vsel %vm1808, 1, 0
      %v1873 = vsel %vm1809, 1, 0
      %v1874 = vsel %vm1810, 1, 0
      %v1875 = vsel %vm1811, 1, 0
      %v1876 = vsel %vm1812, 1, 0
      %v1877 = vsel %vm1813, 1, 0
      %v1878 = vsel %vm1814, 1, 0
      %v1879 = vsel %vm1815, 1, 0
      %v1880 = vsel %vm1816, 1, 0
      %v1881 = vsel %vm1817, 1, 0
      %v1882 = vsel %vm1818, 1, 0
      %v1883 = vsel %vm1819, 1, 0
      %v1884 = vsel %vm1820, 1, 0
      %v1885 = vsel %vm1821, 1, 0
      %v1886 = vsel %vm1822, 1, 0
      %v1887 = vsel %vm1823, 1, 0
      %v1888 = vsel %vm1824, 1, 0
      %v1889 = vsel %vm1825, 1, 0
      %v1890 = vsel %vm1826, 1, 0
      %v1891 = vsel %vm1827, 1, 0
      %v1892 = vsel %vm1828, 1, 0
      %v1893 = vsel %vm1829, 1, 0
      %v1894 = vsel %vm1830, 1, 0
      %v1895 = vsel %vm1831, 1, 0
      %v1896 = vsel %vm1832, 1, 0
      %v1897 = vsel %vm1833, 1, 0
      %v1898 = vsel %vm1834, 1, 0
      %v1899 = vsel %vm1835, 1, 0
      %v1900 = vsel %vm1836, 1, 0
      %v1901 = vsel %vm1837, 1, 0
      %v1902 = vsel %vm1838, 1, 0
      %v1903 = vsel %vm1839, 1, 0
      %v1904 = vsel %vm1840, 1, 0
      %v1905 = vsel %vm1841, 1, 0
      %v1906 = vsel %vm1842, 1, 0
      %v1907 = vsel %vm1843, 1, 0
      %v1908 = vsel %vm1844, 1, 0
      %v1909 = vsel %vm1845, 1, 0
      %v1910 = vcvt.s32.f32 %v1846
      %v1911 = vcvt.s32.f32 %v1847
      %v1912 = vcvt.s32.f32 %v1848
      %v1913 = vcvt.s32.f32 %v1849
      %v1914 = vcvt.s32.f32 %v1850
      %v1915 = vcvt.s32.f32 %v1851
      %v1916 = vcvt.s32.f32 %v1852
      %v1917 = vcvt.s32.f32 %v1853
      %v1918 = vcvt.s32.f32 %v1854
      %v1919 = vcvt.s32.f32 %v1855
      %v1920 = vcvt.s32.f32 %v1856
      %v1921 = vcvt.s32.f32 %v1857
      %v1922 = vcvt.s32.f32 %v1858
      %v1923 = vcvt.s32.f32 %v1859
      %v1924 = vcvt.s32.f32 %v1860
      %v1925 = vcvt.s32.f32 %v1861
      %v1926 = vcvt.s32.f32 %v1862
      %v1927 = vcvt.s32.f32 %v1863
      %v1928 = vcvt.s32.f32 %v1864
      %v1929 = vcvt.s32.f32 %v1865
      %v1930 = vcvt.s32.f32 %v1866
      %v1931 = vcvt.s32.f32 %v1867
      %v1932 = vcvt.s32.f32 %v1868
      %v1933 = vcvt.s32.f32 %v1869
      %v1934 = vcvt.s32.f32 %v1870
      %v1935 = vcvt.s32.f32 %v1871
      %v1936 = vcvt.s32.f32 %v1872
      %v1937 = vcvt.s32.f32 %v1873
      %v1938 = vcvt.s32.f32 %v1874
      %v1939 = vcvt.s32.f32 %v1875
      %v1940 = vcvt.s32.f32 %v1876
      %v1941 = vcvt.s32.f32 %v1877
      %v1942 = vcvt.s32.f32 %v1878
      %v1943 = vcvt.s32.f32 %v1879
      %v1944 = vcvt.s32.f32 %v1880
      %v1945 = vcvt.s32.f32 %v1881
      %v1946 = vcvt.s32.f32 %v1882
      %v1947 = vcvt.s32.f32 %v1883
      %v1948 = vcvt.s32.f32 %v1884
      %v1949 = vcvt.s32.f32 %v1885
      %v1950 = vcvt.s32.f32 %v1886
      %v1951 = vcvt.s32.f32 %v1887
      %v1952 = vcvt.s32.f32 %v1888
      %v1953 = vcvt.s32.f32 %v1889
      %v1954 = vcvt.s32.f32 %v1890
      %v1955 = vcvt.s32.f32 %v1891
      %v1956 = vcvt.s32.f32 %v1892
      %v1957 = vcvt.s32.f32 %v1893
      %v1958 = vcvt.s32.f32 %v1894
      %v1959 = vcvt.s32.f32 %v1895
      %v1960 = vcvt.s32.f32 %v1896
      %v1961 = vcvt.s32.f32 %v1897
      %v1962 = vcvt.s32.f32 %v1898
      %v1963 = vcvt.s32.f32 %v1899
      %v1964 = vcvt.s32.f32 %v1900
      %v1965 = vcvt.s32.f32 %v1901
      %v1966 = vcvt.s32.f32 %v1902
      %v1967 = vcvt.s32.f32 %v1903
      %v1968 = vcvt.s32.f32 %v1904
      %v1969 = vcvt.s32.f32 %v1905
      %v1970 = vcvt.s32.f32 %v1906
      %v1971 = vcvt.s32.f32 %v1907
      %v1972 = vcvt.s32.f32 %v1908
      %v1973 = vcvt.s32.f32 %v1909
      %v1974 = vadd.s32 %v260, 16
      %v1975 = vadd.s32 %v261, 16
      %vm1976 = vcmp.eq.s32.totalorder %v227, %v1974
      %vm1977 = vcmp.eq.s32.totalorder %v227, %v1975
      %vm1978 = vcmp.eq.s32.totalorder %v228, %v1974
      %vm1979 = vcmp.eq.s32.totalorder %v228, %v1975
      %vm1980 = vcmp.eq.s32.totalorder %v229, %v1974
      %vm1981 = vcmp.eq.s32.totalorder %v229, %v1975
      %vm1982 = vcmp.eq.s32.totalorder %v230, %v1974
      %vm1983 = vcmp.eq.s32.totalorder %v230, %v1975
      %vm1984 = vcmp.eq.s32.totalorder %v231, %v1974
      %vm1985 = vcmp.eq.s32.totalorder %v231, %v1975
      %vm1986 = vcmp.eq.s32.totalorder %v232, %v1974
      %vm1987 = vcmp.eq.s32.totalorder %v232, %v1975
      %vm1988 = vcmp.eq.s32.totalorder %v233, %v1974
      %vm1989 = vcmp.eq.s32.totalorder %v233, %v1975
      %vm1990 = vcmp.eq.s32.totalorder %v234, %v1974
      %vm1991 = vcmp.eq.s32.totalorder %v234, %v1975
      %vm1992 = vcmp.eq.s32.totalorder %v235, %v1974
      %vm1993 = vcmp.eq.s32.totalorder %v235, %v1975
      %vm1994 = vcmp.eq.s32.totalorder %v236, %v1974
      %vm1995 = vcmp.eq.s32.totalorder %v236, %v1975
      %vm1996 = vcmp.eq.s32.totalorder %v237, %v1974
      %vm1997 = vcmp.eq.s32.totalorder %v237, %v1975
      %vm1998 = vcmp.eq.s32.totalorder %v238, %v1974
      %vm1999 = vcmp.eq.s32.totalorder %v238, %v1975
      %vm2000 = vcmp.eq.s32.totalorder %v239, %v1974
      %vm2001 = vcmp.eq.s32.totalorder %v239, %v1975
      %vm2002 = vcmp.eq.s32.totalorder %v240, %v1974
      %vm2003 = vcmp.eq.s32.totalorder %v240, %v1975
      %vm2004 = vcmp.eq.s32.totalorder %v241, %v1974
      %vm2005 = vcmp.eq.s32.totalorder %v241, %v1975
      %vm2006 = vcmp.eq.s32.totalorder %v242, %v1974
      %vm2007 = vcmp.eq.s32.totalorder %v242, %v1975
      %vm2008 = vcmp.eq.s32.totalorder %v243, %v1974
      %vm2009 = vcmp.eq.s32.totalorder %v243, %v1975
      %vm2010 = vcmp.eq.s32.totalorder %v244, %v1974
      %vm2011 = vcmp.eq.s32.totalorder %v244, %v1975
      %vm2012 = vcmp.eq.s32.totalorder %v245, %v1974
      %vm2013 = vcmp.eq.s32.totalorder %v245, %v1975
      %vm2014 = vcmp.eq.s32.totalorder %v246, %v1974
      %vm2015 = vcmp.eq.s32.totalorder %v246, %v1975
      %vm2016 = vcmp.eq.s32.totalorder %v247, %v1974
      %vm2017 = vcmp.eq.s32.totalorder %v247, %v1975
      %vm2018 = vcmp.eq.s32.totalorder %v248, %v1974
      %vm2019 = vcmp.eq.s32.totalorder %v248, %v1975
      %vm2020 = vcmp.eq.s32.totalorder %v249, %v1974
      %vm2021 = vcmp.eq.s32.totalorder %v249, %v1975
      %vm2022 = vcmp.eq.s32.totalorder %v250, %v1974
      %vm2023 = vcmp.eq.s32.totalorder %v250, %v1975
      %vm2024 = vcmp.eq.s32.totalorder %v251, %v1974
      %vm2025 = vcmp.eq.s32.totalorder %v251, %v1975
      %vm2026 = vcmp.eq.s32.totalorder %v252, %v1974
      %vm2027 = vcmp.eq.s32.totalorder %v252, %v1975
      %vm2028 = vcmp.eq.s32.totalorder %v253, %v1974
      %vm2029 = vcmp.eq.s32.totalorder %v253, %v1975
      %vm2030 = vcmp.eq.s32.totalorder %v254, %v1974
      %vm2031 = vcmp.eq.s32.totalorder %v254, %v1975
      %vm2032 = vcmp.eq.s32.totalorder %v255, %v1974
      %vm2033 = vcmp.eq.s32.totalorder %v255, %v1975
      %vm2034 = vcmp.eq.s32.totalorder %v256, %v1974
      %vm2035 = vcmp.eq.s32.totalorder %v256, %v1975
      %vm2036 = vcmp.eq.s32.totalorder %v257, %v1974
      %vm2037 = vcmp.eq.s32.totalorder %v257, %v1975
      %vm2038 = vcmp.eq.s32.totalorder %v258, %v1974
      %vm2039 = vcmp.eq.s32.totalorder %v258, %v1975
      %v2040 = vsel %vm1976, 1, 0
      %v2041 = vsel %vm1977, 1, 0
      %v2042 = vsel %vm1978, 1, 0
      %v2043 = vsel %vm1979, 1, 0
      %v2044 = vsel %vm1980, 1, 0
      %v2045 = vsel %vm1981, 1, 0
      %v2046 = vsel %vm1982, 1, 0
      %v2047 = vsel %vm1983, 1, 0
      %v2048 = vsel %vm1984, 1, 0
      %v2049 = vsel %vm1985, 1, 0
      %v2050 = vsel %vm1986, 1, 0
      %v2051 = vsel %vm1987, 1, 0
      %v2052 = vsel %vm1988, 1, 0
      %v2053 = vsel %vm1989, 1, 0
      %v2054 = vsel %vm1990, 1, 0
      %v2055 = vsel %vm1991, 1, 0
      %v2056 = vsel %vm1992, 1, 0
      %v2057 = vsel %vm1993, 1, 0
      %v2058 = vsel %vm1994, 1, 0
      %v2059 = vsel %vm1995, 1, 0
      %v2060 = vsel %vm1996, 1, 0
      %v2061 = vsel %vm1997, 1, 0
      %v2062 = vsel %vm1998, 1, 0
      %v2063 = vsel %vm1999, 1, 0
      %v2064 = vsel %vm2000, 1, 0
      %v2065 = vsel %vm2001, 1, 0
      %v2066 = vsel %vm2002, 1, 0
      %v2067 = vsel %vm2003, 1, 0
      %v2068 = vsel %vm2004, 1, 0
      %v2069 = vsel %vm2005, 1, 0
      %v2070 = vsel %vm2006, 1, 0
      %v2071 = vsel %vm2007, 1, 0
      %v2072 = vsel %vm2008, 1, 0
      %v2073 = vsel %vm2009, 1, 0
      %v2074 = vsel %vm2010, 1, 0
      %v2075 = vsel %vm2011, 1, 0
      %v2076 = vsel %vm2012, 1, 0
      %v2077 = vsel %vm2013, 1, 0
      %v2078 = vsel %vm2014, 1, 0
      %v2079 = vsel %vm2015, 1, 0
      %v2080 = vsel %vm2016, 1, 0
      %v2081 = vsel %vm2017, 1, 0
      %v2082 = vsel %vm2018, 1, 0
      %v2083 = vsel %vm2019, 1, 0
      %v2084 = vsel %vm2020, 1, 0
      %v2085 = vsel %vm2021, 1, 0
      %v2086 = vsel %vm2022, 1, 0
      %v2087 = vsel %vm2023, 1, 0
      %v2088 = vsel %vm2024, 1, 0
      %v2089 = vsel %vm2025, 1, 0
      %v2090 = vsel %vm2026, 1, 0
      %v2091 = vsel %vm2027, 1, 0
      %v2092 = vsel %vm2028, 1, 0
      %v2093 = vsel %vm2029, 1, 0
      %v2094 = vsel %vm2030, 1, 0
      %v2095 = vsel %vm2031, 1, 0
      %v2096 = vsel %vm2032, 1, 0
      %v2097 = vsel %vm2033, 1, 0
      %v2098 = vsel %vm2034, 1, 0
      %v2099 = vsel %vm2035, 1, 0
      %v2100 = vsel %vm2036, 1, 0
      %v2101 = vsel %vm2037, 1, 0
      %v2102 = vsel %vm2038, 1, 0
      %v2103 = vsel %vm2039, 1, 0
      %v2104 = vcvt.s32.f32 %v2040
      %v2105 = vcvt.s32.f32 %v2041
      %v2106 = vcvt.s32.f32 %v2042
      %v2107 = vcvt.s32.f32 %v2043
      %v2108 = vcvt.s32.f32 %v2044
      %v2109 = vcvt.s32.f32 %v2045
      %v2110 = vcvt.s32.f32 %v2046
      %v2111 = vcvt.s32.f32 %v2047
      %v2112 = vcvt.s32.f32 %v2048
      %v2113 = vcvt.s32.f32 %v2049
      %v2114 = vcvt.s32.f32 %v2050
      %v2115 = vcvt.s32.f32 %v2051
      %v2116 = vcvt.s32.f32 %v2052
      %v2117 = vcvt.s32.f32 %v2053
      %v2118 = vcvt.s32.f32 %v2054
      %v2119 = vcvt.s32.f32 %v2055
      %v2120 = vcvt.s32.f32 %v2056
      %v2121 = vcvt.s32.f32 %v2057
      %v2122 = vcvt.s32.f32 %v2058
      %v2123 = vcvt.s32.f32 %v2059
      %v2124 = vcvt.s32.f32 %v2060
      %v2125 = vcvt.s32.f32 %v2061
      %v2126 = vcvt.s32.f32 %v2062
      %v2127 = vcvt.s32.f32 %v2063
      %v2128 = vcvt.s32.f32 %v2064
      %v2129 = vcvt.s32.f32 %v2065
      %v2130 = vcvt.s32.f32 %v2066
      %v2131 = vcvt.s32.f32 %v2067
      %v2132 = vcvt.s32.f32 %v2068
      %v2133 = vcvt.s32.f32 %v2069
      %v2134 = vcvt.s32.f32 %v2070
      %v2135 = vcvt.s32.f32 %v2071
      %v2136 = vcvt.s32.f32 %v2072
      %v2137 = vcvt.s32.f32 %v2073
      %v2138 = vcvt.s32.f32 %v2074
      %v2139 = vcvt.s32.f32 %v2075
      %v2140 = vcvt.s32.f32 %v2076
      %v2141 = vcvt.s32.f32 %v2077
      %v2142 = vcvt.s32.f32 %v2078
      %v2143 = vcvt.s32.f32 %v2079
      %v2144 = vcvt.s32.f32 %v2080
      %v2145 = vcvt.s32.f32 %v2081
      %v2146 = vcvt.s32.f32 %v2082
      %v2147 = vcvt.s32.f32 %v2083
      %v2148 = vcvt.s32.f32 %v2084
      %v2149 = vcvt.s32.f32 %v2085
      %v2150 = vcvt.s32.f32 %v2086
      %v2151 = vcvt.s32.f32 %v2087
      %v2152 = vcvt.s32.f32 %v2088
      %v2153 = vcvt.s32.f32 %v2089
      %v2154 = vcvt.s32.f32 %v2090
      %v2155 = vcvt.s32.f32 %v2091
      %v2156 = vcvt.s32.f32 %v2092
      %v2157 = vcvt.s32.f32 %v2093
      %v2158 = vcvt.s32.f32 %v2094
      %v2159 = vcvt.s32.f32 %v2095
      %v2160 = vcvt.s32.f32 %v2096
      %v2161 = vcvt.s32.f32 %v2097
      %v2162 = vcvt.s32.f32 %v2098
      %v2163 = vcvt.s32.f32 %v2099
      %v2164 = vcvt.s32.f32 %v2100
      %v2165 = vcvt.s32.f32 %v2101
      %v2166 = vcvt.s32.f32 %v2102
      %v2167 = vcvt.s32.f32 %v2103
      %v2168 = vadd.s32 %v260, 17
      %v2169 = vadd.s32 %v261, 17
      %vm2170 = vcmp.eq.s32.totalorder %v227, %v2168
      %vm2171 = vcmp.eq.s32.totalorder %v227, %v2169
      %vm2172 = vcmp.eq.s32.totalorder %v228, %v2168
      %vm2173 = vcmp.eq.s32.totalorder %v228, %v2169
      %vm2174 = vcmp.eq.s32.totalorder %v229, %v2168
      %vm2175 = vcmp.eq.s32.totalorder %v229, %v2169
      %vm2176 = vcmp.eq.s32.totalorder %v230, %v2168
      %vm2177 = vcmp.eq.s32.totalorder %v230, %v2169
      %vm2178 = vcmp.eq.s32.totalorder %v231, %v2168
      %vm2179 = vcmp.eq.s32.totalorder %v231, %v2169
      %vm2180 = vcmp.eq.s32.totalorder %v232, %v2168
      %vm2181 = vcmp.eq.s32.totalorder %v232, %v2169
      %vm2182 = vcmp.eq.s32.totalorder %v233, %v2168
      %vm2183 = vcmp.eq.s32.totalorder %v233, %v2169
      %vm2184 = vcmp.eq.s32.totalorder %v234, %v2168
      %vm2185 = vcmp.eq.s32.totalorder %v234, %v2169
      %vm2186 = vcmp.eq.s32.totalorder %v235, %v2168
      %vm2187 = vcmp.eq.s32.totalorder %v235, %v2169
      %vm2188 = vcmp.eq.s32.totalorder %v236, %v2168
      %vm2189 = vcmp.eq.s32.totalorder %v236, %v2169
      %vm2190 = vcmp.eq.s32.totalorder %v237, %v2168
      %vm2191 = vcmp.eq.s32.totalorder %v237, %v2169
      %vm2192 = vcmp.eq.s32.totalorder %v238, %v2168
      %vm2193 = vcmp.eq.s32.totalorder %v238, %v2169
      %vm2194 = vcmp.eq.s32.totalorder %v239, %v2168
      %vm2195 = vcmp.eq.s32.totalorder %v239, %v2169
      %vm2196 = vcmp.eq.s32.totalorder %v240, %v2168
      %vm2197 = vcmp.eq.s32.totalorder %v240, %v2169
      %vm2198 = vcmp.eq.s32.totalorder %v241, %v2168
      %vm2199 = vcmp.eq.s32.totalorder %v241, %v2169
      %vm2200 = vcmp.eq.s32.totalorder %v242, %v2168
      %vm2201 = vcmp.eq.s32.totalorder %v242, %v2169
      %vm2202 = vcmp.eq.s32.totalorder %v243, %v2168
      %vm2203 = vcmp.eq.s32.totalorder %v243, %v2169
      %vm2204 = vcmp.eq.s32.totalorder %v244, %v2168
      %vm2205 = vcmp.eq.s32.totalorder %v244, %v2169
      %vm2206 = vcmp.eq.s32.totalorder %v245, %v2168
      %vm2207 = vcmp.eq.s32.totalorder %v245, %v2169
      %vm2208 = vcmp.eq.s32.totalorder %v246, %v2168
      %vm2209 = vcmp.eq.s32.totalorder %v246, %v2169
      %vm2210 = vcmp.eq.s32.totalorder %v247, %v2168
      %vm2211 = vcmp.eq.s32.totalorder %v247, %v2169
      %vm2212 = vcmp.eq.s32.totalorder %v248, %v2168
      %vm2213 = vcmp.eq.s32.totalorder %v248, %v2169
      %vm2214 = vcmp.eq.s32.totalorder %v249, %v2168
      %vm2215 = vcmp.eq.s32.totalorder %v249, %v2169
      %vm2216 = vcmp.eq.s32.totalorder %v250, %v2168
      %vm2217 = vcmp.eq.s32.totalorder %v250, %v2169
      %vm2218 = vcmp.eq.s32.totalorder %v251, %v2168
      %vm2219 = vcmp.eq.s32.totalorder %v251, %v2169
      %vm2220 = vcmp.eq.s32.totalorder %v252, %v2168
      %vm2221 = vcmp.eq.s32.totalorder %v252, %v2169
      %vm2222 = vcmp.eq.s32.totalorder %v253, %v2168
      %vm2223 = vcmp.eq.s32.totalorder %v253, %v2169
      %vm2224 = vcmp.eq.s32.totalorder %v254, %v2168
      %vm2225 = vcmp.eq.s32.totalorder %v254, %v2169
      %vm2226 = vcmp.eq.s32.totalorder %v255, %v2168
      %vm2227 = vcmp.eq.s32.totalorder %v255, %v2169
      %vm2228 = vcmp.eq.s32.totalorder %v256, %v2168
      %vm2229 = vcmp.eq.s32.totalorder %v256, %v2169
      %vm2230 = vcmp.eq.s32.totalorder %v257, %v2168
      %vm2231 = vcmp.eq.s32.totalorder %v257, %v2169
      %vm2232 = vcmp.eq.s32.totalorder %v258, %v2168
      %vm2233 = vcmp.eq.s32.totalorder %v258, %v2169
      %vm2234 = vmand %vm2170, %vm814
      %vm2235 = vmand %vm2171, %vm815
      %vm2236 = vmand %vm2172, %vm814
      %vm2237 = vmand %vm2173, %vm815
      %vm2238 = vmand %vm2174, %vm814
      %vm2239 = vmand %vm2175, %vm815
      %vm2240 = vmand %vm2176, %vm814
      %vm2241 = vmand %vm2177, %vm815
      %vm2242 = vmand %vm2178, %vm814
      %vm2243 = vmand %vm2179, %vm815
      %vm2244 = vmand %vm2180, %vm814
      %vm2245 = vmand %vm2181, %vm815
      %vm2246 = vmand %vm2182, %vm814
      %vm2247 = vmand %vm2183, %vm815
      %vm2248 = vmand %vm2184, %vm814
      %vm2249 = vmand %vm2185, %vm815
      %vm2250 = vmand %vm2186, %vm814
      %vm2251 = vmand %vm2187, %vm815
      %vm2252 = vmand %vm2188, %vm814
      %vm2253 = vmand %vm2189, %vm815
      %vm2254 = vmand %vm2190, %vm814
      %vm2255 = vmand %vm2191, %vm815
      %vm2256 = vmand %vm2192, %vm814
      %vm2257 = vmand %vm2193, %vm815
      %vm2258 = vmand %vm2194, %vm814
      %vm2259 = vmand %vm2195, %vm815
      %vm2260 = vmand %vm2196, %vm814
      %vm2261 = vmand %vm2197, %vm815
      %vm2262 = vmand %vm2198, %vm814
      %vm2263 = vmand %vm2199, %vm815
      %vm2264 = vmand %vm2200, %vm814
      %vm2265 = vmand %vm2201, %vm815
      %vm2266 = vmand %vm2202, %vm814
      %vm2267 = vmand %vm2203, %vm815
      %vm2268 = vmand %vm2204, %vm814
      %vm2269 = vmand %vm2205, %vm815
      %vm2270 = vmand %vm2206, %vm814
      %vm2271 = vmand %vm2207, %vm815
      %vm2272 = vmand %vm2208, %vm814
      %vm2273 = vmand %vm2209, %vm815
      %vm2274 = vmand %vm2210, %vm814
      %vm2275 = vmand %vm2211, %vm815
      %vm2276 = vmand %vm2212, %vm814
      %vm2277 = vmand %vm2213, %vm815
      %vm2278 = vmand %vm2214, %vm814
      %vm2279 = vmand %vm2215, %vm815
      %vm2280 = vmand %vm2216, %vm814
      %vm2281 = vmand %vm2217, %vm815
      %vm2282 = vmand %vm2218, %vm814
      %vm2283 = vmand %vm2219, %vm815
      %vm2284 = vmand %vm2220, %vm814
      %vm2285 = vmand %vm2221, %vm815
      %vm2286 = vmand %vm2222, %vm814
      %vm2287 = vmand %vm2223, %vm815
      %vm2288 = vmand %vm2224, %vm814
      %vm2289 = vmand %vm2225, %vm815
      %vm2290 = vmand %vm2226, %vm814
      %vm2291 = vmand %vm2227, %vm815
      %vm2292 = vmand %vm2228, %vm814
      %vm2293 = vmand %vm2229, %vm815
      %vm2294 = vmand %vm2230, %vm814
      %vm2295 = vmand %vm2231, %vm815
      %vm2296 = vmand %vm2232, %vm814
      %vm2297 = vmand %vm2233, %vm815
      %v2298 = vsel %vm2234, 1, 0
      %v2299 = vsel %vm2235, 1, 0
      %v2300 = vsel %vm2236, 1, 0
      %v2301 = vsel %vm2237, 1, 0
      %v2302 = vsel %vm2238, 1, 0
      %v2303 = vsel %vm2239, 1, 0
      %v2304 = vsel %vm2240, 1, 0
      %v2305 = vsel %vm2241, 1, 0
      %v2306 = vsel %vm2242, 1, 0
      %v2307 = vsel %vm2243, 1, 0
      %v2308 = vsel %vm2244, 1, 0
      %v2309 = vsel %vm2245, 1, 0
      %v2310 = vsel %vm2246, 1, 0
      %v2311 = vsel %vm2247, 1, 0
      %v2312 = vsel %vm2248, 1, 0
      %v2313 = vsel %vm2249, 1, 0
      %v2314 = vsel %vm2250, 1, 0
      %v2315 = vsel %vm2251, 1, 0
      %v2316 = vsel %vm2252, 1, 0
      %v2317 = vsel %vm2253, 1, 0
      %v2318 = vsel %vm2254, 1, 0
      %v2319 = vsel %vm2255, 1, 0
      %v2320 = vsel %vm2256, 1, 0
      %v2321 = vsel %vm2257, 1, 0
      %v2322 = vsel %vm2258, 1, 0
      %v2323 = vsel %vm2259, 1, 0
      %v2324 = vsel %vm2260, 1, 0
      %v2325 = vsel %vm2261, 1, 0
      %v2326 = vsel %vm2262, 1, 0
      %v2327 = vsel %vm2263, 1, 0
      %v2328 = vsel %vm2264, 1, 0
      %v2329 = vsel %vm2265, 1, 0
      %v2330 = vsel %vm2266, 1, 0
      %v2331 = vsel %vm2267, 1, 0
      %v2332 = vsel %vm2268, 1, 0
      %v2333 = vsel %vm2269, 1, 0
      %v2334 = vsel %vm2270, 1, 0
      %v2335 = vsel %vm2271, 1, 0
      %v2336 = vsel %vm2272, 1, 0
      %v2337 = vsel %vm2273, 1, 0
      %v2338 = vsel %vm2274, 1, 0
      %v2339 = vsel %vm2275, 1, 0
      %v2340 = vsel %vm2276, 1, 0
      %v2341 = vsel %vm2277, 1, 0
      %v2342 = vsel %vm2278, 1, 0
      %v2343 = vsel %vm2279, 1, 0
      %v2344 = vsel %vm2280, 1, 0
      %v2345 = vsel %vm2281, 1, 0
      %v2346 = vsel %vm2282, 1, 0
      %v2347 = vsel %vm2283, 1, 0
      %v2348 = vsel %vm2284, 1, 0
      %v2349 = vsel %vm2285, 1, 0
      %v2350 = vsel %vm2286, 1, 0
      %v2351 = vsel %vm2287, 1, 0
      %v2352 = vsel %vm2288, 1, 0
      %v2353 = vsel %vm2289, 1, 0
      %v2354 = vsel %vm2290, 1, 0
      %v2355 = vsel %vm2291, 1, 0
      %v2356 = vsel %vm2292, 1, 0
      %v2357 = vsel %vm2293, 1, 0
      %v2358 = vsel %vm2294, 1, 0
      %v2359 = vsel %vm2295, 1, 0
      %v2360 = vsel %vm2296, 1, 0
      %v2361 = vsel %vm2297, 1, 0
      %v2362 = vcvt.s32.f32 %v2298
      %v2363 = vcvt.s32.f32 %v2299
      %v2364 = vcvt.s32.f32 %v2300
      %v2365 = vcvt.s32.f32 %v2301
      %v2366 = vcvt.s32.f32 %v2302
      %v2367 = vcvt.s32.f32 %v2303
      %v2368 = vcvt.s32.f32 %v2304
      %v2369 = vcvt.s32.f32 %v2305
      %v2370 = vcvt.s32.f32 %v2306
      %v2371 = vcvt.s32.f32 %v2307
      %v2372 = vcvt.s32.f32 %v2308
      %v2373 = vcvt.s32.f32 %v2309
      %v2374 = vcvt.s32.f32 %v2310
      %v2375 = vcvt.s32.f32 %v2311
      %v2376 = vcvt.s32.f32 %v2312
      %v2377 = vcvt.s32.f32 %v2313
      %v2378 = vcvt.s32.f32 %v2314
      %v2379 = vcvt.s32.f32 %v2315
      %v2380 = vcvt.s32.f32 %v2316
      %v2381 = vcvt.s32.f32 %v2317
      %v2382 = vcvt.s32.f32 %v2318
      %v2383 = vcvt.s32.f32 %v2319
      %v2384 = vcvt.s32.f32 %v2320
      %v2385 = vcvt.s32.f32 %v2321
      %v2386 = vcvt.s32.f32 %v2322
      %v2387 = vcvt.s32.f32 %v2323
      %v2388 = vcvt.s32.f32 %v2324
      %v2389 = vcvt.s32.f32 %v2325
      %v2390 = vcvt.s32.f32 %v2326
      %v2391 = vcvt.s32.f32 %v2327
      %v2392 = vcvt.s32.f32 %v2328
      %v2393 = vcvt.s32.f32 %v2329
      %v2394 = vcvt.s32.f32 %v2330
      %v2395 = vcvt.s32.f32 %v2331
      %v2396 = vcvt.s32.f32 %v2332
      %v2397 = vcvt.s32.f32 %v2333
      %v2398 = vcvt.s32.f32 %v2334
      %v2399 = vcvt.s32.f32 %v2335
      %v2400 = vcvt.s32.f32 %v2336
      %v2401 = vcvt.s32.f32 %v2337
      %v2402 = vcvt.s32.f32 %v2338
      %v2403 = vcvt.s32.f32 %v2339
      %v2404 = vcvt.s32.f32 %v2340
      %v2405 = vcvt.s32.f32 %v2341
      %v2406 = vcvt.s32.f32 %v2342
      %v2407 = vcvt.s32.f32 %v2343
      %v2408 = vcvt.s32.f32 %v2344
      %v2409 = vcvt.s32.f32 %v2345
      %v2410 = vcvt.s32.f32 %v2346
      %v2411 = vcvt.s32.f32 %v2347
      %v2412 = vcvt.s32.f32 %v2348
      %v2413 = vcvt.s32.f32 %v2349
      %v2414 = vcvt.s32.f32 %v2350
      %v2415 = vcvt.s32.f32 %v2351
      %v2416 = vcvt.s32.f32 %v2352
      %v2417 = vcvt.s32.f32 %v2353
      %v2418 = vcvt.s32.f32 %v2354
      %v2419 = vcvt.s32.f32 %v2355
      %v2420 = vcvt.s32.f32 %v2356
      %v2421 = vcvt.s32.f32 %v2357
      %v2422 = vcvt.s32.f32 %v2358
      %v2423 = vcvt.s32.f32 %v2359
      %v2424 = vcvt.s32.f32 %v2360
      %v2425 = vcvt.s32.f32 %v2361
      %v2426 = vld [vmem:[%s1] sm:$0xff]
      %v2427 = vld [vmem:[%s1 + $0x8] sm:$0xff]
      %v2428 = vld [vmem:[%s1 + $0x10] sm:$0xff]
      %v2429 = vld [vmem:[%s1 + $0x18] sm:$0xff]
      %v2430 = vld [vmem:[%s1 + $0x20] sm:$0xff]
      %v2431 = vld [vmem:[%s1 + $0x28] sm:$0xff]
      %v2432 = vld [vmem:[%s1 + $0x30] sm:$0xff]
      %v2433 = vld [vmem:[%s1 + $0x38] sm:$0xff]
      %v2434 = vld [vmem:[%s1 + $0x40] sm:$0xff]
      %v2436 = vcombine.high %v225, %v225
      %vm2437 = vcmask 31744
      %v2439 = vsel %vm2437, %v2426, 0
      %v2442 = vsel %vm2437, %v2427, 0
      %v2445 = vsel %vm2437, %v2428, 0
      %v2448 = vsel %vm2437, %v2429, 0
      %v2451 = vsel %vm2437, %v2430, 0
      %v2454 = vsel %vm2437, %v2431, 0
      %v2457 = vsel %vm2437, %v2432, 0
      %v2460 = vsel %vm2437, %v2433, 0
      %v2463 = vsel %vm2437, %v2434, 0
      %vm2465 = vcmask 1043456
      %v2466 = vsel %vm2465, %v225, 0
      %v2468 = vsel %vm2465, %v2436, 0
      %2470 = vmatprep.subr.mxu0 0.0
      %2471 = vmatpush1.msra.mxu0 0.0
      %2472 = vmatprep.subr.mxu0 0.0
      %2473 = vmatpush1.msra.mxu0 0.0
      %2474 = vmatprep.subr.mxu0 0.0
      %2475 = vmatpush1.msra.mxu0 0.0
      %2476 = vmatprep.subr.mxu0 0.0
      %2477 = vmatpush1.msra.mxu0 0.0
      %2478 = vmatprep.subr.mxu0 0.0
      %2479 = vmatpush1.msra.mxu0 0.0
      %2480 = vmatprep.subr.mxu0 0.0
      %2481 = vmatpush1.msra.mxu0 0.0
      %2482 = vmatprep.subr.mxu0 0.0
      %2483 = vmatpush1.msra.mxu0 0.0
      %2484 = vmatprep.subr.mxu0 0.0
      %2485 = vmatpush1.msra.mxu0 0.0
      %2486 = vmatprep.subr.mxu0 0.0
      %2487 = vmatpush1.msra.mxu0 0.0
      %2488 = vmatprep.subr.mxu0 0.0
      %2489 = vmatpush1.msra.mxu0 0.0
      %2490 = vmatprep.subr.mxu0 0.0
      %2491 = vmatpush1.msra.mxu0 0.0
      %2492 = vmatprep.subr.mxu0 0.0
      %2493 = vmatpush1.msra.mxu0 0.0
      %2494 = vmatprep.subr.mxu0 0.0
      %2495 = vmatpush1.msra.mxu0 0.0
      %2496 = vmatprep.subr.mxu0 0.0
      %2497 = vmatpush1.msra.mxu0 0.0
      %2498 = vmatprep.subr.mxu0 0.0
      %2499 = vmatpush1.msra.mxu0 0.0
      %2500 = vmatprep.subr.mxu0 %v2468
      %2501 = vmatpush1.msra.mxu0 %v2466
      %2502 = vmatprep.subr.mxu0 0.0
      %2503 = vmatpush2.msra.mxu0 0.0
      %2504 = vmatprep.subr.mxu0 0.0
      %2505 = vmatpush2.msra.mxu0 0.0
      %2506 = vmatprep.subr.mxu0 0.0
      %2507 = vmatpush2.msra.mxu0 0.0
      %2508 = vmatprep.subr.mxu0 0.0
      %2509 = vmatpush2.msra.mxu0 0.0
      %2510 = vmatprep.subr.mxu0 0.0
      %2511 = vmatpush2.msra.mxu0 0.0
      %2512 = vmatprep.subr.mxu0 0.0
      %2513 = vmatpush2.msra.mxu0 0.0
      %2514 = vmatprep.subr.mxu0 0.0
      %2515 = vmatpush2.msra.mxu0 0.0
      %2516 = vmatprep.subr.mxu0 0.0
      %2517 = vmatpush2.msra.mxu0 0.0
      %2518 = vmatprep.subr.mxu0 0.0
      %2519 = vmatpush2.msra.mxu0 0.0
      %2520 = vmatprep.subr.mxu0 0.0
      %2521 = vmatpush2.msra.mxu0 0.0
      %2522 = vmatprep.subr.mxu0 0.0
      %2523 = vmatpush2.msra.mxu0 0.0
      %2524 = vmatprep.subr.mxu0 0.0
      %2525 = vmatpush2.msra.mxu0 0.0
      %2526 = vmatprep.subr.mxu0 0.0
      %2527 = vmatpush2.msra.mxu0 0.0
      %2528 = vmatprep.subr.mxu0 0.0
      %2529 = vmatpush2.msra.mxu0 0.0
      %2530 = vmatprep.subr.mxu0 0.0
      %2531 = vmatpush2.msra.mxu0 0.0
      %2532 = vmatprep.subr.mxu0 0.0
      %2533 = vmatpush2.msra.mxu0 0.0
      %2534 = vmatprep.mubr.f32.mxu0 0.0
      %2535 = vmatmul.mubr.f32.gmra.mxu0 %v2439
      %v2536 = vpop.f32.mrf.mxu0
      %v2537 = vadd.f32 0.0, %v2536
      %v2538 = vpop.f32.mrf.mxu0
      %v2539 = vadd.f32 0.0, %v2538
      %2540 = vmatprep.mubr.f32.mxu0 0.0
      %2541 = vmatmul.mubr.f32.gmra.mxu0 %v2442
      %v2542 = vpop.f32.mrf.mxu0
      %v2543 = vadd.f32 0.0, %v2542
      %v2544 = vpop.f32.mrf.mxu0
      %v2545 = vadd.f32 0.0, %v2544
      %2546 = vmatprep.mubr.f32.mxu0 0.0
      %2547 = vmatmul.mubr.f32.gmra.mxu0 %v2445
      %v2548 = vpop.f32.mrf.mxu0
      %v2549 = vadd.f32 0.0, %v2548
      %v2550 = vpop.f32.mrf.mxu0
      %v2551 = vadd.f32 0.0, %v2550
      %2552 = vmatprep.mubr.f32.mxu0 0.0
      %2553 = vmatmul.mubr.f32.gmra.mxu0 %v2448
      %v2554 = vpop.f32.mrf.mxu0
      %v2555 = vadd.f32 0.0, %v2554
      %v2556 = vpop.f32.mrf.mxu0
      %v2557 = vadd.f32 0.0, %v2556
      %2558 = vmatprep.mubr.f32.mxu0 0.0
      %2559 = vmatmul.mubr.f32.gmra.mxu0 %v2451
      %v2560 = vpop.f32.mrf.mxu0
      %v2561 = vadd.f32 0.0, %v2560
      %v2562 = vpop.f32.mrf.mxu0
      %v2563 = vadd.f32 0.0, %v2562
      %2564 = vmatprep.mubr.f32.mxu0 0.0
      %2565 = vmatmul.mubr.f32.gmra.mxu0 %v2454
      %v2566 = vpop.f32.mrf.mxu0
      %v2567 = vadd.f32 0.0, %v2566
      %v2568 = vpop.f32.mrf.mxu0
      %v2569 = vadd.f32 0.0, %v2568
      %2570 = vmatprep.mubr.f32.mxu0 0.0
      %2571 = vmatmul.mubr.f32.gmra.mxu0 %v2457
      %v2572 = vpop.f32.mrf.mxu0
      %v2573 = vadd.f32 0.0, %v2572
      %v2574 = vpop.f32.mrf.mxu0
      %v2575 = vadd.f32 0.0, %v2574
      %2576 = vmatprep.mubr.f32.mxu0 0.0
      %2577 = vmatmul.mubr.f32.gmra.mxu0 %v2460
      %v2578 = vpop.f32.mrf.mxu0
      %v2579 = vadd.f32 0.0, %v2578
      %v2580 = vpop.f32.mrf.mxu0
      %v2581 = vadd.f32 0.0, %v2580
      %2582 = vmatprep.mubr.f32.mxu0 0.0
      %2583 = vmatmul.mubr.f32.gmra.mxu0 %v2463
      %v2584 = vpop.f32.mrf.mxu0
      %v2585 = vadd.f32 0.0, %v2584
      %v2586 = vpop.f32.mrf.mxu0
      %v2587 = vadd.f32 0.0, %v2586
      %2588 = vdwg.mxu0
      %2589 = vmatprep.subr.mxu0 %v711
      %2590 = vmatpush1.msra.mxu0 %v710
      %2591 = vmatprep.subr.mxu0 %v709
      %2592 = vmatpush1.msra.mxu0 %v708
      %2593 = vmatprep.subr.mxu0 %v707
      %2594 = vmatpush1.msra.mxu0 %v706
      %2595 = vmatprep.subr.mxu0 %v705
      %2596 = vmatpush1.msra.mxu0 %v704
      %2597 = vmatprep.subr.mxu0 %v703
      %2598 = vmatpush1.msra.mxu0 %v702
      %2599 = vmatprep.subr.mxu0 %v701
      %2600 = vmatpush1.msra.mxu0 %v700
      %2601 = vmatprep.subr.mxu0 %v699
      %2602 = vmatpush1.msra.mxu0 %v698
      %2603 = vmatprep.subr.mxu0 %v697
      %2604 = vmatpush1.msra.mxu0 %v696
      %2605 = vmatprep.subr.mxu0 %v695
      %2606 = vmatpush1.msra.mxu0 %v694
      %2607 = vmatprep.subr.mxu0 %v693
      %2608 = vmatpush1.msra.mxu0 %v692
      %2609 = vmatprep.subr.mxu0 %v691
      %2610 = vmatpush1.msra.mxu0 %v690
      %2611 = vmatprep.subr.mxu0 %v689
      %2612 = vmatpush1.msra.mxu0 %v688
      %2613 = vmatprep.subr.mxu0 %v687
      %2614 = vmatpush1.msra.mxu0 %v686
      %2615 = vmatprep.subr.mxu0 %v685
      %2616 = vmatpush1.msra.mxu0 %v684
      %2617 = vmatprep.subr.mxu0 %v683
      %2618 = vmatpush1.msra.mxu0 %v682
      %2619 = vmatprep.subr.mxu0 %v681
      %2620 = vmatpush1.msra.mxu0 %v680
      %2621 = vmatprep.subr.mxu0 %v743
      %2622 = vmatpush2.msra.mxu0 %v742
      %2623 = vmatprep.subr.mxu0 %v741
      %2624 = vmatpush2.msra.mxu0 %v740
      %2625 = vmatprep.subr.mxu0 %v739
      %2626 = vmatpush2.msra.mxu0 %v738
      %2627 = vmatprep.subr.mxu0 %v737
      %2628 = vmatpush2.msra.mxu0 %v736
      %2629 = vmatprep.subr.mxu0 %v735
      %2630 = vmatpush2.msra.mxu0 %v734
      %2631 = vmatprep.subr.mxu0 %v733
      %2632 = vmatpush2.msra.mxu0 %v732
      %2633 = vmatprep.subr.mxu0 %v731
      %2634 = vmatpush2.msra.mxu0 %v730
      %2635 = vmatprep.subr.mxu0 %v729
      %2636 = vmatpush2.msra.mxu0 %v728
      %2637 = vmatprep.subr.mxu0 %v727
      %2638 = vmatpush2.msra.mxu0 %v726
      %2639 = vmatprep.subr.mxu0 %v725
      %2640 = vmatpush2.msra.mxu0 %v724
      %2641 = vmatprep.subr.mxu0 %v723
      %2642 = vmatpush2.msra.mxu0 %v722
      %2643 = vmatprep.subr.mxu0 %v721
      %2644 = vmatpush2.msra.mxu0 %v720
      %2645 = vmatprep.subr.mxu0 %v719
      %2646 = vmatpush2.msra.mxu0 %v718
      %2647 = vmatprep.subr.mxu0 %v717
      %2648 = vmatpush2.msra.mxu0 %v716
      %2649 = vmatprep.subr.mxu0 %v715
      %2650 = vmatpush2.msra.mxu0 %v714
      %2651 = vmatprep.subr.mxu0 %v713
      %2652 = vmatpush2.msra.mxu0 %v712
      %2653 = vmatprep.mubr.f32.mxu0 %v2545
      %2654 = vmatmul.mubr.f32.gmra.mxu0 %v2543
      %v2655 = vpop.f32.mrf.mxu0
      %v2656 = vadd.f32 0.0, %v2655
      %v2657 = vpop.f32.mrf.mxu0
      %v2658 = vadd.f32 0.0, %v2657
      %2659 = vdwg.mxu0
      %2660 = vmatprep.subr.mxu0 %v517
      %2661 = vmatpush1.msra.mxu0 %v516
      %2662 = vmatprep.subr.mxu0 %v515
      %2663 = vmatpush1.msra.mxu0 %v514
      %2664 = vmatprep.subr.mxu0 %v513
      %2665 = vmatpush1.msra.mxu0 %v512
      %2666 = vmatprep.subr.mxu0 %v511
      %2667 = vmatpush1.msra.mxu0 %v510
      %2668 = vmatprep.subr.mxu0 %v509
      %2669 = vmatpush1.msra.mxu0 %v508
      %2670 = vmatprep.subr.mxu0 %v507
      %2671 = vmatpush1.msra.mxu0 %v506
      %2672 = vmatprep.subr.mxu0 %v505
      %2673 = vmatpush1.msra.mxu0 %v504
      %2674 = vmatprep.subr.mxu0 %v503
      %2675 = vmatpush1.msra.mxu0 %v502
      %2676 = vmatprep.subr.mxu0 %v501
      %2677 = vmatpush1.msra.mxu0 %v500
      %2678 = vmatprep.subr.mxu0 %v499
      %2679 = vmatpush1.msra.mxu0 %v498
      %2680 = vmatprep.subr.mxu0 %v497
      %2681 = vmatpush1.msra.mxu0 %v496
      %2682 = vmatprep.subr.mxu0 %v495
      %2683 = vmatpush1.msra.mxu0 %v494
      %2684 = vmatprep.subr.mxu0 %v493
      %2685 = vmatpush1.msra.mxu0 %v492
      %2686 = vmatprep.subr.mxu0 %v491
      %2687 = vmatpush1.msra.mxu0 %v490
      %2688 = vmatprep.subr.mxu0 %v489
      %2689 = vmatpush1.msra.mxu0 %v488
      %2690 = vmatprep.subr.mxu0 %v487
      %2691 = vmatpush1.msra.mxu0 %v486
      %2692 = vmatprep.subr.mxu0 %v549
      %2693 = vmatpush2.msra.mxu0 %v548
      %2694 = vmatprep.subr.mxu0 %v547
      %2695 = vmatpush2.msra.mxu0 %v546
      %2696 = vmatprep.subr.mxu0 %v545
      %2697 = vmatpush2.msra.mxu0 %v544
      %2698 = vmatprep.subr.mxu0 %v543
      %2699 = vmatpush2.msra.mxu0 %v542
      %2700 = vmatprep.subr.mxu0 %v541
      %2701 = vmatpush2.msra.mxu0 %v540
      %2702 = vmatprep.subr.mxu0 %v539
      %2703 = vmatpush2.msra.mxu0 %v538
      %2704 = vmatprep.subr.mxu0 %v537
      %2705 = vmatpush2.msra.mxu0 %v536
      %2706 = vmatprep.subr.mxu0 %v535
      %2707 = vmatpush2.msra.mxu0 %v534
      %2708 = vmatprep.subr.mxu0 %v533
      %2709 = vmatpush2.msra.mxu0 %v532
      %2710 = vmatprep.subr.mxu0 %v531
      %2711 = vmatpush2.msra.mxu0 %v530
      %2712 = vmatprep.subr.mxu0 %v529
      %2713 = vmatpush2.msra.mxu0 %v528
      %2714 = vmatprep.subr.mxu0 %v527
      %2715 = vmatpush2.msra.mxu0 %v526
      %2716 = vmatprep.subr.mxu0 %v525
      %2717 = vmatpush2.msra.mxu0 %v524
      %2718 = vmatprep.subr.mxu0 %v523
      %2719 = vmatpush2.msra.mxu0 %v522
      %2720 = vmatprep.subr.mxu0 %v521
      %2721 = vmatpush2.msra.mxu0 %v520
      %2722 = vmatprep.subr.mxu0 %v519
      %2723 = vmatpush2.msra.mxu0 %v518
      %2724 = vmatprep.mubr.f32.mxu0 %v2539
      %2725 = vmatmul.mubr.f32.gmra.mxu0 %v2537
      %v2726 = vpop.f32.mrf.mxu0
      %v2727 = vadd.f32 %v2656, %v2726
      %v2728 = vpop.f32.mrf.mxu0
      %v2729 = vadd.f32 %v2658, %v2728
      %2730 = vdwg.mxu0
      %2731 = vmatprep.subr.mxu0 %v975
      %2732 = vmatpush1.msra.mxu0 %v974
      %2733 = vmatprep.subr.mxu0 %v973
      %2734 = vmatpush1.msra.mxu0 %v972
      %2735 = vmatprep.subr.mxu0 %v971
      %2736 = vmatpush1.msra.mxu0 %v970
      %2737 = vmatprep.subr.mxu0 %v969
      %2738 = vmatpush1.msra.mxu0 %v968
      %2739 = vmatprep.subr.mxu0 %v967
      %2740 = vmatpush1.msra.mxu0 %v966
      %2741 = vmatprep.subr.mxu0 %v965
      %2742 = vmatpush1.msra.mxu0 %v964
      %2743 = vmatprep.subr.mxu0 %v963
      %2744 = vmatpush1.msra.mxu0 %v962
      %2745 = vmatprep.subr.mxu0 %v961
      %2746 = vmatpush1.msra.mxu0 %v960
      %2747 = vmatprep.subr.mxu0 %v959
      %2748 = vmatpush1.msra.mxu0 %v958
      %2749 = vmatprep.subr.mxu0 %v957
      %2750 = vmatpush1.msra.mxu0 %v956
      %2751 = vmatprep.subr.mxu0 %v955
      %2752 = vmatpush1.msra.mxu0 %v954
      %2753 = vmatprep.subr.mxu0 %v953
      %2754 = vmatpush1.msra.mxu0 %v952
      %2755 = vmatprep.subr.mxu0 %v951
      %2756 = vmatpush1.msra.mxu0 %v950
      %2757 = vmatprep.subr.mxu0 %v949
      %2758 = vmatpush1.msra.mxu0 %v948
      %2759 = vmatprep.subr.mxu0 %v947
      %2760 = vmatpush1.msra.mxu0 %v946
      %2761 = vmatprep.subr.mxu0 %v945
      %2762 = vmatpush1.msra.mxu0 %v944
      %2763 = vmatprep.subr.mxu0 %v1007
      %2764 = vmatpush2.msra.mxu0 %v1006
      %2765 = vmatprep.subr.mxu0 %v1005
      %2766 = vmatpush2.msra.mxu0 %v1004
      %2767 = vmatprep.subr.mxu0 %v1003
      %2768 = vmatpush2.msra.mxu0 %v1002
      %2769 = vmatprep.subr.mxu0 %v1001
      %2770 = vmatpush2.msra.mxu0 %v1000
      %2771 = vmatprep.subr.mxu0 %v999
      %2772 = vmatpush2.msra.mxu0 %v998
      %2773 = vmatprep.subr.mxu0 %v997
      %2774 = vmatpush2.msra.mxu0 %v996
      %2775 = vmatprep.subr.mxu0 %v995
      %2776 = vmatpush2.msra.mxu0 %v994
      %2777 = vmatprep.subr.mxu0 %v993
      %2778 = vmatpush2.msra.mxu0 %v992
      %2779 = vmatprep.subr.mxu0 %v991
      %2780 = vmatpush2.msra.mxu0 %v990
      %2781 = vmatprep.subr.mxu0 %v989
      %2782 = vmatpush2.msra.mxu0 %v988
      %2783 = vmatprep.subr.mxu0 %v987
      %2784 = vmatpush2.msra.mxu0 %v986
      %2785 = vmatprep.subr.mxu0 %v985
      %2786 = vmatpush2.msra.mxu0 %v984
      %2787 = vmatprep.subr.mxu0 %v983
      %2788 = vmatpush2.msra.mxu0 %v982
      %2789 = vmatprep.subr.mxu0 %v981
      %2790 = vmatpush2.msra.mxu0 %v980
      %2791 = vmatprep.subr.mxu0 %v979
      %2792 = vmatpush2.msra.mxu0 %v978
      %2793 = vmatprep.subr.mxu0 %v977
      %2794 = vmatpush2.msra.mxu0 %v976
      %2795 = vmatprep.mubr.f32.mxu0 %v2551
      %2796 = vmatmul.mubr.f32.gmra.mxu0 %v2549
      %v2797 = vpop.f32.mrf.mxu0
      %v2798 = vadd.f32 0.0, %v2797
      %v2799 = vpop.f32.mrf.mxu0
      %v2800 = vadd.f32 0.0, %v2799
      %2801 = vdwg.mxu0
      %v2802 = vadd.f32 %v2727, %v2798
      %v2803 = vadd.f32 %v2729, %v2800
      %2804 = vmatprep.subr.mxu0 %v1233
      %2805 = vmatpush1.msra.mxu0 %v1232
      %2806 = vmatprep.subr.mxu0 %v1231
      %2807 = vmatpush1.msra.mxu0 %v1230
      %2808 = vmatprep.subr.mxu0 %v1229
      %2809 = vmatpush1.msra.mxu0 %v1228
      %2810 = vmatprep.subr.mxu0 %v1227
      %2811 = vmatpush1.msra.mxu0 %v1226
      %2812 = vmatprep.subr.mxu0 %v1225
      %2813 = vmatpush1.msra.mxu0 %v1224
      %2814 = vmatprep.subr.mxu0 %v1223
      %2815 = vmatpush1.msra.mxu0 %v1222
      %2816 = vmatprep.subr.mxu0 %v1221
      %2817 = vmatpush1.msra.mxu0 %v1220
      %2818 = vmatprep.subr.mxu0 %v1219
      %2819 = vmatpush1.msra.mxu0 %v1218
      %2820 = vmatprep.subr.mxu0 %v1217
      %2821 = vmatpush1.msra.mxu0 %v1216
      %2822 = vmatprep.subr.mxu0 %v1215
      %2823 = vmatpush1.msra.mxu0 %v1214
      %2824 = vmatprep.subr.mxu0 %v1213
      %2825 = vmatpush1.msra.mxu0 %v1212
      %2826 = vmatprep.subr.mxu0 %v1211
      %2827 = vmatpush1.msra.mxu0 %v1210
      %2828 = vmatprep.subr.mxu0 %v1209
      %2829 = vmatpush1.msra.mxu0 %v1208
      %2830 = vmatprep.subr.mxu0 %v1207
      %2831 = vmatpush1.msra.mxu0 %v1206
      %2832 = vmatprep.subr.mxu0 %v1205
      %2833 = vmatpush1.msra.mxu0 %v1204
      %2834 = vmatprep.subr.mxu0 %v1203
      %2835 = vmatpush1.msra.mxu0 %v1202
      %2836 = vmatprep.subr.mxu0 %v1265
      %2837 = vmatpush2.msra.mxu0 %v1264
      %2838 = vmatprep.subr.mxu0 %v1263
      %2839 = vmatpush2.msra.mxu0 %v1262
      %2840 = vmatprep.subr.mxu0 %v1261
      %2841 = vmatpush2.msra.mxu0 %v1260
      %2842 = vmatprep.subr.mxu0 %v1259
      %2843 = vmatpush2.msra.mxu0 %v1258
      %2844 = vmatprep.subr.mxu0 %v1257
      %2845 = vmatpush2.msra.mxu0 %v1256
      %2846 = vmatprep.subr.mxu0 %v1255
      %2847 = vmatpush2.msra.mxu0 %v1254
      %2848 = vmatprep.subr.mxu0 %v1253
      %2849 = vmatpush2.msra.mxu0 %v1252
      %2850 = vmatprep.subr.mxu0 %v1251
      %2851 = vmatpush2.msra.mxu0 %v1250
      %2852 = vmatprep.subr.mxu0 %v1249
      %2853 = vmatpush2.msra.mxu0 %v1248
      %2854 = vmatprep.subr.mxu0 %v1247
      %2855 = vmatpush2.msra.mxu0 %v1246
      %2856 = vmatprep.subr.mxu0 %v1245
      %2857 = vmatpush2.msra.mxu0 %v1244
      %2858 = vmatprep.subr.mxu0 %v1243
      %2859 = vmatpush2.msra.mxu0 %v1242
      %2860 = vmatprep.subr.mxu0 %v1241
      %2861 = vmatpush2.msra.mxu0 %v1240
      %2862 = vmatprep.subr.mxu0 %v1239
      %2863 = vmatpush2.msra.mxu0 %v1238
      %2864 = vmatprep.subr.mxu0 %v1237
      %2865 = vmatpush2.msra.mxu0 %v1236
      %2866 = vmatprep.subr.mxu0 %v1235
      %2867 = vmatpush2.msra.mxu0 %v1234
      %2868 = vmatprep.mubr.f32.mxu0 %v2557
      %2869 = vmatmul.mubr.f32.gmra.mxu0 %v2555
      %v2870 = vpop.f32.mrf.mxu0
      %v2871 = vadd.f32 0.0, %v2870
      %v2872 = vpop.f32.mrf.mxu0
      %v2873 = vadd.f32 0.0, %v2872
      %2874 = vdwg.mxu0
      %v2875 = vadd.f32 %v2802, %v2871
      %v2876 = vadd.f32 %v2803, %v2873
      %2877 = vmatprep.subr.mxu0 %v1425
      %2878 = vmatpush1.msra.mxu0 %v1424
      %2879 = vmatprep.subr.mxu0 %v1423
      %2880 = vmatpush1.msra.mxu0 %v1422
      %2881 = vmatprep.subr.mxu0 %v1421
      %2882 = vmatpush1.msra.mxu0 %v1420
      %2883 = vmatprep.subr.mxu0 %v1419
      %2884 = vmatpush1.msra.mxu0 %v1418
      %2885 = vmatprep.subr.mxu0 %v1417
      %2886 = vmatpush1.msra.mxu0 %v1416
      %2887 = vmatprep.subr.mxu0 %v1415
      %2888 = vmatpush1.msra.mxu0 %v1414
      %2889 = vmatprep.subr.mxu0 %v1413
      %2890 = vmatpush1.msra.mxu0 %v1412
      %2891 = vmatprep.subr.mxu0 %v1411
      %2892 = vmatpush1.msra.mxu0 %v1410
      %2893 = vmatprep.subr.mxu0 %v1409
      %2894 = vmatpush1.msra.mxu0 %v1408
      %2895 = vmatprep.subr.mxu0 %v1407
      %2896 = vmatpush1.msra.mxu0 %v1406
      %2897 = vmatprep.subr.mxu0 %v1405
      %2898 = vmatpush1.msra.mxu0 %v1404
      %2899 = vmatprep.subr.mxu0 %v1403
      %2900 = vmatpush1.msra.mxu0 %v1402
      %2901 = vmatprep.subr.mxu0 %v1401
      %2902 = vmatpush1.msra.mxu0 %v1400
      %2903 = vmatprep.subr.mxu0 %v1399
      %2904 = vmatpush1.msra.mxu0 %v1398
      %2905 = vmatprep.subr.mxu0 %v1397
      %2906 = vmatpush1.msra.mxu0 %v1396
      %2907 = vmatprep.subr.mxu0 %v1395
      %2908 = vmatpush1.msra.mxu0 %v1394
      %2909 = vmatprep.subr.mxu0 %v1457
      %2910 = vmatpush2.msra.mxu0 %v1456
      %2911 = vmatprep.subr.mxu0 %v1455
      %2912 = vmatpush2.msra.mxu0 %v1454
      %2913 = vmatprep.subr.mxu0 %v1453
      %2914 = vmatpush2.msra.mxu0 %v1452
      %2915 = vmatprep.subr.mxu0 %v1451
      %2916 = vmatpush2.msra.mxu0 %v1450
      %2917 = vmatprep.subr.mxu0 %v1449
      %2918 = vmatpush2.msra.mxu0 %v1448
      %2919 = vmatprep.subr.mxu0 %v1447
      %2920 = vmatpush2.msra.mxu0 %v1446
      %2921 = vmatprep.subr.mxu0 %v1445
      %2922 = vmatpush2.msra.mxu0 %v1444
      %2923 = vmatprep.subr.mxu0 %v1443
      %2924 = vmatpush2.msra.mxu0 %v1442
      %2925 = vmatprep.subr.mxu0 %v1441
      %2926 = vmatpush2.msra.mxu0 %v1440
      %2927 = vmatprep.subr.mxu0 %v1439
      %2928 = vmatpush2.msra.mxu0 %v1438
      %2929 = vmatprep.subr.mxu0 %v1437
      %2930 = vmatpush2.msra.mxu0 %v1436
      %2931 = vmatprep.subr.mxu0 %v1435
      %2932 = vmatpush2.msra.mxu0 %v1434
      %2933 = vmatprep.subr.mxu0 %v1433
      %2934 = vmatpush2.msra.mxu0 %v1432
      %2935 = vmatprep.subr.mxu0 %v1431
      %2936 = vmatpush2.msra.mxu0 %v1430
      %2937 = vmatprep.subr.mxu0 %v1429
      %2938 = vmatpush2.msra.mxu0 %v1428
      %2939 = vmatprep.subr.mxu0 %v1427
      %2940 = vmatpush2.msra.mxu0 %v1426
      %2941 = vmatprep.mubr.f32.mxu0 %v2563
      %2942 = vmatmul.mubr.f32.gmra.mxu0 %v2561
      %v2943 = vpop.f32.mrf.mxu0
      %v2944 = vadd.f32 0.0, %v2943
      %v2945 = vpop.f32.mrf.mxu0
      %v2946 = vadd.f32 0.0, %v2945
      %2947 = vdwg.mxu0
      %v2948 = vadd.f32 %v2875, %v2944
      %v2949 = vadd.f32 %v2876, %v2946
      %2950 = vmatprep.subr.mxu0 %v1683
      %2951 = vmatpush1.msra.mxu0 %v1682
      %2952 = vmatprep.subr.mxu0 %v1681
      %2953 = vmatpush1.msra.mxu0 %v1680
      %2954 = vmatprep.subr.mxu0 %v1679
      %2955 = vmatpush1.msra.mxu0 %v1678
      %2956 = vmatprep.subr.mxu0 %v1677
      %2957 = vmatpush1.msra.mxu0 %v1676
      %2958 = vmatprep.subr.mxu0 %v1675
      %2959 = vmatpush1.msra.mxu0 %v1674
      %2960 = vmatprep.subr.mxu0 %v1673
      %2961 = vmatpush1.msra.mxu0 %v1672
      %2962 = vmatprep.subr.mxu0 %v1671
      %2963 = vmatpush1.msra.mxu0 %v1670
      %2964 = vmatprep.subr.mxu0 %v1669
      %2965 = vmatpush1.msra.mxu0 %v1668
      %2966 = vmatprep.subr.mxu0 %v1667
      %2967 = vmatpush1.msra.mxu0 %v1666
      %2968 = vmatprep.subr.mxu0 %v1665
      %2969 = vmatpush1.msra.mxu0 %v1664
      %2970 = vmatprep.subr.mxu0 %v1663
      %2971 = vmatpush1.msra.mxu0 %v1662
      %2972 = vmatprep.subr.mxu0 %v1661
      %2973 = vmatpush1.msra.mxu0 %v1660
      %2974 = vmatprep.subr.mxu0 %v1659
      %2975 = vmatpush1.msra.mxu0 %v1658
      %2976 = vmatprep.subr.mxu0 %v1657
      %2977 = vmatpush1.msra.mxu0 %v1656
      %2978 = vmatprep.subr.mxu0 %v1655
      %2979 = vmatpush1.msra.mxu0 %v1654
      %2980 = vmatprep.subr.mxu0 %v1653
      %2981 = vmatpush1.msra.mxu0 %v1652
      %2982 = vmatprep.subr.mxu0 %v1715
      %2983 = vmatpush2.msra.mxu0 %v1714
      %2984 = vmatprep.subr.mxu0 %v1713
      %2985 = vmatpush2.msra.mxu0 %v1712
      %2986 = vmatprep.subr.mxu0 %v1711
      %2987 = vmatpush2.msra.mxu0 %v1710
      %2988 = vmatprep.subr.mxu0 %v1709
      %2989 = vmatpush2.msra.mxu0 %v1708
      %2990 = vmatprep.subr.mxu0 %v1707
      %2991 = vmatpush2.msra.mxu0 %v1706
      %2992 = vmatprep.subr.mxu0 %v1705
      %2993 = vmatpush2.msra.mxu0 %v1704
      %2994 = vmatprep.subr.mxu0 %v1703
      %2995 = vmatpush2.msra.mxu0 %v1702
      %2996 = vmatprep.subr.mxu0 %v1701
      %2997 = vmatpush2.msra.mxu0 %v1700
      %2998 = vmatprep.subr.mxu0 %v1699
      %2999 = vmatpush2.msra.mxu0 %v1698
      %3000 = vmatprep.subr.mxu0 %v1697
      %3001 = vmatpush2.msra.mxu0 %v1696
      %3002 = vmatprep.subr.mxu0 %v1695
      %3003 = vmatpush2.msra.mxu0 %v1694
      %3004 = vmatprep.subr.mxu0 %v1693
      %3005 = vmatpush2.msra.mxu0 %v1692
      %3006 = vmatprep.subr.mxu0 %v1691
      %3007 = vmatpush2.msra.mxu0 %v1690
      %3008 = vmatprep.subr.mxu0 %v1689
      %3009 = vmatpush2.msra.mxu0 %v1688
      %3010 = vmatprep.subr.mxu0 %v1687
      %3011 = vmatpush2.msra.mxu0 %v1686
      %3012 = vmatprep.subr.mxu0 %v1685
      %3013 = vmatpush2.msra.mxu0 %v1684
      %3014 = vmatprep.mubr.f32.mxu0 %v2569
      %3015 = vmatmul.mubr.f32.gmra.mxu0 %v2567
      %v3016 = vpop.f32.mrf.mxu0
      %v3017 = vadd.f32 0.0, %v3016
      %v3018 = vpop.f32.mrf.mxu0
      %v3019 = vadd.f32 0.0, %v3018
      %3020 = vdwg.mxu0
      %v3021 = vadd.f32 %v2948, %v3017
      %v3022 = vadd.f32 %v2949, %v3019
      %3023 = vmatprep.subr.mxu0 %v1941
      %3024 = vmatpush1.msra.mxu0 %v1940
      %3025 = vmatprep.subr.mxu0 %v1939
      %3026 = vmatpush1.msra.mxu0 %v1938
      %3027 = vmatprep.subr.mxu0 %v1937
      %3028 = vmatpush1.msra.mxu0 %v1936
      %3029 = vmatprep.subr.mxu0 %v1935
      %3030 = vmatpush1.msra.mxu0 %v1934
      %3031 = vmatprep.subr.mxu0 %v1933
      %3032 = vmatpush1.msra.mxu0 %v1932
      %3033 = vmatprep.subr.mxu0 %v1931
      %3034 = vmatpush1.msra.mxu0 %v1930
      %3035 = vmatprep.subr.mxu0 %v1929
      %3036 = vmatpush1.msra.mxu0 %v1928
      %3037 = vmatprep.subr.mxu0 %v1927
      %3038 = vmatpush1.msra.mxu0 %v1926
      %3039 = vmatprep.subr.mxu0 %v1925
      %3040 = vmatpush1.msra.mxu0 %v1924
      %3041 = vmatprep.subr.mxu0 %v1923
      %3042 = vmatpush1.msra.mxu0 %v1922
      %3043 = vmatprep.subr.mxu0 %v1921
      %3044 = vmatpush1.msra.mxu0 %v1920
      %3045 = vmatprep.subr.mxu0 %v1919
      %3046 = vmatpush1.msra.mxu0 %v1918
      %3047 = vmatprep.subr.mxu0 %v1917
      %3048 = vmatpush1.msra.mxu0 %v1916
      %3049 = vmatprep.subr.mxu0 %v1915
      %3050 = vmatpush1.msra.mxu0 %v1914
      %3051 = vmatprep.subr.mxu0 %v1913
      %3052 = vmatpush1.msra.mxu0 %v1912
      %3053 = vmatprep.subr.mxu0 %v1911
      %3054 = vmatpush1.msra.mxu0 %v1910
      %3055 = vmatprep.subr.mxu0 %v1973
      %3056 = vmatpush2.msra.mxu0 %v1972
      %3057 = vmatprep.subr.mxu0 %v1971
      %3058 = vmatpush2.msra.mxu0 %v1970
      %3059 = vmatprep.subr.mxu0 %v1969
      %3060 = vmatpush2.msra.mxu0 %v1968
      %3061 = vmatprep.subr.mxu0 %v1967
      %3062 = vmatpush2.msra.mxu0 %v1966
      %3063 = vmatprep.subr.mxu0 %v1965
      %3064 = vmatpush2.msra.mxu0 %v1964
      %3065 = vmatprep.subr.mxu0 %v1963
      %3066 = vmatpush2.msra.mxu0 %v1962
      %3067 = vmatprep.subr.mxu0 %v1961
      %3068 = vmatpush2.msra.mxu0 %v1960
      %3069 = vmatprep.subr.mxu0 %v1959
      %3070 = vmatpush2.msra.mxu0 %v1958
      %3071 = vmatprep.subr.mxu0 %v1957
      %3072 = vmatpush2.msra.mxu0 %v1956
      %3073 = vmatprep.subr.mxu0 %v1955
      %3074 = vmatpush2.msra.mxu0 %v1954
      %3075 = vmatprep.subr.mxu0 %v1953
      %3076 = vmatpush2.msra.mxu0 %v1952
      %3077 = vmatprep.subr.mxu0 %v1951
      %3078 = vmatpush2.msra.mxu0 %v1950
      %3079 = vmatprep.subr.mxu0 %v1949
      %3080 = vmatpush2.msra.mxu0 %v1948
      %3081 = vmatprep.subr.mxu0 %v1947
      %3082 = vmatpush2.msra.mxu0 %v1946
      %3083 = vmatprep.subr.mxu0 %v1945
      %3084 = vmatpush2.msra.mxu0 %v1944
      %3085 = vmatprep.subr.mxu0 %v1943
      %3086 = vmatpush2.msra.mxu0 %v1942
      %3087 = vmatprep.mubr.f32.mxu0 %v2575
      %3088 = vmatmul.mubr.f32.gmra.mxu0 %v2573
      %v3089 = vpop.f32.mrf.mxu0
      %v3090 = vadd.f32 0.0, %v3089
      %v3091 = vpop.f32.mrf.mxu0
      %v3092 = vadd.f32 0.0, %v3091
      %3093 = vdwg.mxu0
      %v3094 = vadd.f32 %v3021, %v3090
      %v3095 = vadd.f32 %v3022, %v3092
      %3096 = vmatprep.subr.mxu0 %v2135
      %3097 = vmatpush1.msra.mxu0 %v2134
      %3098 = vmatprep.subr.mxu0 %v2133
      %3099 = vmatpush1.msra.mxu0 %v2132
      %3100 = vmatprep.subr.mxu0 %v2131
      %3101 = vmatpush1.msra.mxu0 %v2130
      %3102 = vmatprep.subr.mxu0 %v2129
      %3103 = vmatpush1.msra.mxu0 %v2128
      %3104 = vmatprep.subr.mxu0 %v2127
      %3105 = vmatpush1.msra.mxu0 %v2126
      %3106 = vmatprep.subr.mxu0 %v2125
      %3107 = vmatpush1.msra.mxu0 %v2124
      %3108 = vmatprep.subr.mxu0 %v2123
      %3109 = vmatpush1.msra.mxu0 %v2122
      %3110 = vmatprep.subr.mxu0 %v2121
      %3111 = vmatpush1.msra.mxu0 %v2120
      %3112 = vmatprep.subr.mxu0 %v2119
      %3113 = vmatpush1.msra.mxu0 %v2118
      %3114 = vmatprep.subr.mxu0 %v2117
      %3115 = vmatpush1.msra.mxu0 %v2116
      %3116 = vmatprep.subr.mxu0 %v2115
      %3117 = vmatpush1.msra.mxu0 %v2114
      %3118 = vmatprep.subr.mxu0 %v2113
      %3119 = vmatpush1.msra.mxu0 %v2112
      %3120 = vmatprep.subr.mxu0 %v2111
      %3121 = vmatpush1.msra.mxu0 %v2110
      %3122 = vmatprep.subr.mxu0 %v2109
      %3123 = vmatpush1.msra.mxu0 %v2108
      %3124 = vmatprep.subr.mxu0 %v2107
      %3125 = vmatpush1.msra.mxu0 %v2106
      %3126 = vmatprep.subr.mxu0 %v2105
      %3127 = vmatpush1.msra.mxu0 %v2104
      %3128 = vmatprep.subr.mxu0 %v2167
      %3129 = vmatpush2.msra.mxu0 %v2166
      %3130 = vmatprep.subr.mxu0 %v2165
      %3131 = vmatpush2.msra.mxu0 %v2164
      %3132 = vmatprep.subr.mxu0 %v2163
      %3133 = vmatpush2.msra.mxu0 %v2162
      %3134 = vmatprep.subr.mxu0 %v2161
      %3135 = vmatpush2.msra.mxu0 %v2160
      %3136 = vmatprep.subr.mxu0 %v2159
      %3137 = vmatpush2.msra.mxu0 %v2158
      %3138 = vmatprep.subr.mxu0 %v2157
      %3139 = vmatpush2.msra.mxu0 %v2156
      %3140 = vmatprep.subr.mxu0 %v2155
      %3141 = vmatpush2.msra.mxu0 %v2154
      %3142 = vmatprep.subr.mxu0 %v2153
      %3143 = vmatpush2.msra.mxu0 %v2152
      %3144 = vmatprep.subr.mxu0 %v2151
      %3145 = vmatpush2.msra.mxu0 %v2150
      %3146 = vmatprep.subr.mxu0 %v2149
      %3147 = vmatpush2.msra.mxu0 %v2148
      %3148 = vmatprep.subr.mxu0 %v2147
      %3149 = vmatpush2.msra.mxu0 %v2146
      %3150 = vmatprep.subr.mxu0 %v2145
      %3151 = vmatpush2.msra.mxu0 %v2144
      %3152 = vmatprep.subr.mxu0 %v2143
      %3153 = vmatpush2.msra.mxu0 %v2142
      %3154 = vmatprep.subr.mxu0 %v2141
      %3155 = vmatpush2.msra.mxu0 %v2140
      %3156 = vmatprep.subr.mxu0 %v2139
      %3157 = vmatpush2.msra.mxu0 %v2138
      %3158 = vmatprep.subr.mxu0 %v2137
      %3159 = vmatpush2.msra.mxu0 %v2136
      %3160 = vmatprep.mubr.f32.mxu0 %v2581
      %3161 = vmatmul.mubr.f32.gmra.mxu0 %v2579
      %v3162 = vpop.f32.mrf.mxu0
      %v3163 = vadd.f32 0.0, %v3162
      %v3164 = vpop.f32.mrf.mxu0
      %v3165 = vadd.f32 0.0, %v3164
      %3166 = vdwg.mxu0
      %v3167 = vadd.f32 %v3094, %v3163
      %v3168 = vadd.f32 %v3095, %v3165
      %3169 = vmatprep.subr.mxu0 %v2393
      %3170 = vmatpush1.msra.mxu0 %v2392
      %3171 = vmatprep.subr.mxu0 %v2391
      %3172 = vmatpush1.msra.mxu0 %v2390
      %3173 = vmatprep.subr.mxu0 %v2389
      %3174 = vmatpush1.msra.mxu0 %v2388
      %3175 = vmatprep.subr.mxu0 %v2387
      %3176 = vmatpush1.msra.mxu0 %v2386
      %3177 = vmatprep.subr.mxu0 %v2385
      %3178 = vmatpush1.msra.mxu0 %v2384
      %3179 = vmatprep.subr.mxu0 %v2383
      %3180 = vmatpush1.msra.mxu0 %v2382
      %3181 = vmatprep.subr.mxu0 %v2381
      %3182 = vmatpush1.msra.mxu0 %v2380
      %3183 = vmatprep.subr.mxu0 %v2379
      %3184 = vmatpush1.msra.mxu0 %v2378
      %3185 = vmatprep.subr.mxu0 %v2377
      %3186 = vmatpush1.msra.mxu0 %v2376
      %3187 = vmatprep.subr.mxu0 %v2375
      %3188 = vmatpush1.msra.mxu0 %v2374
      %3189 = vmatprep.subr.mxu0 %v2373
      %3190 = vmatpush1.msra.mxu0 %v2372
      %3191 = vmatprep.subr.mxu0 %v2371
      %3192 = vmatpush1.msra.mxu0 %v2370
      %3193 = vmatprep.subr.mxu0 %v2369
      %3194 = vmatpush1.msra.mxu0 %v2368
      %3195 = vmatprep.subr.mxu0 %v2367
      %3196 = vmatpush1.msra.mxu0 %v2366
      %3197 = vmatprep.subr.mxu0 %v2365
      %3198 = vmatpush1.msra.mxu0 %v2364
      %3199 = vmatprep.subr.mxu0 %v2363
      %3200 = vmatpush1.msra.mxu0 %v2362
      %3201 = vmatprep.subr.mxu0 %v2425
      %3202 = vmatpush2.msra.mxu0 %v2424
      %3203 = vmatprep.subr.mxu0 %v2423
      %3204 = vmatpush2.msra.mxu0 %v2422
      %3205 = vmatprep.subr.mxu0 %v2421
      %3206 = vmatpush2.msra.mxu0 %v2420
      %3207 = vmatprep.subr.mxu0 %v2419
      %3208 = vmatpush2.msra.mxu0 %v2418
      %3209 = vmatprep.subr.mxu0 %v2417
      %3210 = vmatpush2.msra.mxu0 %v2416
      %3211 = vmatprep.subr.mxu0 %v2415
      %3212 = vmatpush2.msra.mxu0 %v2414
      %3213 = vmatprep.subr.mxu0 %v2413
      %3214 = vmatpush2.msra.mxu0 %v2412
      %3215 = vmatprep.subr.mxu0 %v2411
      %3216 = vmatpush2.msra.mxu0 %v2410
      %3217 = vmatprep.subr.mxu0 %v2409
      %3218 = vmatpush2.msra.mxu0 %v2408
      %3219 = vmatprep.subr.mxu0 %v2407
      %3220 = vmatpush2.msra.mxu0 %v2406
      %3221 = vmatprep.subr.mxu0 %v2405
      %3222 = vmatpush2.msra.mxu0 %v2404
      %3223 = vmatprep.subr.mxu0 %v2403
      %3224 = vmatpush2.msra.mxu0 %v2402
      %3225 = vmatprep.subr.mxu0 %v2401
      %3226 = vmatpush2.msra.mxu0 %v2400
      %3227 = vmatprep.subr.mxu0 %v2399
      %3228 = vmatpush2.msra.mxu0 %v2398
      %3229 = vmatprep.subr.mxu0 %v2397
      %3230 = vmatpush2.msra.mxu0 %v2396
      %3231 = vmatprep.subr.mxu0 %v2395
      %3232 = vmatpush2.msra.mxu0 %v2394
      %3233 = vmatprep.mubr.f32.mxu0 %v2587
      %3234 = vmatmul.mubr.f32.gmra.mxu0 %v2585
      %v3235 = vpop.f32.mrf.mxu0
      %v3236 = vadd.f32 0.0, %v3235
      %v3237 = vpop.f32.mrf.mxu0
      %v3238 = vadd.f32 0.0, %v3237
      %3239 = vdwg.mxu0
      %v3240 = vadd.f32 %v3167, %v3236
      %v3241 = vadd.f32 %v3168, %v3238
      %v3242 = vld [vmem:[%s2] sm:$0xff]
      %3244 = vset.pattern.permute.xlu0 0
      %3245 = vperm.xlu0 %3244, %v3242
      %v3246 = vpop.permute.xlu0 %3245
      %v3248 = vadd.f32 %v3240, %v3246
      %v3249 = vadd.f32 %v3241, %v3246
      %v3250 = vmax.f32 %v3248, 0.0
      %v3251 = vmax.f32 %v3249, 0.0
      %v3252 = vld [vmem:[%s3] sm:$0xff]
      %v3253 = vld [vmem:[%s3 + $0x8] sm:$0x1]
      %v3254 = vld [vmem:[%s4] sm:$0xff]
      %v3255 = vld [vmem:[%s4 + $0x8] sm:$0x1]
      %3257 = vset.pattern.permute.xlu0 0
      %3258 = vperm.xlu0 %3257, %v3254
      %v3259 = vpop.permute.xlu0 %3258
      %3262 = vset.pattern.permute.xlu0 0
      %3263 = vperm.xlu0 %3262, %v3255
      %v3264 = vpop.permute.xlu0 %3263
      %vm3266 = vcmask 64512
      %v3268 = vsel %vm3266, %v3252, 0
      %v3271 = vsel %vm3266, %v3253, 0
      %3273 = vmatprep.subr.mxu0 0.0
      %3274 = vmatpush1.msra.mxu0 0.0
      %3275 = vmatprep.subr.mxu0 0.0
      %3276 = vmatpush1.msra.mxu0 0.0
      %3277 = vmatprep.subr.mxu0 0.0
      %3278 = vmatpush1.msra.mxu0 0.0
      %3279 = vmatprep.subr.mxu0 0.0
      %3280 = vmatpush1.msra.mxu0 0.0
      %3281 = vmatprep.subr.mxu0 0.0
      %3282 = vmatpush1.msra.mxu0 0.0
      %3283 = vmatprep.subr.mxu0 0.0
      %3284 = vmatpush1.msra.mxu0 0.0
      %3285 = vmatprep.subr.mxu0 0.0
      %3286 = vmatpush1.msra.mxu0 0.0
      %3287 = vmatprep.subr.mxu0 0.0
      %3288 = vmatpush1.msra.mxu0 0.0
      %3289 = vmatprep.subr.mxu0 0.0
      %3290 = vmatpush1.msra.mxu0 0.0
      %3291 = vmatprep.subr.mxu0 0.0
      %3292 = vmatpush1.msra.mxu0 0.0
      %3293 = vmatprep.subr.mxu0 0.0
      %3294 = vmatpush1.msra.mxu0 0.0
      %3295 = vmatprep.subr.mxu0 0.0
      %3296 = vmatpush1.msra.mxu0 0.0
      %3297 = vmatprep.subr.mxu0 0.0
      %3298 = vmatpush1.msra.mxu0 0.0
      %3299 = vmatprep.subr.mxu0 0.0
      %3300 = vmatpush1.msra.mxu0 0.0
      %3301 = vmatprep.subr.mxu0 0.0
      %3302 = vmatpush1.msra.mxu0 0.0
      %3303 = vmatprep.subr.mxu0 %v3251
      %3304 = vmatpush1.msra.mxu0 %v3250
      %3305 = vmatprep.subr.mxu0 0.0
      %3306 = vmatpush2.msra.mxu0 0.0
      %3307 = vmatprep.subr.mxu0 0.0
      %3308 = vmatpush2.msra.mxu0 0.0
      %3309 = vmatprep.subr.mxu0 0.0
      %3310 = vmatpush2.msra.mxu0 0.0
      %3311 = vmatprep.subr.mxu0 0.0
      %3312 = vmatpush2.msra.mxu0 0.0
      %3313 = vmatprep.subr.mxu0 0.0
      %3314 = vmatpush2.msra.mxu0 0.0
      %3315 = vmatprep.subr.mxu0 0.0
      %3316 = vmatpush2.msra.mxu0 0.0
      %3317 = vmatprep.subr.mxu0 0.0
      %3318 = vmatpush2.msra.mxu0 0.0
      %3319 = vmatprep.subr.mxu0 0.0
      %3320 = vmatpush2.msra.mxu0 0.0
      %3321 = vmatprep.subr.mxu0 0.0
      %3322 = vmatpush2.msra.mxu0 0.0
      %3323 = vmatprep.subr.mxu0 0.0
      %3324 = vmatpush2.msra.mxu0 0.0
      %3325 = vmatprep.subr.mxu0 0.0
      %3326 = vmatpush2.msra.mxu0 0.0
      %3327 = vmatprep.subr.mxu0 0.0
      %3328 = vmatpush2.msra.mxu0 0.0
      %3329 = vmatprep.subr.mxu0 0.0
      %3330 = vmatpush2.msra.mxu0 0.0
      %3331 = vmatprep.subr.mxu0 0.0
      %3332 = vmatpush2.msra.mxu0 0.0
      %3333 = vmatprep.subr.mxu0 0.0
      %3334 = vmatpush2.msra.mxu0 0.0
      %3335 = vmatprep.subr.mxu0 0.0
      %3336 = vmatpush2.msra.mxu0 0.0
      %3337 = vmatprep.mubr.f32.mxu0 0.0
      %3338 = vmatmul.mubr.f32.gmra.mxu0 %v3268
      %v3339 = vpop.f32.mrf.mxu0
      %v3340 = vadd.f32 %v3259, %v3339
      %v3341 = vpop.f32.mrf.mxu0
      %v3342 = vadd.f32 %v3259, %v3341
      %3343 = vmatprep.mubr.f32.mxu0 0.0
      %3344 = vmatmul.mubr.f32.gmra.mxu0 %v3271
      %v3345 = vpop.f32.mrf.mxu0
      %v3346 = vadd.f32 %v3264, %v3345
      %v3347 = vpop.f32.mrf.mxu0
      %v3348 = vadd.f32 %v3264, %v3347
      %3349 = vdwg.mxu0
      %3350 = vst [vmem:[%s224] sm:$0xff] %v3340
      %3351 = vst [vmem:[%s224 + $0x8] sm:$0xff] %v3342
      %3352 = vst [vmem:[%s224 + $0x10] sm:$0x1] %v3346
      %3353 = vst [vmem:[%s224 + $0x18] sm:$0x1] %v3348
      %p3354 = scmp.lt.s32.totalorder %s16, 1
      %s3355 = scalar_select %p3354, %s16, 1
      %s3356 = smul.addr %s3355, 4
      %s3357 = smul.addr %s3356, 8
      %s3358 = scalar_lea.vmem %s5, %s3357
      // Predicated region
      $region41: #{heatmap_layer_2d.1} parent=39 // pred_check
        %p3359 = pneg %p144
      $region42: #{heatmap_layer_2d.1} parent=39 // pred_check_branch
        %3361 = sbr.rel (%p3359) target = $region44
      $region43: #{heatmap_layer_2d.1} parent=39 // pred_region
        _
      $region44: #{heatmap_layer_2d.1} parent=39 // pred_fallthru
        _
    $region40: #{heatmap_layer_2d.1} parent=5 // pred_fallthru
      _
    %p3362 = scmp.le.s32.totalorder 2, %s11
    // Predicated region
    $region45: #{heatmap_layer_2d.1} parent=5 // pred_check
      %p3363 = pneg %p3362
    $region46: #{heatmap_layer_2d.1} parent=5 // pred_check_branch
      %3365 = sbr.rel (%p3363) target = $region48
    $region47: #{heatmap_layer_2d.1} parent=5 // pred_region
      %s3366 = ssub.s32 %s11, 2
      // Predicated region
      $region49: #{heatmap_layer_2d.1} parent=47 // pred_check
        %p3367 = pneg %p150
      $region50: #{heatmap_layer_2d.1} parent=47 // pred_check_branch
        %3369 = sbr.rel (%p3367) target = $region52
      $region51: #{heatmap_layer_2d.1} parent=47 // pred_region
        %p3370 = scmp.lt.s32.totalorder %s17, 1
        %s3371 = scalar_select %p3370, %s17, 1
        %s3372 = smul.addr %s3371, 4
        %s3373 = smul.addr %s3372, 8
        %s3374 = scalar_lea.vmem %s5, %s3373
      $region52: #{heatmap_layer_2d.1} parent=47 // pred_fallthru
        _
    $region48: #{heatmap_layer_2d.1} parent=5 // pred_fallthru
      _
  $region6: #{heatmap_layer_2d.1} parent=0 // loop_footer
    %s15 = sadd.s32 1, %s11
  $region7: #{heatmap_layer_2d.1} parent=0 // loop_footer_branch
    %10 = sbr.rel target = $region3
  $region8: #{heatmap_layer_2d.1} parent=0 // loop_exit
    _

</llo_original>
